<compile_context>
chip_gen: v5e
topology: v5e:2x2
jax: 0.10.0
libtpu: 0.0.40
codegen_flags: <defaults>
</compile_context>

<pallas_src>
import functools

import jax
import jax.numpy as jnp
from jax.experimental import pallas as pl
from jax.experimental.pallas import tpu as pltpu

LANE = 128
VMEM_LIMIT = 32 * 1024 * 1024  # fits v5e/v6e/v7x scoped budgets with headroom


def _round_up(x, m):
    return (x + m - 1) // m * m


def _pick_tile(total, prefer):
    """Largest multiple of 128 that divides `total` (a multiple of 128) and is <= prefer."""
    if total <= prefer:
        return total
    t = prefer - (prefer % LANE)
    while t >= LANE:
        if total % t == 0:
            return t
        t -= LANE
    return LANE


# ----------------------------------------------------------------------------
# Pallas kernel: Conv2d(same) + bias + ReLU as k*k shifted matmuls in VMEM
# ----------------------------------------------------------------------------
def _conv2d_relu_kernel(x_ref, w_ref, b_ref, o_ref, acc_ref, *, k, H, W):
    # x_ref  : (1, H+2p, W+2p, Cin_p)   bf16 (spatially + channel padded)
    # w_ref  : (k, k, Cin_p, Cout_p)    bf16
    # b_ref  : (1, Cout_p)              f32
    # o_ref  : (1, H, W, Cout_p)        bf16
    # acc_ref: (H*W, Cout_p)            f32 VMEM scratch
    acc_ref[...] = jnp.broadcast_to(b_ref[...], acc_ref.shape)  # bias folded into init
    xt = x_ref[0]                                               # (H+2p, W+2p, Cin_p)
    for dy in range(k):
        for dx in range(k):
            patch = xt[dy:dy + H, dx:dx + W, :].reshape(H * W, -1)
            acc_ref[...] += jnp.dot(patch, w_ref[dy, dx],
                                    preferred_element_type=jnp.float32)
    out = jnp.maximum(acc_ref[...], 0.0)                        # ReLU (CNN2D_cell)
    o_ref[...] = out.reshape(1, H, W, -1).astype(o_ref.dtype)


def conv2d_same_relu(x, w_pad, b_pad, *, k):
    """x: (N, H, W, Cin_p) bf16 (channels already lane-padded) -> (N, H, W, Cout_p) bf16."""
    N, H, W, Cin_p = x.shape
    Cout_p = w_pad.shape[-1]
    p = k // 2
    xp = jnp.pad(x, ((0, 0), (p, p), (p, p), (0, 0)))
    Hp, Wp = H + 2 * p, W + 2 * p
    kernel = functools.partial(_conv2d_relu_kernel, k=k, H=H, W=W)
    flops = 2 * N * H * W * k * k * Cin_p * Cout_p
    bytes_accessed = (N * Hp * Wp * Cin_p) * 2 + w_pad.size * 2 + (N * H * W * Cout_p) * 2
    return pl.pallas_call(
        kernel,
        out_shape=jax.ShapeDtypeStruct((N, H, W, Cout_p), jnp.bfloat16),
        grid_spec=pltpu.PrefetchScalarGridSpec(
            num_scalar_prefetch=0,
            grid=(N,),
            in_specs=[
                pl.BlockSpec((1, Hp, Wp, Cin_p), lambda n: (n, 0, 0, 0)),
                pl.BlockSpec((k, k, Cin_p, Cout_p), lambda n: (0, 0, 0, 0)),
                pl.BlockSpec((1, Cout_p), lambda n: (0, 0)),
            ],
            out_specs=pl.BlockSpec((1, H, W, Cout_p), lambda n: (n, 0, 0, 0)),
            scratch_shapes=[pltpu.VMEM((H * W, Cout_p), jnp.float32)],
        ),
        compiler_params=pltpu.CompilerParams(
            dimension_semantics=("parallel",),
            vmem_limit_bytes=VMEM_LIMIT,
        ),
        cost_estimate=pl.CostEstimate(
            flops=flops, transcendentals=0, bytes_accessed=bytes_accessed),
    )(xp, w_pad, b_pad)


# ----------------------------------------------------------------------------
# Pallas kernel: K-tiled GEMM  out = x @ w + b   (bias folded into acc init)
# ----------------------------------------------------------------------------
def _fc_kernel(x_ref, w_ref, b_ref, o_ref, acc_ref):
    kk = pl.program_id(2)

    @pl.when(kk == 0)
    def _():
        acc_ref[...] = jnp.broadcast_to(b_ref[...], acc_ref.shape)

    acc_ref[...] += jnp.dot(x_ref[...], w_ref[...],
                            preferred_element_type=jnp.float32)

    @pl.when(kk == pl.num_programs(2) - 1)
    def _():
        o_ref[...] = acc_ref[...].astype(o_ref.dtype)


def fc_matmul(x, w, b, *, out_dtype):
    """x: (M, K) bf16, w: (K, N) bf16, b: (1, N) f32 -> (M, N) out_dtype. No activation
    (matches the PyTorch forward, which applies plain nn.Linear layers)."""
    M, K = x.shape
    K2, N = w.shape
    assert K == K2
    tm = min(M, 512)                 # batch is padded to a multiple of 8 by the caller
    tn = _pick_tile(N, 256)          # 256-wide N tiles when widths allow (v6e/v7x MXU)
    tk = _pick_tile(K, 512)
    grid = (M // tm, N // tn, K // tk)
    return pl.pallas_call(
        _fc_kernel,
        out_shape=jax.ShapeDtypeStruct((M, N), out_dtype),
        grid_spec=pltpu.PrefetchScalarGridSpec(
            num_scalar_prefetch=0,
            grid=grid,
            in_specs=[
                pl.BlockSpec((tm, tk), lambda i, j, kk: (i, kk)),
                pl.BlockSpec((tk, tn), lambda i, j, kk: (kk, j)),
                pl.BlockSpec((1, tn), lambda i, j, kk: (0, j)),
            ],
            out_specs=pl.BlockSpec((tm, tn), lambda i, j, kk: (i, j)),
            scratch_shapes=[pltpu.VMEM((tm, tn), jnp.float32)],
        ),
        compiler_params=pltpu.CompilerParams(
            dimension_semantics=("parallel", "parallel", "arbitrary"),
            vmem_limit_bytes=VMEM_LIMIT,
        ),
        cost_estimate=pl.CostEstimate(
            flops=2 * M * K * N, transcendentals=0,
            bytes_accessed=x.size * 2 + w.size * 2 + M * N * 4),
    )(x, w, b)


# ----------------------------------------------------------------------------
# CNN3D module (JAX re-implementation of the PyTorch constructor + forward)
# ----------------------------------------------------------------------------
def _uniform(key, shape, fan_in):
    bound = 1.0 / jnp.sqrt(jnp.float32(fan_in))
    return jax.random.uniform(key, shape, jnp.float32, -bound, bound)


class CNN3D:
    def __init__(self, key, n_input, n_hidden, kernel_size, n_hid_layers,
                 n_fully, n_fully_layers, n_out_layer, input_hw,
                 padding=True, batch_norm=False):
        assert padding and not batch_norm  # configuration exercised here
        H, W = input_hw
        self.n_input = n_input
        self.n_hidden = n_hidden if isinstance(n_hidden, list) else [n_hidden] * n_hid_layers
        self.kernel_size = kernel_size if isinstance(kernel_size, list) else [kernel_size] * n_hid_layers
        self.n_fully = n_fully if isinstance(n_fully, list) else [n_fully] * n_fully_layers
        self.n_hid_layers = n_hid_layers
        self.n_fully_layers = n_fully_layers
        self.n_out_layer = n_out_layer
        self.hw = (H, W)
        self.c_last = self.n_hidden[-1]

        # ---- conv (CNN2D_cell) layers: weights stored as (k, k, Cin_p, Cout_p) bf16 ----
        self.conv_params = []
        cin_p_prev = _round_up(n_input, LANE)
        for l in range(self.n_hid_layers):
            cin = self.n_input if l == 0 else self.n_hidden[l - 1]
            cout = self.n_hidden[l]
            k = self.kernel_size[l]
            cin_p, cout_p = cin_p_prev, _round_up(cout, LANE)
            key, kw, kb = jax.random.split(key, 3)
            fan_in = cin * k * k
            w_t = _uniform(kw, (cout, cin, k, k), fan_in)      # PyTorch layout
            b_t = _uniform(kb, (cout,), fan_in)
            w_p = jnp.zeros((k, k, cin_p, cout_p), jnp.float32)
            w_p = w_p.at[:, :, :cin, :cout].set(jnp.transpose(w_t, (2, 3, 1, 0)))
            b_p = jnp.zeros((1, cout_p), jnp.float32).at[0, :cout].set(b_t)
            self.conv_params.append((w_p.astype(jnp.bfloat16), b_p, k))
            cin_p_prev = cout_p

        # ---- fully-connected layers (reproduces the torch constructor quirk) ----
        flat_in = self.c_last * H * W
        assert self.n_fully[0] == flat_in, "n_fully[0] must equal C*H*W of the conv output"
        fc_specs = []
        last_idx = 0
        if self.n_fully_layers > 1:
            for i in range(self.n_fully_layers):
                in_real = self.n_fully[i] if i == 0 else self.n_fully[i - 1]
                fc_specs.append((in_real, self.n_fully[i]))
                last_idx = i
        fc_specs.append((self.n_fully[last_idx], self.n_out_layer))   # Output layer

        # Stored pre-transposed (in_pad, out_pad) bf16; the FIRST applied layer's
        # rows are permuted from NCHW-flatten order to the runtime NHWC-flatten order.
        self.fc_params = []
        runtime_k_pad = _round_up(flat_in, LANE)
        for idx, (in_real, out_real) in enumerate(fc_specs):
            key, kw, kb = jax.random.split(key, 3)
            w_t = _uniform(kw, (out_real, in_real), in_real)   # PyTorch layout (out, in)
            b_t = _uniform(kb, (out_real,), in_real)
            if idx == 0:
                C = self.c_last
                col = jnp.arange(in_real)
                c = col % C
                x_ = (col // C) % W
                y = col // (C * W)
                w_t = w_t[:, c * (H * W) + y * W + x_]         # NCHW cols -> NHWC order
            out_p = _round_up(out_real, LANE)
            w_p = jnp.zeros((runtime_k_pad, out_p), jnp.float32)
            w_p = w_p.at[:in_real, :out_real].set(w_t.T)
            b_p = jnp.zeros((1, out_p), jnp.float32).at[0, :out_real].set(b_t)
            self.fc_params.append((w_p.astype(jnp.bfloat16), b_p, out_real))
            runtime_k_pad = out_p

        self._forward = jax.jit(self._forward_impl)

    def _forward_impl(self, x_nchw):
        N = x_nchw.shape[0]
        # NCHW -> NHWC once, cast to bf16, lane-pad the input channels.
        h = jnp.transpose(x_nchw, (0, 2, 3, 1)).astype(jnp.bfloat16)
        cin_p = self.conv_params[0][0].shape[2]
        h = jnp.pad(h, ((0, 0), (0, 0), (0, 0), (0, cin_p - h.shape[-1])))
        for (w_p, b_p, k) in self.conv_params:
            h = conv2d_same_relu(h, w_p, b_p, k=k)
        # Drop the zero channel padding and flatten in NHWC order; the first FC
        # weight's rows were permuted at init so this equals torch's NCHW flatten.
        h = h[..., :self.c_last].reshape(N, -1)
        # Pad batch rows to a sublane multiple and K to the weight's padded K.
        m_pad = max(_round_up(N, 8), 8)
        k_pad0 = self.fc_params[0][0].shape[0]
        h = jnp.pad(h, ((0, m_pad - N), (0, k_pad0 - h.shape[1])))
        # Torch forward applies exactly n_fully_layers linear layers (so the Output
        # layer runs iff n_fully_layers == 1) with no inter-layer activation.
        applied = self.fc_params[:self.n_fully_layers]
        for li, (w_p, b_p, _) in enumerate(applied):
            last = li == len(applied) - 1
            h = fc_matmul(h, w_p, b_p,
                          out_dtype=jnp.float32 if last else jnp.bfloat16)
        return h[:N, :applied[-1][2]]

    def __call__(self, x_nchw):
        """x_nchw: (batch, channels, height, width) float32."""
        return self._forward(x_nchw)


# ----------------------------------------------------------------------------
if __name__ == "__main__":
    key = jax.random.PRNGKey(0)
    N, Cin, H, W = 2, 4, 16, 16
    n_hidden = 8
    n_out = 16

    key, kmodel, kx = jax.random.split(key, 3)
    model = CNN3D(kmodel,
                  n_input=Cin, n_hidden=n_hidden, kernel_size=3,
                  n_hid_layers=2,
                  n_fully=n_hidden * H * W, n_fully_layers=1,
                  n_out_layer=n_out,
                  input_hw=(H, W))

    x = jax.random.normal(kx, (N, Cin, H, W), dtype=jnp.float32)
    out = model(x)
    out = jax.block_until_ready(out)
    assert out.shape == (N, n_out), out.shape
    assert bool(jnp.all(jnp.isfinite(out)))
    print("KERNEL_OK")
</pallas_src>

<mosaic_0001>
module attributes {stable_mosaic.version = 11 : i64} {
  func.func @_conv2d_relu_kernel(%arg0: i32, %arg1: memref<1x18x18x128xbf16, #tpu.memory_space<vmem>>, %arg2: memref<3x3x128x128xbf16, #tpu.memory_space<vmem>>, %arg3: memref<1x128xf32, #tpu.memory_space<vmem>>, %arg4: memref<1x16x16x128xbf16, #tpu.memory_space<vmem>>, %arg5: memref<256x128xf32, #tpu.memory_space<vmem>>) attributes {dimension_semantics = [#tpu.dimension_semantics<parallel>], iteration_bounds = array<i64: 2>, scalar_prefetch = 0 : i64, scratch_operands = 1 : i64, tpu.core_type = #tpu.core_type<tc>, window_params = [{transform_indices = @transform_0, window_bounds = array<i64: 1, 18, 18, 128>}, {pipeline_mode = #tpu.pipeline_mode<synchronous>, transform_indices = @transform_1, window_bounds = array<i64: 3, 3, 128, 128>}, {pipeline_mode = #tpu.pipeline_mode<synchronous>, transform_indices = @transform_2, window_bounds = array<i64: 1, 128>}, {transform_indices = @transform_3, window_bounds = array<i64: 1, 16, 16, 128>}]} {
    %c0 = arith.constant 0 : index
    %c0_0 = arith.constant 0 : index
    %0 = vector.load %arg3[%c0, %c0_0] : memref<1x128xf32, #tpu.memory_space<vmem>>, vector<1x128xf32>
    %1 = vector.shape_cast %0 : vector<1x128xf32> to vector<1x128xf32>
    %2 = vector.broadcast %1 : vector<1x128xf32> to vector<256x128xf32>
    %c0_1 = arith.constant 0 : index
    %c0_2 = arith.constant 0 : index
    %3 = vector.load %arg5[%c0_1, %c0_2] : memref<256x128xf32, #tpu.memory_space<vmem>>, vector<256x128xf32>
    tpu.vector_store %arg5[%c0_1, %c0_2], %2 {strides = array<i32>} : memref<256x128xf32, #tpu.memory_space<vmem>>, vector<256x128xf32>,
    %c0_3 = arith.constant 0 : index
    %c0_4 = arith.constant 0 : index
    %c0_5 = arith.constant 0 : index
    %c0_6 = arith.constant 0 : index
    %4 = vector.load %arg1[%c0_3, %c0_4, %c0_5, %c0_6] : memref<1x18x18x128xbf16, #tpu.memory_space<vmem>>, vector<1x18x18x128xbf16>
    %5 = vector.shape_cast %4 : vector<1x18x18x128xbf16> to vector<18x18x128xbf16>
    %6 = vector.extract_strided_slice %5 {offsets = [0, 0, 0], sizes = [16, 16, 128], strides = [1, 1, 1]} : vector<18x18x128xbf16> to vector<16x16x128xbf16>
    %7 = vector.shape_cast %6 : vector<16x16x128xbf16> to vector<256x128xbf16>
    %c0_7 = arith.constant 0 : index
    %c0_8 = arith.constant 0 : index
    %8 = vector.load %arg5[%c0_7, %c0_8] : memref<256x128xf32, #tpu.memory_space<vmem>>, vector<256x128xf32>
    %c0_9 = arith.constant 0 : index
    %c0_10 = arith.constant 0 : index
    %c0_11 = arith.constant 0 : index
    %c0_12 = arith.constant 0 : index
    %9 = vector.load %arg2[%c0_9, %c0_10, %c0_11, %c0_12] : memref<3x3x128x128xbf16, #tpu.memory_space<vmem>>, vector<1x1x128x128xbf16>
    %10 = vector.shape_cast %9 : vector<1x1x128x128xbf16> to vector<128x128xbf16>
    %cst = arith.constant dense<0.000000e+00> : vector<256x128xf32>
    %11 = tpu.matmul %7, %10, %cst {dimension_numbers = #tpu.dot_dimension_numbers<[1], [0], [0], [1], [0, 0, 1, 1], [], []>} : vector<256x128xbf16>, vector<128x128xbf16>, vector<256x128xf32> -> vector<256x128xf32>
    %12 = arith.addf %8, %11 : vector<256x128xf32>
    %c0_13 = arith.constant 0 : index
    %c0_14 = arith.constant 0 : index
    %13 = vector.load %arg5[%c0_13, %c0_14] : memref<256x128xf32, #tpu.memory_space<vmem>>, vector<256x128xf32>
    tpu.vector_store %arg5[%c0_13, %c0_14], %12 {strides = array<i32>} : memref<256x128xf32, #tpu.memory_space<vmem>>, vector<256x128xf32>,
    %14 = vector.extract_strided_slice %5 {offsets = [0, 1, 0], sizes = [16, 16, 128], strides = [1, 1, 1]} : vector<18x18x128xbf16> to vector<16x16x128xbf16>
    %15 = vector.shape_cast %14 : vector<16x16x128xbf16> to vector<256x128xbf16>
    %c0_15 = arith.constant 0 : index
    %c0_16 = arith.constant 0 : index
    %16 = vector.load %arg5[%c0_15, %c0_16] : memref<256x128xf32, #tpu.memory_space<vmem>>, vector<256x128xf32>
    %c0_17 = arith.constant 0 : index
    %c1 = arith.constant 1 : index
    %c0_18 = arith.constant 0 : index
    %c0_19 = arith.constant 0 : index
    %17 = vector.load %arg2[%c0_17, %c1, %c0_18, %c0_19] : memref<3x3x128x128xbf16, #tpu.memory_space<vmem>>, vector<1x1x128x128xbf16>
    %18 = vector.shape_cast %17 : vector<1x1x128x128xbf16> to vector<128x128xbf16>
    %cst_20 = arith.constant dense<0.000000e+00> : vector<256x128xf32>
    %19 = tpu.matmul %15, %18, %cst_20 {dimension_numbers = #tpu.dot_dimension_numbers<[1], [0], [0], [1], [0, 0, 1, 1], [], []>} : vector<256x128xbf16>, vector<128x128xbf16>, vector<256x128xf32> -> vector<256x128xf32>
    %20 = arith.addf %16, %19 : vector<256x128xf32>
    %c0_21 = arith.constant 0 : index
    %c0_22 = arith.constant 0 : index
    %21 = vector.load %arg5[%c0_21, %c0_22] : memref<256x128xf32, #tpu.memory_space<vmem>>, vector<256x128xf32>
    tpu.vector_store %arg5[%c0_21, %c0_22], %20 {strides = array<i32>} : memref<256x128xf32, #tpu.memory_space<vmem>>, vector<256x128xf32>,
    %22 = vector.extract_strided_slice %5 {offsets = [0, 2, 0], sizes = [16, 16, 128], strides = [1, 1, 1]} : vector<18x18x128xbf16> to vector<16x16x128xbf16>
    %23 = vector.shape_cast %22 : vector<16x16x128xbf16> to vector<256x128xbf16>
    %c0_23 = arith.constant 0 : index
    %c0_24 = arith.constant 0 : index
    %24 = vector.load %arg5[%c0_23, %c0_24] : memref<256x128xf32, #tpu.memory_space<vmem>>, vector<256x128xf32>
    %c0_25 = arith.constant 0 : index
    %c2 = arith.constant 2 : index
    %c0_26 = arith.constant 0 : index
    %c0_27 = arith.constant 0 : index
    %25 = vector.load %arg2[%c0_25, %c2, %c0_26, %c0_27] : memref<3x3x128x128xbf16, #tpu.memory_space<vmem>>, vector<1x1x128x128xbf16>
    %26 = vector.shape_cast %25 : vector<1x1x128x128xbf16> to vector<128x128xbf16>
    %cst_28 = arith.constant dense<0.000000e+00> : vector<256x128xf32>
    %27 = tpu.matmul %23, %26, %cst_28 {dimension_numbers = #tpu.dot_dimension_numbers<[1], [0], [0], [1], [0, 0, 1, 1], [], []>} : vector<256x128xbf16>, vector<128x128xbf16>, vector<256x128xf32> -> vector<256x128xf32>
    %28 = arith.addf %24, %27 : vector<256x128xf32>
    %c0_29 = arith.constant 0 : index
    %c0_30 = arith.constant 0 : index
    %29 = vector.load %arg5[%c0_29, %c0_30] : memref<256x128xf32, #tpu.memory_space<vmem>>, vector<256x128xf32>
    tpu.vector_store %arg5[%c0_29, %c0_30], %28 {strides = array<i32>} : memref<256x128xf32, #tpu.memory_space<vmem>>, vector<256x128xf32>,
    %30 = vector.extract_strided_slice %5 {offsets = [1, 0, 0], sizes = [16, 16, 128], strides = [1, 1, 1]} : vector<18x18x128xbf16> to vector<16x16x128xbf16>
    %31 = vector.shape_cast %30 : vector<16x16x128xbf16> to vector<256x128xbf16>
    %c0_31 = arith.constant 0 : index
    %c0_32 = arith.constant 0 : index
    %32 = vector.load %arg5[%c0_31, %c0_32] : memref<256x128xf32, #tpu.memory_space<vmem>>, vector<256x128xf32>
    %c1_33 = arith.constant 1 : index
    %c0_34 = arith.constant 0 : index
    %c0_35 = arith.constant 0 : index
    %c0_36 = arith.constant 0 : index
    %33 = vector.load %arg2[%c1_33, %c0_34, %c0_35, %c0_36] : memref<3x3x128x128xbf16, #tpu.memory_space<vmem>>, vector<1x1x128x128xbf16>
    %34 = vector.shape_cast %33 : vector<1x1x128x128xbf16> to vector<128x128xbf16>
    %cst_37 = arith.constant dense<0.000000e+00> : vector<256x128xf32>
    %35 = tpu.matmul %31, %34, %cst_37 {dimension_numbers = #tpu.dot_dimension_numbers<[1], [0], [0], [1], [0, 0, 1, 1], [], []>} : vector<256x128xbf16>, vector<128x128xbf16>, vector<256x128xf32> -> vector<256x128xf32>
    %36 = arith.addf %32, %35 : vector<256x128xf32>
    %c0_38 = arith.constant 0 : index
    %c0_39 = arith.constant 0 : index
    %37 = vector.load %arg5[%c0_38, %c0_39] : memref<256x128xf32, #tpu.memory_space<vmem>>, vector<256x128xf32>
    tpu.vector_store %arg5[%c0_38, %c0_39], %36 {strides = array<i32>} : memref<256x128xf32, #tpu.memory_space<vmem>>, vector<256x128xf32>,
    %38 = vector.extract_strided_slice %5 {offsets = [1, 1, 0], sizes = [16, 16, 128], strides = [1, 1, 1]} : vector<18x18x128xbf16> to vector<16x16x128xbf16>
    %39 = vector.shape_cast %38 : vector<16x16x128xbf16> to vector<256x128xbf16>
    %c0_40 = arith.constant 0 : index
    %c0_41 = arith.constant 0 : index
    %40 = vector.load %arg5[%c0_40, %c0_41] : memref<256x128xf32, #tpu.memory_space<vmem>>, vector<256x128xf32>
    %c1_42 = arith.constant 1 : index
    %c1_43 = arith.constant 1 : index
    %c0_44 = arith.constant 0 : index
    %c0_45 = arith.constant 0 : index
    %41 = vector.load %arg2[%c1_42, %c1_43, %c0_44, %c0_45] : memref<3x3x128x128xbf16, #tpu.memory_space<vmem>>, vector<1x1x128x128xbf16>
    %42 = vector.shape_cast %41 : vector<1x1x128x128xbf16> to vector<128x128xbf16>
    %cst_46 = arith.constant dense<0.000000e+00> : vector<256x128xf32>
    %43 = tpu.matmul %39, %42, %cst_46 {dimension_numbers = #tpu.dot_dimension_numbers<[1], [0], [0], [1], [0, 0, 1, 1], [], []>} : vector<256x128xbf16>, vector<128x128xbf16>, vector<256x128xf32> -> vector<256x128xf32>
    %44 = arith.addf %40, %43 : vector<256x128xf32>
    %c0_47 = arith.constant 0 : index
    %c0_48 = arith.constant 0 : index
    %45 = vector.load %arg5[%c0_47, %c0_48] : memref<256x128xf32, #tpu.memory_space<vmem>>, vector<256x128xf32>
    tpu.vector_store %arg5[%c0_47, %c0_48], %44 {strides = array<i32>} : memref<256x128xf32, #tpu.memory_space<vmem>>, vector<256x128xf32>,
    %46 = vector.extract_strided_slice %5 {offsets = [1, 2, 0], sizes = [16, 16, 128], strides = [1, 1, 1]} : vector<18x18x128xbf16> to vector<16x16x128xbf16>
    %47 = vector.shape_cast %46 : vector<16x16x128xbf16> to vector<256x128xbf16>
    %c0_49 = arith.constant 0 : index
    %c0_50 = arith.constant 0 : index
    %48 = vector.load %arg5[%c0_49, %c0_50] : memref<256x128xf32, #tpu.memory_space<vmem>>, vector<256x128xf32>
    %c1_51 = arith.constant 1 : index
    %c2_52 = arith.constant 2 : index
    %c0_53 = arith.constant 0 : index
    %c0_54 = arith.constant 0 : index
    %49 = vector.load %arg2[%c1_51, %c2_52, %c0_53, %c0_54] : memref<3x3x128x128xbf16, #tpu.memory_space<vmem>>, vector<1x1x128x128xbf16>
    %50 = vector.shape_cast %49 : vector<1x1x128x128xbf16> to vector<128x128xbf16>
    %cst_55 = arith.constant dense<0.000000e+00> : vector<256x128xf32>
    %51 = tpu.matmul %47, %50, %cst_55 {dimension_numbers = #tpu.dot_dimension_numbers<[1], [0], [0], [1], [0, 0, 1, 1], [], []>} : vector<256x128xbf16>, vector<128x128xbf16>, vector<256x128xf32> -> vector<256x128xf32>
    %52 = arith.addf %48, %51 : vector<256x128xf32>
    %c0_56 = arith.constant 0 : index
    %c0_57 = arith.constant 0 : index
    %53 = vector.load %arg5[%c0_56, %c0_57] : memref<256x128xf32, #tpu.memory_space<vmem>>, vector<256x128xf32>
    tpu.vector_store %arg5[%c0_56, %c0_57], %52 {strides = array<i32>} : memref<256x128xf32, #tpu.memory_space<vmem>>, vector<256x128xf32>,
    %54 = vector.extract_strided_slice %5 {offsets = [2, 0, 0], sizes = [16, 16, 128], strides = [1, 1, 1]} : vector<18x18x128xbf16> to vector<16x16x128xbf16>
    %55 = vector.shape_cast %54 : vector<16x16x128xbf16> to vector<256x128xbf16>
    %c0_58 = arith.constant 0 : index
    %c0_59 = arith.constant 0 : index
    %56 = vector.load %arg5[%c0_58, %c0_59] : memref<256x128xf32, #tpu.memory_space<vmem>>, vector<256x128xf32>
    %c2_60 = arith.constant 2 : index
    %c0_61 = arith.constant 0 : index
    %c0_62 = arith.constant 0 : index
    %c0_63 = arith.constant 0 : index
    %57 = vector.load %arg2[%c2_60, %c0_61, %c0_62, %c0_63] : memref<3x3x128x128xbf16, #tpu.memory_space<vmem>>, vector<1x1x128x128xbf16>
    %58 = vector.shape_cast %57 : vector<1x1x128x128xbf16> to vector<128x128xbf16>
    %cst_64 = arith.constant dense<0.000000e+00> : vector<256x128xf32>
    %59 = tpu.matmul %55, %58, %cst_64 {dimension_numbers = #tpu.dot_dimension_numbers<[1], [0], [0], [1], [0, 0, 1, 1], [], []>} : vector<256x128xbf16>, vector<128x128xbf16>, vector<256x128xf32> -> vector<256x128xf32>
    %60 = arith.addf %56, %59 : vector<256x128xf32>
    %c0_65 = arith.constant 0 : index
    %c0_66 = arith.constant 0 : index
    %61 = vector.load %arg5[%c0_65, %c0_66] : memref<256x128xf32, #tpu.memory_space<vmem>>, vector<256x128xf32>
    tpu.vector_store %arg5[%c0_65, %c0_66], %60 {strides = array<i32>} : memref<256x128xf32, #tpu.memory_space<vmem>>, vector<256x128xf32>,
    %62 = vector.extract_strided_slice %5 {offsets = [2, 1, 0], sizes = [16, 16, 128], strides = [1, 1, 1]} : vector<18x18x128xbf16> to vector<16x16x128xbf16>
    %63 = vector.shape_cast %62 : vector<16x16x128xbf16> to vector<256x128xbf16>
    %c0_67 = arith.constant 0 : index
    %c0_68 = arith.constant 0 : index
    %64 = vector.load %arg5[%c0_67, %c0_68] : memref<256x128xf32, #tpu.memory_space<vmem>>, vector<256x128xf32>
    %c2_69 = arith.constant 2 : index
    %c1_70 = arith.constant 1 : index
    %c0_71 = arith.constant 0 : index
    %c0_72 = arith.constant 0 : index
    %65 = vector.load %arg2[%c2_69, %c1_70, %c0_71, %c0_72] : memref<3x3x128x128xbf16, #tpu.memory_space<vmem>>, vector<1x1x128x128xbf16>
    %66 = vector.shape_cast %65 : vector<1x1x128x128xbf16> to vector<128x128xbf16>
    %cst_73 = arith.constant dense<0.000000e+00> : vector<256x128xf32>
    %67 = tpu.matmul %63, %66, %cst_73 {dimension_numbers = #tpu.dot_dimension_numbers<[1], [0], [0], [1], [0, 0, 1, 1], [], []>} : vector<256x128xbf16>, vector<128x128xbf16>, vector<256x128xf32> -> vector<256x128xf32>
    %68 = arith.addf %64, %67 : vector<256x128xf32>
    %c0_74 = arith.constant 0 : index
    %c0_75 = arith.constant 0 : index
    %69 = vector.load %arg5[%c0_74, %c0_75] : memref<256x128xf32, #tpu.memory_space<vmem>>, vector<256x128xf32>
    tpu.vector_store %arg5[%c0_74, %c0_75], %68 {strides = array<i32>} : memref<256x128xf32, #tpu.memory_space<vmem>>, vector<256x128xf32>,
    %70 = vector.extract_strided_slice %5 {offsets = [2, 2, 0], sizes = [16, 16, 128], strides = [1, 1, 1]} : vector<18x18x128xbf16> to vector<16x16x128xbf16>
    %71 = vector.shape_cast %70 : vector<16x16x128xbf16> to vector<256x128xbf16>
    %c0_76 = arith.constant 0 : index
    %c0_77 = arith.constant 0 : index
    %72 = vector.load %arg5[%c0_76, %c0_77] : memref<256x128xf32, #tpu.memory_space<vmem>>, vector<256x128xf32>
    %c2_78 = arith.constant 2 : index
    %c2_79 = arith.constant 2 : index
    %c0_80 = arith.constant 0 : index
    %c0_81 = arith.constant 0 : index
    %73 = vector.load %arg2[%c2_78, %c2_79, %c0_80, %c0_81] : memref<3x3x128x128xbf16, #tpu.memory_space<vmem>>, vector<1x1x128x128xbf16>
    %74 = vector.shape_cast %73 : vector<1x1x128x128xbf16> to vector<128x128xbf16>
    %cst_82 = arith.constant dense<0.000000e+00> : vector<256x128xf32>
    %75 = tpu.matmul %71, %74, %cst_82 {dimension_numbers = #tpu.dot_dimension_numbers<[1], [0], [0], [1], [0, 0, 1, 1], [], []>} : vector<256x128xbf16>, vector<128x128xbf16>, vector<256x128xf32> -> vector<256x128xf32>
    %76 = arith.addf %72, %75 : vector<256x128xf32>
    %c0_83 = arith.constant 0 : index
    %c0_84 = arith.constant 0 : index
    %77 = vector.load %arg5[%c0_83, %c0_84] : memref<256x128xf32, #tpu.memory_space<vmem>>, vector<256x128xf32>
    tpu.vector_store %arg5[%c0_83, %c0_84], %76 {strides = array<i32>} : memref<256x128xf32, #tpu.memory_space<vmem>>, vector<256x128xf32>,
    %c0_85 = arith.constant 0 : index
    %c0_86 = arith.constant 0 : index
    %78 = vector.load %arg5[%c0_85, %c0_86] : memref<256x128xf32, #tpu.memory_space<vmem>>, vector<256x128xf32>
    %cst_87 = arith.constant 0.000000e+00 : f32
    %79 = vector.broadcast %cst_87 : f32 to vector<256x128xf32>
    %80 = arith.maximumf %78, %79 : vector<256x128xf32>
    %81 = vector.shape_cast %80 : vector<256x128xf32> to vector<1x16x16x128xf32>
    %82 = arith.truncf %81 : vector<1x16x16x128xf32> to vector<1x16x16x128xbf16>
    %c0_88 = arith.constant 0 : index
    %c0_89 = arith.constant 0 : index
    %c0_90 = arith.constant 0 : index
    %c0_91 = arith.constant 0 : index
    %83 = vector.load %arg4[%c0_88, %c0_89, %c0_90, %c0_91] : memref<1x16x16x128xbf16, #tpu.memory_space<vmem>>, vector<1x16x16x128xbf16>
    tpu.vector_store %arg4[%c0_88, %c0_89, %c0_90, %c0_91], %82 {strides = array<i32>} : memref<1x16x16x128xbf16, #tpu.memory_space<vmem>>, vector<1x16x16x128xbf16>,
    return
  }
  func.func @transform_0(%arg0: i32) -> (i32, i32, i32, i32) {
    %c0_i32 = arith.constant 0 : i32
    %c0_i32_0 = arith.constant 0 : i32
    %c0_i32_1 = arith.constant 0 : i32
    %c0_i32_2 = arith.constant 0 : i32
    return %arg0, %c0_i32, %c0_i32_0, %c0_i32_1 : i32, i32, i32, i32
  }
  func.func @transform_1(%arg0: i32) -> (i32, i32, i32, i32) {
    %c0_i32 = arith.constant 0 : i32
    %c0_i32_0 = arith.constant 0 : i32
    %c0_i32_1 = arith.constant 0 : i32
    %c0_i32_2 = arith.constant 0 : i32
    %c0_i32_3 = arith.constant 0 : i32
    return %c0_i32, %c0_i32_0, %c0_i32_1, %c0_i32_2 : i32, i32, i32, i32
  }
  func.func @transform_2(%arg0: i32) -> (i32, i32) {
    %c0_i32 = arith.constant 0 : i32
    %c0_i32_0 = arith.constant 0 : i32
    %c0_i32_1 = arith.constant 0 : i32
    return %c0_i32, %c0_i32_0 : i32, i32
  }
  func.func @transform_3(%arg0: i32) -> (i32, i32, i32, i32) {
    %c0_i32 = arith.constant 0 : i32
    %c0_i32_0 = arith.constant 0 : i32
    %c0_i32_1 = arith.constant 0 : i32
    %c0_i32_2 = arith.constant 0 : i32
    return %arg0, %c0_i32, %c0_i32_0, %c0_i32_1 : i32, i32, i32, i32
  }
}

module attributes {stable_mosaic.version = 11 : i64} {
  func.func @_fc_kernel(%arg0: i32, %arg1: i32, %arg2: i32, %arg3: memref<8x512xbf16, #tpu.memory_space<vmem>>, %arg4: memref<512x128xbf16, #tpu.memory_space<vmem>>, %arg5: memref<1x128xf32, #tpu.memory_space<vmem>>, %arg6: memref<8x128xf32, #tpu.memory_space<vmem>>, %arg7: memref<8x128xf32, #tpu.memory_space<vmem>>) attributes {dimension_semantics = [#tpu.dimension_semantics<parallel>, #tpu.dimension_semantics<parallel>, #tpu.dimension_semantics<arbitrary>], iteration_bounds = array<i64: 1, 1, 4>, scalar_prefetch = 0 : i64, scratch_operands = 1 : i64, tpu.core_type = #tpu.core_type<tc>, window_params = [{transform_indices = @transform_0, window_bounds = array<i64: 8, 512>}, {transform_indices = @transform_1, window_bounds = array<i64: 512, 128>}, {transform_indices = @transform_2, window_bounds = array<i64: 1, 128>}, {transform_indices = @transform_3, window_bounds = array<i64: 8, 128>}]} {
    %c0_i32 = arith.constant 0 : i32
    %0 = arith.cmpi eq, %arg2, %c0_i32 : i32
    %1 = arith.extui %0 : i1 to i32
    %c0_i32_0 = arith.constant 0 : i32
    %2 = arith.cmpi ne, %1, %c0_i32_0 : i32
    scf.if %2 {
      %c0_9 = arith.constant 0 : index
      %c0_10 = arith.constant 0 : index
      %12 = vector.load %arg5[%c0_9, %c0_10] : memref<1x128xf32, #tpu.memory_space<vmem>>, vector<1x128xf32>
      %13 = vector.shape_cast %12 : vector<1x128xf32> to vector<1x128xf32>
      %14 = vector.broadcast %13 : vector<1x128xf32> to vector<8x128xf32>
      %c0_11 = arith.constant 0 : index
      %c0_12 = arith.constant 0 : index
      %15 = vector.load %arg7[%c0_11, %c0_12] : memref<8x128xf32, #tpu.memory_space<vmem>>, vector<8x128xf32>
      tpu.vector_store %arg7[%c0_11, %c0_12], %14 {strides = array<i32>} : memref<8x128xf32, #tpu.memory_space<vmem>>, vector<8x128xf32>,
    } else {
    }
    %c0 = arith.constant 0 : index
    %c0_1 = arith.constant 0 : index
    %3 = vector.load %arg7[%c0, %c0_1] : memref<8x128xf32, #tpu.memory_space<vmem>>, vector<8x128xf32>
    %c0_2 = arith.constant 0 : index
    %c0_3 = arith.constant 0 : index
    %4 = vector.load %arg3[%c0_2, %c0_3] : memref<8x512xbf16, #tpu.memory_space<vmem>>, vector<8x512xbf16>
    %c0_4 = arith.constant 0 : index
    %c0_5 = arith.constant 0 : index
    %5 = vector.load %arg4[%c0_4, %c0_5] : memref<512x128xbf16, #tpu.memory_space<vmem>>, vector<512x128xbf16>
    %cst = arith.constant dense<0.000000e+00> : vector<8x128xf32>
    %6 = tpu.matmul %4, %5, %cst {dimension_numbers = #tpu.dot_dimension_numbers<[1], [0], [0], [1], [0, 0, 1, 1], [], []>} : vector<8x512xbf16>, vector<512x128xbf16>, vector<8x128xf32> -> vector<8x128xf32>
    %7 = arith.addf %3, %6 : vector<8x128xf32>
    %c0_6 = arith.constant 0 : index
    %c0_7 = arith.constant 0 : index
    %8 = vector.load %arg7[%c0_6, %c0_7] : memref<8x128xf32, #tpu.memory_space<vmem>>, vector<8x128xf32>
    tpu.vector_store %arg7[%c0_6, %c0_7], %7 {strides = array<i32>} : memref<8x128xf32, #tpu.memory_space<vmem>>, vector<8x128xf32>,
    %c3_i32 = arith.constant 3 : i32
    %9 = arith.cmpi eq, %arg2, %c3_i32 : i32
    %10 = arith.extui %9 : i1 to i32
    %c0_i32_8 = arith.constant 0 : i32
    %11 = arith.cmpi ne, %10, %c0_i32_8 : i32
    scf.if %11 {
      %c0_9 = arith.constant 0 : index
      %c0_10 = arith.constant 0 : index
      %12 = vector.load %arg7[%c0_9, %c0_10] : memref<8x128xf32, #tpu.memory_space<vmem>>, vector<8x128xf32>
      %c0_11 = arith.constant 0 : index
      %c0_12 = arith.constant 0 : index
      %13 = vector.load %arg6[%c0_11, %c0_12] : memref<8x128xf32, #tpu.memory_space<vmem>>, vector<8x128xf32>
      tpu.vector_store %arg6[%c0_11, %c0_12], %12 {strides = array<i32>} : memref<8x128xf32, #tpu.memory_space<vmem>>, vector<8x128xf32>,
    } else {
    }
    return
  }
  func.func @transform_0(%arg0: i32, %arg1: i32, %arg2: i32) -> (i32, i32) {
    %c0_i32 = arith.constant 0 : i32
    return %arg0, %arg2 : i32, i32
  }
  func.func @transform_1(%arg0: i32, %arg1: i32, %arg2: i32) -> (i32, i32) {
    %c0_i32 = arith.constant 0 : i32
    return %arg2, %arg1 : i32, i32
  }
  func.func @transform_2(%arg0: i32, %arg1: i32, %arg2: i32) -> (i32, i32) {
    %c0_i32 = arith.constant 0 : i32
    %c0_i32_0 = arith.constant 0 : i32
    return %c0_i32, %arg1 : i32, i32
  }
  func.func @transform_3(%arg0: i32, %arg1: i32, %arg2: i32) -> (i32, i32) {
    %c0_i32 = arith.constant 0 : i32
    return %arg0, %arg1 : i32, i32
  }
}

</mosaic_0001>

<llo_original>
// kernel: _forward_impl.5
$region0: #{_forward_impl.5}
  #allocation0 [shape = 'u32[]', space=smem, size = 0x4, offset = 0x4, fixed_abs, tag = 'smem constant byte address 0x4 - core index']
  #allocation1 [shape = 'u32[72,128]{1,0:T(1,128)}', space=vmem, size = 0x9000, scoped, tag = 'internal scratch']
  #allocation2 [shape = 'f32[8,128]{1,0:T(8,128)}', space=vmem, size = 0x1000, scoped, tag = 'scratch operand']
  %s0 = inlined_call_operand.vmem [shape: bf16[8,2048], index: 0, kind: input, shape index: {}]
  %s1 = inlined_call_operand.vmem [shape: bf16[2048,128], index: 1, kind: input, shape index: {}]
  %s2 = inlined_call_operand.vmem [shape: f32[1,128], index: 2, kind: input, shape index: {}]
  %s3 = inlined_call_operand.vmem [shape: f32[8,128], index: 3, kind: output, shape index: {}]
  %s4 = sld [smem:[#allocation0]]
  $region53: #{_forward_impl.5} parent=0
    _
  %s6 = ssub.s32 1, %s4
  %s7 = scalar_select 0, %s6, %s4
  loop: start=0, step=1, limit=6
  $region2: #{_forward_impl.5} parent=0 // loop_pre_header
    _
  $region3: #{_forward_impl.5} parent=0 // loop_header
    %s9 = sphi 0, %s13
    %p10 = scmp.ge.s32.totalorder %s9, 6
    %s16 = sphi 0, %s35
    %s17 = sphi 0, %s31
    %s18 = sphi 0, %s27
    %s19 = sphi 0, %s16
    %s20 = sphi 0, %s17
    %s21 = sphi 0, %s18
    %s22 = sphi 0, %s19
    %s23 = sphi 0, %s20
    %s24 = sphi 0, %s21
    %s40 = sphi 0, %s42
    %s43 = sphi 0, %s40
    %s44 = sphi 0, %s43
    %s60 = sphi 0, %s44
    %s68 = sphi 0, %s70
    %s71 = sphi 0, %s68
    %s72 = sphi 0, %s71
    %s88 = sphi 0, %s72
    %s94 = sphi 0, %s96
    %s97 = sphi 0, %s94
    %s98 = sphi 0, %s97
    %s114 = sphi 0, %s98
    %s122 = sphi 0, %s124
    %s125 = sphi 0, %s122
    %s126 = sphi 0, %s125
    %s142 = sphi 0, %s126
  $region4: #{_forward_impl.5} parent=0 // loop_header_branch
    %12 = sbr.rel (%p10) target = $region8
  $region5: #{_forward_impl.5} parent=0 // loop_body
    %s14 = ssub.s32 %s9, 1
    %s15 = ssub.s32 %s9, 2
    %s25 = sadd.s32 1, %s18
    %p26 = scmp.ge.s32.totalorder %s25, 4
    %s27 = scalar_select %p26, 0, %s25
    %s28 = sadd.s32 1, %s17
    %s29 = scalar_select %p26, %s28, %s17
    %p30 = scmp.ge.s32.totalorder %s29, 1
    %s31 = scalar_select %p30, 0, %s29
    %s32 = sadd.s32 1, %s16
    %s33 = scalar_select %p30, %s32, %s16
    %p34 = scmp.ge.s32.totalorder %s33, 1
    %s35 = scalar_select %p34, 0, %s33
    %s36 = ssub.s32 %s16, %s35
    %s37 = ssub.s32 %s18, %s27
    %s38 = sor.u32 %s36, %s37
    %p39 = scmp.eq.s32.totalorder %s38, 0
    %s41 = sadd.s32 %s40, 1
    %s42 = scalar_select %p39, %s40, %s41
    %p45 = pneg %p39
    %p46 = scmp.eq.s32.totalorder %s9, 3
    %p47 = por %p45, %p46
    %p48 = scmp.ne.s32.totalorder %s40, %s43
    %p49 = scmp.eq.s32.totalorder %s9, 0
    %p50 = por %p48, %p49
    %p51 = scmp.ne.s32.totalorder %s40, %s43
    %p52 = scmp.eq.s32.totalorder %s14, 3
    %p53 = por %p51, %p52
    %p54 = scmp.ne.s32.totalorder %s43, %s44
    %p55 = scmp.eq.s32.totalorder %s14, 0
    %p56 = por %p54, %p55
    %p57 = scmp.ne.s32.totalorder %s43, %s44
    %p58 = scmp.eq.s32.totalorder %s15, 3
    %p59 = por %p57, %p58
    %p61 = scmp.ne.s32.totalorder %s44, %s60
    %p62 = scmp.eq.s32.totalorder %s15, 0
    %p63 = por %p61, %p62
    %s64 = ssub.s32 %s18, %s27
    %s65 = ssub.s32 %s17, %s31
    %s66 = sor.u32 %s64, %s65
    %p67 = scmp.eq.s32.totalorder %s66, 0
    %s69 = sadd.s32 %s68, 1
    %s70 = scalar_select %p67, %s68, %s69
    %p73 = pneg %p67
    %p74 = scmp.eq.s32.totalorder %s9, 3
    %p75 = por %p73, %p74
    %p76 = scmp.ne.s32.totalorder %s68, %s71
    %p77 = scmp.eq.s32.totalorder %s9, 0
    %p78 = por %p76, %p77
    %p79 = scmp.ne.s32.totalorder %s68, %s71
    %p80 = scmp.eq.s32.totalorder %s14, 3
    %p81 = por %p79, %p80
    %p82 = scmp.ne.s32.totalorder %s71, %s72
    %p83 = scmp.eq.s32.totalorder %s14, 0
    %p84 = por %p82, %p83
    %p85 = scmp.ne.s32.totalorder %s71, %s72
    %p86 = scmp.eq.s32.totalorder %s15, 3
    %p87 = por %p85, %p86
    %p89 = scmp.ne.s32.totalorder %s72, %s88
    %p90 = scmp.eq.s32.totalorder %s15, 0
    %p91 = por %p89, %p90
    %s92 = ssub.s32 %s17, %s31
    %p93 = scmp.eq.s32.totalorder %s92, 0
    %s95 = sadd.s32 %s94, 1
    %s96 = scalar_select %p93, %s94, %s95
    %p99 = pneg %p93
    %p100 = scmp.eq.s32.totalorder %s9, 3
    %p101 = por %p99, %p100
    %p102 = scmp.ne.s32.totalorder %s94, %s97
    %p103 = scmp.eq.s32.totalorder %s9, 0
    %p104 = por %p102, %p103
    %p105 = scmp.ne.s32.totalorder %s94, %s97
    %p106 = scmp.eq.s32.totalorder %s14, 3
    %p107 = por %p105, %p106
    %p108 = scmp.ne.s32.totalorder %s97, %s98
    %p109 = scmp.eq.s32.totalorder %s14, 0
    %p110 = por %p108, %p109
    %p111 = scmp.ne.s32.totalorder %s97, %s98
    %p112 = scmp.eq.s32.totalorder %s15, 3
    %p113 = por %p111, %p112
    %p115 = scmp.ne.s32.totalorder %s98, %s114
    %p116 = scmp.eq.s32.totalorder %s15, 0
    %p117 = por %p115, %p116
    %s118 = ssub.s32 %s16, %s35
    %s119 = ssub.s32 %s17, %s31
    %s120 = sor.u32 %s118, %s119
    %p121 = scmp.eq.s32.totalorder %s120, 0
    %s123 = sadd.s32 %s122, 1
    %s124 = scalar_select %p121, %s122, %s123
    %p127 = pneg %p121
    %p128 = scmp.eq.s32.totalorder %s9, 3
    %p129 = por %p127, %p128
    %p130 = scmp.ne.s32.totalorder %s122, %s125
    %p131 = scmp.eq.s32.totalorder %s9, 0
    %p132 = por %p130, %p131
    %p133 = scmp.ne.s32.totalorder %s122, %s125
    %p134 = scmp.eq.s32.totalorder %s14, 3
    %p135 = por %p133, %p134
    %p136 = scmp.ne.s32.totalorder %s125, %s126
    %p137 = scmp.eq.s32.totalorder %s14, 0
    %p138 = por %p136, %p137
    %p139 = scmp.ne.s32.totalorder %s125, %s126
    %p140 = scmp.eq.s32.totalorder %s15, 3
    %p141 = por %p139, %p140
    %p143 = scmp.ne.s32.totalorder %s126, %s142
    %p144 = scmp.eq.s32.totalorder %s15, 0
    %p145 = por %p143, %p144
    %p146 = scmp.le.s32.totalorder 1, %s9
    %p147 = scmp.lt.s32.totalorder %s9, 5
    %p148 = pnand %p146, %p147
    %p149 = pneg %p148
    // Predicated region
    $region9: #{_forward_impl.5} parent=5 // pred_check
      _
    $region10: #{_forward_impl.5} parent=5 // pred_check_branch
      %151 = sbr.rel (%p148) target = $region12
    $region11: #{_forward_impl.5} parent=5 // pred_region
      %s152 = ssub.s32 %s9, 1
      // Predicated region
      $region13: #{_forward_impl.5} parent=11 // pred_check
        %p153 = pneg %p110
      $region14: #{_forward_impl.5} parent=11 // pred_check_branch
        %155 = sbr.rel (%p153) target = $region16
      $region15: #{_forward_impl.5} parent=11 // pred_region
        %p156 = scmp.lt.s32.totalorder %s20, 0
        %s157 = scalar_select %p156, %s20, 0
        %s158 = scalar_lea.vmem %s2, %s157
      $region16: #{_forward_impl.5} parent=11 // pred_fallthru
        _
    $region12: #{_forward_impl.5} parent=5 // pred_fallthru
      _
    %p159 = scmp.lt.s32.totalorder %s9, 4
    // Predicated region
    $region17: #{_forward_impl.5} parent=5 // pred_check
      %p160 = pneg %p159
    $region18: #{_forward_impl.5} parent=5 // pred_check_branch
      %162 = sbr.rel (%p160) target = $region20
    $region19: #{_forward_impl.5} parent=5 // pred_region
      // Predicated region
      $region21: #{_forward_impl.5} parent=19 // pred_check
        %p163 = pneg %p50
      $region22: #{_forward_impl.5} parent=19 // pred_check_branch
        %165 = sbr.rel (%p163) target = $region24
      $region23: #{_forward_impl.5} parent=19 // pred_region
        %s166 = smul.u32 4, %s18
        %p167 = scmp.lt.s32.totalorder %s16, 0
        %s168 = scalar_select %p167, %s16, 0
        %p169 = scmp.lt.s32.totalorder %s166, 15
        %s170 = scalar_select %p169, %s166, 15
        %s171 = smul.addr %s168, 16
        %s172 = sadd.s32 %s170, %s171
        %s173 = smul.addr %s172, 4
        %s174 = scalar_lea.vmem %s0, %s173
        %s175 = smul.u32 4, %s18
      $region24: #{_forward_impl.5} parent=19 // pred_fallthru
        _
      // Predicated region
      $region25: #{_forward_impl.5} parent=19 // pred_check
        %p176 = pneg %p78
      $region26: #{_forward_impl.5} parent=19 // pred_check_branch
        %178 = sbr.rel (%p176) target = $region28
      $region27: #{_forward_impl.5} parent=19 // pred_region
        %s179 = smul.u32 64, %s18
        %p180 = scmp.lt.s32.totalorder %s179, 255
        %s181 = scalar_select %p180, %s179, 255
        %p182 = scmp.lt.s32.totalorder %s17, 0
        %s183 = scalar_select %p182, %s17, 0
        %s184 = sadd.s32 %s183, %s181
        %s185 = smul.addr %s184, 4
        %s186 = scalar_lea.vmem %s1, %s185
        %s187 = smul.u32 64, %s18
      $region28: #{_forward_impl.5} parent=19 // pred_fallthru
        _
    $region20: #{_forward_impl.5} parent=5 // pred_fallthru
      _
    %p188 = scmp.le.s32.totalorder 1, %s9
    %p189 = scmp.lt.s32.totalorder %s9, 5
    %p190 = pnand %p188, %p189
    %p191 = pneg %p190
    // Predicated region
    $region29: #{_forward_impl.5} parent=5 // pred_check
      _
    $region30: #{_forward_impl.5} parent=5 // pred_check_branch
      %193 = sbr.rel (%p190) target = $region32
    $region31: #{_forward_impl.5} parent=5 // pred_region
      %s194 = ssub.s32 %s9, 1
      %s195 = smul.u32 4, %s21
      %p196 = scmp.lt.s32.totalorder %s19, 0
      %s197 = scalar_select %p196, %s19, 0
      %p198 = scmp.lt.s32.totalorder %s195, 15
      %s199 = scalar_select %p198, %s195, 15
      %s200 = smul.addr %s197, 16
      %s201 = sadd.s32 %s199, %s200
      %s202 = smul.addr %s201, 4
      %s203 = scalar_lea.vmem %s0, %s202
      %p204 = pneg %p56
      %p205 = pneg %p53
      %s206 = smul.u32 64, %s21
      %p207 = scmp.lt.s32.totalorder %s206, 255
      %s208 = scalar_select %p207, %s206, 255
      %p209 = scmp.lt.s32.totalorder %s20, 0
      %s210 = scalar_select %p209, %s20, 0
      %s211 = sadd.s32 %s210, %s208
      %s212 = smul.addr %s211, 4
      %s213 = scalar_lea.vmem %s1, %s212
      %p214 = pneg %p84
      %p215 = pneg %p81
      %p216 = scmp.lt.s32.totalorder %s20, 0
      %s217 = scalar_select %p216, %s20, 0
      %s218 = scalar_lea.vmem %s2, %s217
      %p219 = pneg %p110
      %p220 = pneg %p107
      %p221 = pneg %p138
      %p222 = pneg %p135
      %p223 = scmp.lt.s32.totalorder %s19, 0
      %s224 = scalar_select %p223, %s19, 0
      %p225 = scmp.lt.s32.totalorder %s20, 0
      %s226 = scalar_select %p225, %s20, 0
      %s227 = sadd.s32 %s226, %s224
      %s228 = smul.addr %s227, 8
      %s229 = scalar_lea.vmem %s3, %s228
      %s230 = smul.u32 4, %s21
      %p231 = scmp.lt.s32.totalorder %s19, 0
      %s232 = scalar_select %p231, %s19, 0
      %p233 = scmp.lt.s32.totalorder %s230, 15
      %s234 = scalar_select %p233, %s230, 15
      %s235 = smul.addr %s232, 16
      %s236 = sadd.s32 %s234, %s235
      %s237 = smul.addr %s236, 4
      %s238 = scalar_lea.vmem %s0, %s237
      %s239 = smul.u32 4, %s21
      %s240 = smul.u32 64, %s21
      %p241 = scmp.lt.s32.totalorder %s240, 255
      %s242 = scalar_select %p241, %s240, 255
      %p243 = scmp.lt.s32.totalorder %s20, 0
      %s244 = scalar_select %p243, %s20, 0
      %s245 = sadd.s32 %s244, %s242
      %s246 = smul.addr %s245, 4
      %s247 = scalar_lea.vmem %s1, %s246
      %s248 = smul.u32 64, %s21
      %p249 = scmp.lt.s32.totalorder %s20, 0
      %s250 = scalar_select %p249, %s20, 0
      %s251 = scalar_lea.vmem %s2, %s250
      %p252 = scmp.lt.s32.totalorder %s19, 0
      %s253 = scalar_select %p252, %s19, 0
      %p254 = scmp.lt.s32.totalorder %s20, 0
      %s255 = scalar_select %p254, %s20, 0
      %s256 = sadd.s32 %s255, %s253
      %s257 = smul.addr %s256, 8
      %s258 = scalar_lea.vmem %s3, %s257
      %p259 = scmp.eq.s32.totalorder %s21, 0
      // Predicated region
      $region33: #{_forward_impl.5} parent=31 // pred_check
        %p260 = pneg %p259
      $region34: #{_forward_impl.5} parent=31 // pred_check_branch
        %262 = sbr.rel (%p260) target = $region36
      $region35: #{_forward_impl.5} parent=31 // pred_region
        %v263 = vld [vmem:[%s251] sm:$0x1]
        %v265 = vperm.slane %v263, 0
        %267 = vst [vmem:[#allocation2] sm:$0xff] %v265
      $region36: #{_forward_impl.5} parent=31 // pred_fallthru
        _
      %v268 = vld [vmem:[#allocation2] sm:$0xff]
      %v269 = vld [vmem:[%s238] sm:$0xff]
      %v270 = vld [vmem:[%s238 + $0x8] sm:$0xff]
      %v271 = vld [vmem:[%s247] sm:$0xf]
      %v272 = vld [vmem:[%s247 + $0x4] sm:$0xf]
      %v273 = vld [vmem:[%s247 + $0x8] sm:$0xf]
      %v274 = vld [vmem:[%s247 + $0xc] sm:$0xf]
      %v275 = vld [vmem:[%s247 + $0x10] sm:$0xf]
      %v276 = vld [vmem:[%s247 + $0x14] sm:$0xf]
      %v277 = vld [vmem:[%s247 + $0x18] sm:$0xf]
      %v278 = vld [vmem:[%s247 + $0x1c] sm:$0xf]
      %v279 = vld [vmem:[%s247 + $0x20] sm:$0xf]
      %v280 = vld [vmem:[%s247 + $0x24] sm:$0xf]
      %v281 = vld [vmem:[%s247 + $0x28] sm:$0xf]
      %v282 = vld [vmem:[%s247 + $0x2c] sm:$0xf]
      %v283 = vld [vmem:[%s247 + $0x30] sm:$0xf]
      %v284 = vld [vmem:[%s247 + $0x34] sm:$0xf]
      %v285 = vld [vmem:[%s247 + $0x38] sm:$0xf]
      %v286 = vld [vmem:[%s247 + $0x3c] sm:$0xf]
      %v287 = vld [vmem:[%s247 + $0x40] sm:$0xf]
      %v288 = vld [vmem:[%s247 + $0x44] sm:$0xf]
      %v289 = vld [vmem:[%s247 + $0x48] sm:$0xf]
      %v290 = vld [vmem:[%s247 + $0x4c] sm:$0xf]
      %v291 = vld [vmem:[%s247 + $0x50] sm:$0xf]
      %v292 = vld [vmem:[%s247 + $0x54] sm:$0xf]
      %v293 = vld [vmem:[%s247 + $0x58] sm:$0xf]
      %v294 = vld [vmem:[%s247 + $0x5c] sm:$0xf]
      %v295 = vld [vmem:[%s247 + $0x60] sm:$0xf]
      %v296 = vld [vmem:[%s247 + $0x64] sm:$0xf]
      %v297 = vld [vmem:[%s247 + $0x68] sm:$0xf]
      %v298 = vld [vmem:[%s247 + $0x6c] sm:$0xf]
      %v299 = vld [vmem:[%s247 + $0x70] sm:$0xf]
      %v300 = vld [vmem:[%s247 + $0x74] sm:$0xf]
      %v301 = vld [vmem:[%s247 + $0x78] sm:$0xf]
      %v302 = vld [vmem:[%s247 + $0x7c] sm:$0xf]
      %v303 = vld [vmem:[%s247 + $0x80] sm:$0xf]
      %v304 = vld [vmem:[%s247 + $0x84] sm:$0xf]
      %v305 = vld [vmem:[%s247 + $0x88] sm:$0xf]
      %v306 = vld [vmem:[%s247 + $0x8c] sm:$0xf]
      %v307 = vld [vmem:[%s247 + $0x90] sm:$0xf]
      %v308 = vld [vmem:[%s247 + $0x94] sm:$0xf]
      %v309 = vld [vmem:[%s247 + $0x98] sm:$0xf]
      %v310 = vld [vmem:[%s247 + $0x9c] sm:$0xf]
      %v311 = vld [vmem:[%s247 + $0xa0] sm:$0xf]
      %v312 = vld [vmem:[%s247 + $0xa4] sm:$0xf]
      %v313 = vld [vmem:[%s247 + $0xa8] sm:$0xf]
      %v314 = vld [vmem:[%s247 + $0xac] sm:$0xf]
      %v315 = vld [vmem:[%s247 + $0xb0] sm:$0xf]
      %v316 = vld [vmem:[%s247 + $0xb4] sm:$0xf]
      %v317 = vld [vmem:[%s247 + $0xb8] sm:$0xf]
      %v318 = vld [vmem:[%s247 + $0xbc] sm:$0xf]
      %v319 = vld [vmem:[%s247 + $0xc0] sm:$0xf]
      %v320 = vld [vmem:[%s247 + $0xc4] sm:$0xf]
      %v321 = vld [vmem:[%s247 + $0xc8] sm:$0xf]
      %v322 = vld [vmem:[%s247 + $0xcc] sm:$0xf]
      %v323 = vld [vmem:[%s247 + $0xd0] sm:$0xf]
      %v324 = vld [vmem:[%s247 + $0xd4] sm:$0xf]
      %v325 = vld [vmem:[%s247 + $0xd8] sm:$0xf]
      %v326 = vld [vmem:[%s247 + $0xdc] sm:$0xf]
      %v327 = vld [vmem:[%s247 + $0xe0] sm:$0xf]
      %v328 = vld [vmem:[%s247 + $0xe4] sm:$0xf]
      %v329 = vld [vmem:[%s247 + $0xe8] sm:$0xf]
      %v330 = vld [vmem:[%s247 + $0xec] sm:$0xf]
      %v331 = vld [vmem:[%s247 + $0xf0] sm:$0xf]
      %v332 = vld [vmem:[%s247 + $0xf4] sm:$0xf]
      %v333 = vld [vmem:[%s247 + $0xf8] sm:$0xf]
      %v334 = vld [vmem:[%s247 + $0xfc] sm:$0xf]
      %v337 = vunpack.c.l.b16 %v269
      %v338 = vunpack.c.h.b16 %v269
      %v339 = vunpack.c.l.b16 %v270
      %v340 = vunpack.c.h.b16 %v270
      %v341 = vpack.c.b16 %v337, %v337
      %v342 = vpack.c.b16 %v338, %v338
      %v343 = vpack.c.b16 %v339, %v339
      %v344 = vpack.c.b16 %v340, %v340
      %v413 = vunpack.c.l.b16 %v271
      %v414 = vunpack.c.l.b16 %v272
      %v415 = vunpack.c.l.b16 %v273
      %v416 = vunpack.c.l.b16 %v274
      %v417 = vunpack.c.l.b16 %v275
      %v418 = vunpack.c.l.b16 %v276
      %v419 = vunpack.c.l.b16 %v277
      %v420 = vunpack.c.l.b16 %v278
      %v421 = vunpack.c.l.b16 %v279
      %v422 = vunpack.c.l.b16 %v280
      %v423 = vunpack.c.l.b16 %v281
      %v424 = vunpack.c.l.b16 %v282
      %v425 = vunpack.c.l.b16 %v283
      %v426 = vunpack.c.l.b16 %v284
      %v427 = vunpack.c.l.b16 %v285
      %v428 = vunpack.c.l.b16 %v286
      %v429 = vunpack.c.l.b16 %v287
      %v430 = vunpack.c.l.b16 %v288
      %v431 = vunpack.c.l.b16 %v289
      %v432 = vunpack.c.l.b16 %v290
      %v433 = vunpack.c.l.b16 %v291
      %v434 = vunpack.c.l.b16 %v292
      %v435 = vunpack.c.l.b16 %v293
      %v436 = vunpack.c.l.b16 %v294
      %v437 = vunpack.c.l.b16 %v295
      %v438 = vunpack.c.l.b16 %v296
      %v439 = vunpack.c.l.b16 %v297
      %v440 = vunpack.c.l.b16 %v298
      %v441 = vunpack.c.l.b16 %v299
      %v442 = vunpack.c.l.b16 %v300
      %v443 = vunpack.c.l.b16 %v301
      %v444 = vunpack.c.l.b16 %v302
      %v445 = vunpack.c.l.b16 %v303
      %v446 = vunpack.c.l.b16 %v304
      %v447 = vunpack.c.l.b16 %v305
      %v448 = vunpack.c.l.b16 %v306
      %v449 = vunpack.c.l.b16 %v307
      %v450 = vunpack.c.l.b16 %v308
      %v451 = vunpack.c.l.b16 %v309
      %v452 = vunpack.c.l.b16 %v310
      %v453 = vunpack.c.l.b16 %v311
      %v454 = vunpack.c.l.b16 %v312
      %v455 = vunpack.c.l.b16 %v313
      %v456 = vunpack.c.l.b16 %v314
      %v457 = vunpack.c.l.b16 %v315
      %v458 = vunpack.c.l.b16 %v316
      %v459 = vunpack.c.l.b16 %v317
      %v460 = vunpack.c.l.b16 %v318
      %v461 = vunpack.c.l.b16 %v319
      %v462 = vunpack.c.l.b16 %v320
      %v463 = vunpack.c.l.b16 %v321
      %v464 = vunpack.c.l.b16 %v322
      %v465 = vunpack.c.l.b16 %v323
      %v466 = vunpack.c.l.b16 %v324
      %v467 = vunpack.c.l.b16 %v325
      %v468 = vunpack.c.l.b16 %v326
      %v469 = vunpack.c.l.b16 %v327
      %v470 = vunpack.c.l.b16 %v328
      %v471 = vunpack.c.l.b16 %v329
      %v472 = vunpack.c.l.b16 %v330
      %v473 = vunpack.c.l.b16 %v331
      %v474 = vunpack.c.l.b16 %v332
      %v475 = vunpack.c.l.b16 %v333
      %v476 = vunpack.c.l.b16 %v334
      %v477 = vpack.c.b16 %v414, %v413
      %v478 = vpack.c.b16 %v416, %v415
      %v479 = vpack.c.b16 %v418, %v417
      %v480 = vpack.c.b16 %v420, %v419
      %v481 = vpack.c.b16 %v422, %v421
      %v482 = vpack.c.b16 %v424, %v423
      %v483 = vpack.c.b16 %v426, %v425
      %v484 = vpack.c.b16 %v428, %v427
      %v485 = vpack.c.b16 %v430, %v429
      %v486 = vpack.c.b16 %v432, %v431
      %v487 = vpack.c.b16 %v434, %v433
      %v488 = vpack.c.b16 %v436, %v435
      %v489 = vpack.c.b16 %v438, %v437
      %v490 = vpack.c.b16 %v440, %v439
      %v491 = vpack.c.b16 %v442, %v441
      %v492 = vpack.c.b16 %v444, %v443
      %v493 = vpack.c.b16 %v446, %v445
      %v494 = vpack.c.b16 %v448, %v447
      %v495 = vpack.c.b16 %v450, %v449
      %v496 = vpack.c.b16 %v452, %v451
      %v497 = vpack.c.b16 %v454, %v453
      %v498 = vpack.c.b16 %v456, %v455
      %v499 = vpack.c.b16 %v458, %v457
      %v500 = vpack.c.b16 %v460, %v459
      %v501 = vpack.c.b16 %v462, %v461
      %v502 = vpack.c.b16 %v464, %v463
      %v503 = vpack.c.b16 %v466, %v465
      %v504 = vpack.c.b16 %v468, %v467
      %v505 = vpack.c.b16 %v470, %v469
      %v506 = vpack.c.b16 %v472, %v471
      %v507 = vpack.c.b16 %v474, %v473
      %v508 = vpack.c.b16 %v476, %v475
      %541 = vmatpush.bf16.msra.mxu0 %v484
      %542 = vmatpush.bf16.msra.mxu0 %v483
      %543 = vmatpush.bf16.msra.mxu0 %v482
      %544 = vmatpush.bf16.msra.mxu0 %v481
      %545 = vmatpush.bf16.msra.mxu0 %v480
      %546 = vmatpush.bf16.msra.mxu0 %v479
      %547 = vmatpush.bf16.msra.mxu0 %v478
      %548 = vmatpush.bf16.msra.mxu0 %v477
      %549 = vmatmul.bf16.gmra.mxu0 %v341
      %v550 = vpop.f32.mrf.mxu0
      %v551 = vadd.f32 0.0, %v550
      %v552 = vpop.f32.mrf.mxu0
      %553 = vdwg.mxu0
      %554 = vmatpush.bf16.msra.mxu0 %v492
      %555 = vmatpush.bf16.msra.mxu0 %v491
      %556 = vmatpush.bf16.msra.mxu0 %v490
      %557 = vmatpush.bf16.msra.mxu0 %v489
      %558 = vmatpush.bf16.msra.mxu0 %v488
      %559 = vmatpush.bf16.msra.mxu0 %v487
      %560 = vmatpush.bf16.msra.mxu0 %v486
      %561 = vmatpush.bf16.msra.mxu0 %v485
      %562 = vmatmul.bf16.gmra.mxu0 %v342
      %v563 = vpop.f32.mrf.mxu0
      %v564 = vadd.f32 %v551, %v563
      %v565 = vpop.f32.mrf.mxu0
      %566 = vdwg.mxu0
      %567 = vmatpush.bf16.msra.mxu0 %v500
      %568 = vmatpush.bf16.msra.mxu0 %v499
      %569 = vmatpush.bf16.msra.mxu0 %v498
      %570 = vmatpush.bf16.msra.mxu0 %v497
      %571 = vmatpush.bf16.msra.mxu0 %v496
      %572 = vmatpush.bf16.msra.mxu0 %v495
      %573 = vmatpush.bf16.msra.mxu0 %v494
      %574 = vmatpush.bf16.msra.mxu0 %v493
      %575 = vmatmul.bf16.gmra.mxu0 %v343
      %v576 = vpop.f32.mrf.mxu0
      %v577 = vadd.f32 %v564, %v576
      %v578 = vpop.f32.mrf.mxu0
      %579 = vdwg.mxu0
      %580 = vmatpush.bf16.msra.mxu0 %v508
      %581 = vmatpush.bf16.msra.mxu0 %v507
      %582 = vmatpush.bf16.msra.mxu0 %v506
      %583 = vmatpush.bf16.msra.mxu0 %v505
      %584 = vmatpush.bf16.msra.mxu0 %v504
      %585 = vmatpush.bf16.msra.mxu0 %v503
      %586 = vmatpush.bf16.msra.mxu0 %v502
      %587 = vmatpush.bf16.msra.mxu0 %v501
      %588 = vmatmul.bf16.gmra.mxu0 %v344
      %v589 = vpop.f32.mrf.mxu0
      %v590 = vadd.f32 %v577, %v589
      %v591 = vpop.f32.mrf.mxu0
      %592 = vdwg.mxu0
      %v593 = vadd.f32 %v268, %v590
      %594 = vst [vmem:[#allocation2] sm:$0xff] %v593
      %p595 = scmp.eq.s32.totalorder %s21, 3
      // Predicated region
      $region37: #{_forward_impl.5} parent=31 // pred_check
        %p596 = pneg %p595
      $region38: #{_forward_impl.5} parent=31 // pred_check_branch
        %598 = sbr.rel (%p596) target = $region40
      $region39: #{_forward_impl.5} parent=31 // pred_region
        %v599 = vld [vmem:[#allocation2] sm:$0xff]
        %600 = vst [vmem:[%s258] sm:$0xff] %v599
      $region40: #{_forward_impl.5} parent=31 // pred_fallthru
        _
      %p601 = scmp.lt.s32.totalorder %s19, 0
      %s602 = scalar_select %p601, %s19, 0
      %p603 = scmp.lt.s32.totalorder %s20, 0
      %s604 = scalar_select %p603, %s20, 0
      %s605 = sadd.s32 %s604, %s602
      %s606 = smul.addr %s605, 8
      %s607 = scalar_lea.vmem %s3, %s606
      // Predicated region
      $region41: #{_forward_impl.5} parent=31 // pred_check
        %p608 = pneg %p135
      $region42: #{_forward_impl.5} parent=31 // pred_check_branch
        %610 = sbr.rel (%p608) target = $region44
      $region43: #{_forward_impl.5} parent=31 // pred_region
        _
      $region44: #{_forward_impl.5} parent=31 // pred_fallthru
        _
      // Predicated region
      $region45: #{_forward_impl.5} parent=31 // pred_check
        %p611 = pneg %p135
      $region46: #{_forward_impl.5} parent=31 // pred_check_branch
        %613 = sbr.rel (%p611) target = $region48
      $region47: #{_forward_impl.5} parent=31 // pred_region
        %p614 = scmp.lt.s32.totalorder %s19, 0
        %s615 = scalar_select %p614, %s19, 0
        %p616 = scmp.lt.s32.totalorder %s20, 0
        %s617 = scalar_select %p616, %s20, 0
        %s618 = sadd.s32 %s617, %s615
        %s619 = smul.addr %s618, 8
        %s620 = scalar_lea.vmem %s3, %s619
      $region48: #{_forward_impl.5} parent=31 // pred_fallthru
        _
    $region32: #{_forward_impl.5} parent=5 // pred_fallthru
      _
    %p621 = scmp.le.s32.totalorder 2, %s9
    // Predicated region
    $region49: #{_forward_impl.5} parent=5 // pred_check
      %p622 = pneg %p621
    $region50: #{_forward_impl.5} parent=5 // pred_check_branch
      %624 = sbr.rel (%p622) target = $region52
    $region51: #{_forward_impl.5} parent=5 // pred_region
      %s625 = ssub.s32 %s9, 2
    $region52: #{_forward_impl.5} parent=5 // pred_fallthru
      _
  $region6: #{_forward_impl.5} parent=0 // loop_footer
    %s13 = sadd.s32 1, %s9
  $region7: #{_forward_impl.5} parent=0 // loop_footer_branch
    %8 = sbr.rel target = $region3
  $region8: #{_forward_impl.5} parent=0 // loop_exit
    _

// kernel: _forward_impl.3
$region0: #{_forward_impl.3}
  #allocation0 [shape = 'u32[]', space=smem, size = 0x4, offset = 0x4, fixed_abs, tag = 'smem constant byte address 0x4 - core index']
  #allocation1 [shape = 'u32[72,128]{1,0:T(1,128)}', space=vmem, size = 0x9000, scoped, tag = 'internal scratch']
  #allocation2 [shape = 'f32[256,128]{1,0:T(8,128)}', space=vmem, size = 0x20000, scoped, tag = 'scratch operand']
  %s0 = inlined_call_operand.vmem [shape: bf16[2,18,18,128], index: 0, kind: input, shape index: {}]
  %s1 = inlined_call_operand.vmem [shape: bf16[3,3,128,128], index: 1, kind: input, shape index: {}]
  %s2 = inlined_call_operand.vmem [shape: f32[1,128], index: 2, kind: input, shape index: {}]
  %s3 = inlined_call_operand.vmem [shape: bf16[2,16,16,128], index: 3, kind: output, shape index: {}]
  %s4 = sld [smem:[#allocation0]]
  $region45: #{_forward_impl.3} parent=0
    _
  %s6 = ssub.s32 1, %s4
  %s7 = scalar_select 0, %s6, %s4
  loop: start=0, step=1, limit=4
  $region2: #{_forward_impl.3} parent=0 // loop_pre_header
    _
  $region3: #{_forward_impl.3} parent=0 // loop_header
    %s9 = sphi 0, %s13
    %p10 = scmp.ge.s32.totalorder %s9, 4
    %s19 = sphi 0, %s21
    %s22 = sphi 0, %s19
    %s23 = sphi 0, %s22
    %s39 = sphi 0, %s23
    %s43 = sphi 0, %s43
    %s45 = sphi 0, %s43
    %s46 = sphi 0, %s45
    %s60 = sphi 0, %s46
    %s64 = sphi 0, %s64
    %s66 = sphi 0, %s64
    %s67 = sphi 0, %s66
    %s81 = sphi 0, %s67
    %s87 = sphi 0, %s89
    %s90 = sphi 0, %s87
    %s91 = sphi 0, %s90
    %s107 = sphi 0, %s91
  $region4: #{_forward_impl.3} parent=0 // loop_header_branch
    %12 = sbr.rel (%p10) target = $region8
  $region5: #{_forward_impl.3} parent=0 // loop_body
    %s14 = ssub.s32 %s9, 1
    %s15 = ssub.s32 %s9, 2
    %s16 = sadd.s32 %s9, 1
    %s17 = ssub.s32 %s9, %s16
    %p18 = scmp.eq.s32.totalorder %s17, 0
    %s20 = sadd.s32 %s19, 1
    %s21 = scalar_select %p18, %s19, %s20
    %p24 = pneg %p18
    %p25 = scmp.eq.s32.totalorder %s9, 1
    %p26 = por %p24, %p25
    %p27 = scmp.ne.s32.totalorder %s19, %s22
    %p28 = scmp.eq.s32.totalorder %s9, 0
    %p29 = por %p27, %p28
    %p30 = scmp.ne.s32.totalorder %s19, %s22
    %p31 = scmp.eq.s32.totalorder %s14, 1
    %p32 = por %p30, %p31
    %p33 = scmp.ne.s32.totalorder %s22, %s23
    %p34 = scmp.eq.s32.totalorder %s14, 0
    %p35 = por %p33, %p34
    %p36 = scmp.ne.s32.totalorder %s22, %s23
    %p37 = scmp.eq.s32.totalorder %s15, 1
    %p38 = por %p36, %p37
    %p40 = scmp.ne.s32.totalorder %s23, %s39
    %p41 = scmp.eq.s32.totalorder %s15, 0
    %p42 = por %p40, %p41
    %s44 = sadd.s32 %s43, 1
    %p47 = scmp.eq.s32.totalorder %s9, 1
    %p48 = scmp.ne.s32.totalorder %s43, %s45
    %p49 = scmp.eq.s32.totalorder %s9, 0
    %p50 = por %p48, %p49
    %p51 = scmp.ne.s32.totalorder %s43, %s45
    %p52 = scmp.eq.s32.totalorder %s14, 1
    %p53 = por %p51, %p52
    %p54 = scmp.ne.s32.totalorder %s45, %s46
    %p55 = scmp.eq.s32.totalorder %s14, 0
    %p56 = por %p54, %p55
    %p57 = scmp.ne.s32.totalorder %s45, %s46
    %p58 = scmp.eq.s32.totalorder %s15, 1
    %p59 = por %p57, %p58
    %p61 = scmp.ne.s32.totalorder %s46, %s60
    %p62 = scmp.eq.s32.totalorder %s15, 0
    %p63 = por %p61, %p62
    %s65 = sadd.s32 %s64, 1
    %p68 = scmp.eq.s32.totalorder %s9, 1
    %p69 = scmp.ne.s32.totalorder %s64, %s66
    %p70 = scmp.eq.s32.totalorder %s9, 0
    %p71 = por %p69, %p70
    %p72 = scmp.ne.s32.totalorder %s64, %s66
    %p73 = scmp.eq.s32.totalorder %s14, 1
    %p74 = por %p72, %p73
    %p75 = scmp.ne.s32.totalorder %s66, %s67
    %p76 = scmp.eq.s32.totalorder %s14, 0
    %p77 = por %p75, %p76
    %p78 = scmp.ne.s32.totalorder %s66, %s67
    %p79 = scmp.eq.s32.totalorder %s15, 1
    %p80 = por %p78, %p79
    %p82 = scmp.ne.s32.totalorder %s67, %s81
    %p83 = scmp.eq.s32.totalorder %s15, 0
    %p84 = por %p82, %p83
    %s85 = ssub.s32 %s9, %s16
    %p86 = scmp.eq.s32.totalorder %s85, 0
    %s88 = sadd.s32 %s87, 1
    %s89 = scalar_select %p86, %s87, %s88
    %p92 = pneg %p86
    %p93 = scmp.eq.s32.totalorder %s9, 1
    %p94 = por %p92, %p93
    %p95 = scmp.ne.s32.totalorder %s87, %s90
    %p96 = scmp.eq.s32.totalorder %s9, 0
    %p97 = por %p95, %p96
    %p98 = scmp.ne.s32.totalorder %s87, %s90
    %p99 = scmp.eq.s32.totalorder %s14, 1
    %p100 = por %p98, %p99
    %p101 = scmp.ne.s32.totalorder %s90, %s91
    %p102 = scmp.eq.s32.totalorder %s14, 0
    %p103 = por %p101, %p102
    %p104 = scmp.ne.s32.totalorder %s90, %s91
    %p105 = scmp.eq.s32.totalorder %s15, 1
    %p106 = por %p104, %p105
    %p108 = scmp.ne.s32.totalorder %s91, %s107
    %p109 = scmp.eq.s32.totalorder %s15, 0
    %p110 = por %p108, %p109
    %p111 = scmp.le.s32.totalorder 1, %s9
    %p112 = scmp.lt.s32.totalorder %s9, 3
    %p113 = pnand %p111, %p112
    %p114 = pneg %p113
    // Predicated region
    $region9: #{_forward_impl.3} parent=5 // pred_check
      _
    $region10: #{_forward_impl.3} parent=5 // pred_check_branch
      %116 = sbr.rel (%p113) target = $region12
    $region11: #{_forward_impl.3} parent=5 // pred_region
      %s117 = ssub.s32 %s9, 1
      // Predicated region
      $region13: #{_forward_impl.3} parent=11 // pred_check
        %p118 = pneg %p56
      $region14: #{_forward_impl.3} parent=11 // pred_check_branch
        %120 = sbr.rel (%p118) target = $region16
      $region15: #{_forward_impl.3} parent=11 // pred_region
        _
      $region16: #{_forward_impl.3} parent=11 // pred_fallthru
        _
      // Predicated region
      $region17: #{_forward_impl.3} parent=11 // pred_check
        %p121 = pneg %p77
      $region18: #{_forward_impl.3} parent=11 // pred_check_branch
        %123 = sbr.rel (%p121) target = $region20
      $region19: #{_forward_impl.3} parent=11 // pred_region
        _
      $region20: #{_forward_impl.3} parent=11 // pred_fallthru
        _
    $region12: #{_forward_impl.3} parent=5 // pred_fallthru
      _
    %p124 = scmp.lt.s32.totalorder %s9, 2
    // Predicated region
    $region21: #{_forward_impl.3} parent=5 // pred_check
      %p125 = pneg %p124
    $region22: #{_forward_impl.3} parent=5 // pred_check_branch
      %127 = sbr.rel (%p125) target = $region24
    $region23: #{_forward_impl.3} parent=5 // pred_region
      // Predicated region
      $region25: #{_forward_impl.3} parent=23 // pred_check
        %p128 = pneg %p29
      $region26: #{_forward_impl.3} parent=23 // pred_check_branch
        %130 = sbr.rel (%p128) target = $region28
      $region27: #{_forward_impl.3} parent=23 // pred_region
        %p131 = scmp.lt.s32.totalorder %s9, 1
        %s132 = scalar_select %p131, %s9, 1
        %s133 = smul.addr %s132, 54
        %s134 = smul.addr %s133, 4
        %s135 = scalar_lea.vmem %s0, %s134
      $region28: #{_forward_impl.3} parent=23 // pred_fallthru
        _
    $region24: #{_forward_impl.3} parent=5 // pred_fallthru
      _
    %p136 = scmp.le.s32.totalorder 1, %s9
    %p137 = scmp.lt.s32.totalorder %s9, 3
    %p138 = pnand %p136, %p137
    %p139 = pneg %p138
    // Predicated region
    $region29: #{_forward_impl.3} parent=5 // pred_check
      _
    $region30: #{_forward_impl.3} parent=5 // pred_check_branch
      %141 = sbr.rel (%p138) target = $region32
    $region31: #{_forward_impl.3} parent=5 // pred_region
      %s142 = ssub.s32 %s9, 1
      %p143 = scmp.lt.s32.totalorder %s14, 1
      %s144 = scalar_select %p143, %s14, 1
      %s145 = smul.addr %s144, 54
      %s146 = smul.addr %s145, 4
      %s147 = scalar_lea.vmem %s0, %s146
      %p148 = pneg %p35
      %p149 = pneg %p32
      %p150 = pneg %p56
      %p151 = pneg %p53
      %p152 = pneg %p77
      %p153 = pneg %p74
      %p154 = pneg %p103
      %p155 = pneg %p100
      %p156 = scmp.lt.s32.totalorder %s14, 1
      %s157 = scalar_select %p156, %s14, 1
      %s158 = smul.addr %s157, 32
      %s159 = smul.addr %s158, 4
      %s160 = scalar_lea.vmem %s3, %s159
      %p161 = scmp.lt.s32.totalorder %s14, 1
      %s162 = scalar_select %p161, %s14, 1
      %s163 = smul.addr %s162, 54
      %s164 = smul.addr %s163, 4
      %s165 = scalar_lea.vmem %s0, %s164
      %p166 = scmp.lt.s32.totalorder %s14, 1
      %s167 = scalar_select %p166, %s14, 1
      %s168 = smul.addr %s167, 32
      %s169 = smul.addr %s168, 4
      %s170 = scalar_lea.vmem %s3, %s169
      %v171 = vld [vmem:[%s2] sm:$0x1]
      %v173 = vperm.slane %v171, 0
      %175 = vst [vmem:[#allocation2] sm:$0xff] %v173
      %176 = vst [vmem:[#allocation2 + $0x8] sm:$0xff] %v173
      %177 = vst [vmem:[#allocation2 + $0x10] sm:$0xff] %v173
      %178 = vst [vmem:[#allocation2 + $0x18] sm:$0xff] %v173
      %179 = vst [vmem:[#allocation2 + $0x20] sm:$0xff] %v173
      %180 = vst [vmem:[#allocation2 + $0x28] sm:$0xff] %v173
      %181 = vst [vmem:[#allocation2 + $0x30] sm:$0xff] %v173
      %182 = vst [vmem:[#allocation2 + $0x38] sm:$0xff] %v173
      %183 = vst [vmem:[#allocation2 + $0x40] sm:$0xff] %v173
      %184 = vst [vmem:[#allocation2 + $0x48] sm:$0xff] %v173
      %185 = vst [vmem:[#allocation2 + $0x50] sm:$0xff] %v173
      %186 = vst [vmem:[#allocation2 + $0x58] sm:$0xff] %v173
      %187 = vst [vmem:[#allocation2 + $0x60] sm:$0xff] %v173
      %188 = vst [vmem:[#allocation2 + $0x68] sm:$0xff] %v173
      %189 = vst [vmem:[#allocation2 + $0x70] sm:$0xff] %v173
      %190 = vst [vmem:[#allocation2 + $0x78] sm:$0xff] %v173
      %191 = vst [vmem:[#allocation2 + $0x80] sm:$0xff] %v173
      %192 = vst [vmem:[#allocation2 + $0x88] sm:$0xff] %v173
      %193 = vst [vmem:[#allocation2 + $0x90] sm:$0xff] %v173
      %194 = vst [vmem:[#allocation2 + $0x98] sm:$0xff] %v173
      %195 = vst [vmem:[#allocation2 + $0xa0] sm:$0xff] %v173
      %196 = vst [vmem:[#allocation2 + $0xa8] sm:$0xff] %v173
      %197 = vst [vmem:[#allocation2 + $0xb0] sm:$0xff] %v173
      %198 = vst [vmem:[#allocation2 + $0xb8] sm:$0xff] %v173
      %199 = vst [vmem:[#allocation2 + $0xc0] sm:$0xff] %v173
      %200 = vst [vmem:[#allocation2 + $0xc8] sm:$0xff] %v173
      %201 = vst [vmem:[#allocation2 + $0xd0] sm:$0xff] %v173
      %202 = vst [vmem:[#allocation2 + $0xd8] sm:$0xff] %v173
      %203 = vst [vmem:[#allocation2 + $0xe0] sm:$0xff] %v173
      %204 = vst [vmem:[#allocation2 + $0xe8] sm:$0xff] %v173
      %205 = vst [vmem:[#allocation2 + $0xf0] sm:$0xff] %v173
      %206 = vst [vmem:[#allocation2 + $0xf8] sm:$0xff] %v173
      %v207 = vld [vmem:[%s165] sm:$0xf]
      %v208 = vld [vmem:[%s165 + $0x4] sm:$0xf]
      %v209 = vld [vmem:[%s165 + $0x8] sm:$0x1]
      %v210 = vld [vmem:[%s165 + $0xc] sm:$0xf]
      %v211 = vld [vmem:[%s165 + $0x10] sm:$0xf]
      %v212 = vld [vmem:[%s165 + $0x14] sm:$0x1]
      %v213 = vld [vmem:[%s165 + $0x18] sm:$0xf]
      %v214 = vld [vmem:[%s165 + $0x1c] sm:$0xf]
      %v215 = vld [vmem:[%s165 + $0x20] sm:$0x1]
      %v216 = vld [vmem:[%s165 + $0x24] sm:$0xf]
      %v217 = vld [vmem:[%s165 + $0x28] sm:$0xf]
      %v218 = vld [vmem:[%s165 + $0x2c] sm:$0x1]
      %v219 = vld [vmem:[%s165 + $0x30] sm:$0xf]
      %v220 = vld [vmem:[%s165 + $0x34] sm:$0xf]
      %v221 = vld [vmem:[%s165 + $0x38] sm:$0x1]
      %v222 = vld [vmem:[%s165 + $0x3c] sm:$0xf]
      %v223 = vld [vmem:[%s165 + $0x40] sm:$0xf]
      %v224 = vld [vmem:[%s165 + $0x44] sm:$0x1]
      %v225 = vld [vmem:[%s165 + $0x48] sm:$0xf]
      %v226 = vld [vmem:[%s165 + $0x4c] sm:$0xf]
      %v227 = vld [vmem:[%s165 + $0x50] sm:$0x1]
      %v228 = vld [vmem:[%s165 + $0x54] sm:$0xf]
      %v229 = vld [vmem:[%s165 + $0x58] sm:$0xf]
      %v230 = vld [vmem:[%s165 + $0x5c] sm:$0x1]
      %v231 = vld [vmem:[%s165 + $0x60] sm:$0xf]
      %v232 = vld [vmem:[%s165 + $0x64] sm:$0xf]
      %v233 = vld [vmem:[%s165 + $0x68] sm:$0x1]
      %v234 = vld [vmem:[%s165 + $0x6c] sm:$0xf]
      %v235 = vld [vmem:[%s165 + $0x70] sm:$0xf]
      %v236 = vld [vmem:[%s165 + $0x74] sm:$0x1]
      %v237 = vld [vmem:[%s165 + $0x78] sm:$0xf]
      %v238 = vld [vmem:[%s165 + $0x7c] sm:$0xf]
      %v239 = vld [vmem:[%s165 + $0x80] sm:$0x1]
      %v240 = vld [vmem:[%s165 + $0x84] sm:$0xf]
      %v241 = vld [vmem:[%s165 + $0x88] sm:$0xf]
      %v242 = vld [vmem:[%s165 + $0x8c] sm:$0x1]
      %v243 = vld [vmem:[%s165 + $0x90] sm:$0xf]
      %v244 = vld [vmem:[%s165 + $0x94] sm:$0xf]
      %v245 = vld [vmem:[%s165 + $0x98] sm:$0x1]
      %v246 = vld [vmem:[%s165 + $0x9c] sm:$0xf]
      %v247 = vld [vmem:[%s165 + $0xa0] sm:$0xf]
      %v248 = vld [vmem:[%s165 + $0xa4] sm:$0x1]
      %v249 = vld [vmem:[%s165 + $0xa8] sm:$0xf]
      %v250 = vld [vmem:[%s165 + $0xac] sm:$0xf]
      %v251 = vld [vmem:[%s165 + $0xb0] sm:$0x1]
      %v252 = vld [vmem:[%s165 + $0xb4] sm:$0xf]
      %v253 = vld [vmem:[%s165 + $0xb8] sm:$0xf]
      %v254 = vld [vmem:[%s165 + $0xbc] sm:$0x1]
      %v255 = vld [vmem:[%s165 + $0xc0] sm:$0xf]
      %v256 = vld [vmem:[%s165 + $0xc4] sm:$0xf]
      %v257 = vld [vmem:[%s165 + $0xc8] sm:$0x1]
      %v258 = vld [vmem:[%s165 + $0xcc] sm:$0xf]
      %v259 = vld [vmem:[%s165 + $0xd0] sm:$0xf]
      %v260 = vld [vmem:[%s165 + $0xd4] sm:$0x1]
      %v261 = vld [vmem:[#allocation2] sm:$0xff]
      %v262 = vld [vmem:[#allocation2 + $0x8] sm:$0xff]
      %v263 = vld [vmem:[#allocation2 + $0x10] sm:$0xff]
      %v264 = vld [vmem:[#allocation2 + $0x18] sm:$0xff]
      %v265 = vld [vmem:[#allocation2 + $0x20] sm:$0xff]
      %v266 = vld [vmem:[#allocation2 + $0x28] sm:$0xff]
      %v267 = vld [vmem:[#allocation2 + $0x30] sm:$0xff]
      %v268 = vld [vmem:[#allocation2 + $0x38] sm:$0xff]
      %v269 = vld [vmem:[#allocation2 + $0x40] sm:$0xff]
      %v270 = vld [vmem:[#allocation2 + $0x48] sm:$0xff]
      %v271 = vld [vmem:[#allocation2 + $0x50] sm:$0xff]
      %v272 = vld [vmem:[#allocation2 + $0x58] sm:$0xff]
      %v273 = vld [vmem:[#allocation2 + $0x60] sm:$0xff]
      %v274 = vld [vmem:[#allocation2 + $0x68] sm:$0xff]
      %v275 = vld [vmem:[#allocation2 + $0x70] sm:$0xff]
      %v276 = vld [vmem:[#allocation2 + $0x78] sm:$0xff]
      %v277 = vld [vmem:[#allocation2 + $0x80] sm:$0xff]
      %v278 = vld [vmem:[#allocation2 + $0x88] sm:$0xff]
      %v279 = vld [vmem:[#allocation2 + $0x90] sm:$0xff]
      %v280 = vld [vmem:[#allocation2 + $0x98] sm:$0xff]
      %v281 = vld [vmem:[#allocation2 + $0xa0] sm:$0xff]
      %v282 = vld [vmem:[#allocation2 + $0xa8] sm:$0xff]
      %v283 = vld [vmem:[#allocation2 + $0xb0] sm:$0xff]
      %v284 = vld [vmem:[#allocation2 + $0xb8] sm:$0xff]
      %v285 = vld [vmem:[#allocation2 + $0xc0] sm:$0xff]
      %v286 = vld [vmem:[#allocation2 + $0xc8] sm:$0xff]
      %v287 = vld [vmem:[#allocation2 + $0xd0] sm:$0xff]
      %v288 = vld [vmem:[#allocation2 + $0xd8] sm:$0xff]
      %v289 = vld [vmem:[#allocation2 + $0xe0] sm:$0xff]
      %v290 = vld [vmem:[#allocation2 + $0xe8] sm:$0xff]
      %v291 = vld [vmem:[#allocation2 + $0xf0] sm:$0xff]
      %v292 = vld [vmem:[#allocation2 + $0xf8] sm:$0xff]
      %v293 = vld [vmem:[%s1] sm:$0xf]
      %v294 = vld [vmem:[%s1 + $0x4] sm:$0xf]
      %v295 = vld [vmem:[%s1 + $0x8] sm:$0xf]
      %v296 = vld [vmem:[%s1 + $0xc] sm:$0xf]
      %v297 = vld [vmem:[%s1 + $0x10] sm:$0xf]
      %v298 = vld [vmem:[%s1 + $0x14] sm:$0xf]
      %v299 = vld [vmem:[%s1 + $0x18] sm:$0xf]
      %v300 = vld [vmem:[%s1 + $0x1c] sm:$0xf]
      %v301 = vld [vmem:[%s1 + $0x20] sm:$0xf]
      %v302 = vld [vmem:[%s1 + $0x24] sm:$0xf]
      %v303 = vld [vmem:[%s1 + $0x28] sm:$0xf]
      %v304 = vld [vmem:[%s1 + $0x2c] sm:$0xf]
      %v305 = vld [vmem:[%s1 + $0x30] sm:$0xf]
      %v306 = vld [vmem:[%s1 + $0x34] sm:$0xf]
      %v307 = vld [vmem:[%s1 + $0x38] sm:$0xf]
      %v308 = vld [vmem:[%s1 + $0x3c] sm:$0xf]
      %v341 = vunpack.c.l.b16 %v207
      %v342 = vunpack.c.l.b16 %v208
      %v343 = vunpack.c.l.b16 %v210
      %v344 = vunpack.c.l.b16 %v211
      %v345 = vunpack.c.l.b16 %v213
      %v346 = vunpack.c.l.b16 %v214
      %v347 = vunpack.c.l.b16 %v216
      %v348 = vunpack.c.l.b16 %v217
      %v349 = vunpack.c.l.b16 %v219
      %v350 = vunpack.c.l.b16 %v220
      %v351 = vunpack.c.l.b16 %v222
      %v352 = vunpack.c.l.b16 %v223
      %v353 = vunpack.c.l.b16 %v225
      %v354 = vunpack.c.l.b16 %v226
      %v355 = vunpack.c.l.b16 %v228
      %v356 = vunpack.c.l.b16 %v229
      %v357 = vunpack.c.l.b16 %v231
      %v358 = vunpack.c.l.b16 %v232
      %v359 = vunpack.c.l.b16 %v234
      %v360 = vunpack.c.l.b16 %v235
      %v361 = vunpack.c.l.b16 %v237
      %v362 = vunpack.c.l.b16 %v238
      %v363 = vunpack.c.l.b16 %v240
      %v364 = vunpack.c.l.b16 %v241
      %v365 = vunpack.c.l.b16 %v243
      %v366 = vunpack.c.l.b16 %v244
      %v367 = vunpack.c.l.b16 %v246
      %v368 = vunpack.c.l.b16 %v247
      %v369 = vunpack.c.l.b16 %v249
      %v370 = vunpack.c.l.b16 %v250
      %v371 = vunpack.c.l.b16 %v252
      %v372 = vunpack.c.l.b16 %v253
      %v373 = vpack.c.b16 %v342, %v341
      %v374 = vpack.c.b16 %v344, %v343
      %v375 = vpack.c.b16 %v346, %v345
      %v376 = vpack.c.b16 %v348, %v347
      %v377 = vpack.c.b16 %v350, %v349
      %v378 = vpack.c.b16 %v352, %v351
      %v379 = vpack.c.b16 %v354, %v353
      %v380 = vpack.c.b16 %v356, %v355
      %v381 = vpack.c.b16 %v358, %v357
      %v382 = vpack.c.b16 %v360, %v359
      %v383 = vpack.c.b16 %v362, %v361
      %v384 = vpack.c.b16 %v364, %v363
      %v385 = vpack.c.b16 %v366, %v365
      %v386 = vpack.c.b16 %v368, %v367
      %v387 = vpack.c.b16 %v370, %v369
      %v388 = vpack.c.b16 %v372, %v371
      %v421 = vunpack.c.l.b16 %v293
      %v422 = vunpack.c.l.b16 %v294
      %v423 = vunpack.c.l.b16 %v295
      %v424 = vunpack.c.l.b16 %v296
      %v425 = vunpack.c.l.b16 %v297
      %v426 = vunpack.c.l.b16 %v298
      %v427 = vunpack.c.l.b16 %v299
      %v428 = vunpack.c.l.b16 %v300
      %v429 = vunpack.c.l.b16 %v301
      %v430 = vunpack.c.l.b16 %v302
      %v431 = vunpack.c.l.b16 %v303
      %v432 = vunpack.c.l.b16 %v304
      %v433 = vunpack.c.l.b16 %v305
      %v434 = vunpack.c.l.b16 %v306
      %v435 = vunpack.c.l.b16 %v307
      %v436 = vunpack.c.l.b16 %v308
      %v437 = vpack.c.b16 %v422, %v421
      %v438 = vpack.c.b16 %v424, %v423
      %v439 = vpack.c.b16 %v426, %v425
      %v440 = vpack.c.b16 %v428, %v427
      %v441 = vpack.c.b16 %v430, %v429
      %v442 = vpack.c.b16 %v432, %v431
      %v443 = vpack.c.b16 %v434, %v433
      %v444 = vpack.c.b16 %v436, %v435
      %453 = vmatpush.bf16.msra.mxu0 %v444
      %454 = vmatpush.bf16.msra.mxu0 %v443
      %455 = vmatpush.bf16.msra.mxu0 %v442
      %456 = vmatpush.bf16.msra.mxu0 %v441
      %457 = vmatpush.bf16.msra.mxu0 %v440
      %458 = vmatpush.bf16.msra.mxu0 %v439
      %459 = vmatpush.bf16.msra.mxu0 %v438
      %460 = vmatpush.bf16.msra.mxu0 %v437
      %461 = vmatmul.bf16.gmra.mxu0 %v373
      %v462 = vpop.f32.mrf.mxu0
      %v463 = vadd.f32 0.0, %v462
      %v464 = vpop.f32.mrf.mxu0
      %v465 = vadd.f32 0.0, %v464
      %466 = vmatmul.bf16.gmra.mxu0 %v374
      %v467 = vpop.f32.mrf.mxu0
      %v468 = vadd.f32 0.0, %v467
      %v469 = vpop.f32.mrf.mxu0
      %v470 = vadd.f32 0.0, %v469
      %471 = vmatmul.bf16.gmra.mxu0 %v375
      %v472 = vpop.f32.mrf.mxu0
      %v473 = vadd.f32 0.0, %v472
      %v474 = vpop.f32.mrf.mxu0
      %v475 = vadd.f32 0.0, %v474
      %476 = vmatmul.bf16.gmra.mxu0 %v376
      %v477 = vpop.f32.mrf.mxu0
      %v478 = vadd.f32 0.0, %v477
      %v479 = vpop.f32.mrf.mxu0
      %v480 = vadd.f32 0.0, %v479
      %481 = vmatmul.bf16.gmra.mxu0 %v377
      %v482 = vpop.f32.mrf.mxu0
      %v483 = vadd.f32 0.0, %v482
      %v484 = vpop.f32.mrf.mxu0
      %v485 = vadd.f32 0.0, %v484
      %486 = vmatmul.bf16.gmra.mxu0 %v378
      %v487 = vpop.f32.mrf.mxu0
      %v488 = vadd.f32 0.0, %v487
      %v489 = vpop.f32.mrf.mxu0
      %v490 = vadd.f32 0.0, %v489
      %491 = vmatmul.bf16.gmra.mxu0 %v379
      %v492 = vpop.f32.mrf.mxu0
      %v493 = vadd.f32 0.0, %v492
      %v494 = vpop.f32.mrf.mxu0
      %v495 = vadd.f32 0.0, %v494
      %496 = vmatmul.bf16.gmra.mxu0 %v380
      %v497 = vpop.f32.mrf.mxu0
      %v498 = vadd.f32 0.0, %v497
      %v499 = vpop.f32.mrf.mxu0
      %v500 = vadd.f32 0.0, %v499
      %501 = vmatmul.bf16.gmra.mxu0 %v381
      %v502 = vpop.f32.mrf.mxu0
      %v503 = vadd.f32 0.0, %v502
      %v504 = vpop.f32.mrf.mxu0
      %v505 = vadd.f32 0.0, %v504
      %506 = vmatmul.bf16.gmra.mxu0 %v382
      %v507 = vpop.f32.mrf.mxu0
      %v508 = vadd.f32 0.0, %v507
      %v509 = vpop.f32.mrf.mxu0
      %v510 = vadd.f32 0.0, %v509
      %511 = vmatmul.bf16.gmra.mxu0 %v383
      %v512 = vpop.f32.mrf.mxu0
      %v513 = vadd.f32 0.0, %v512
      %v514 = vpop.f32.mrf.mxu0
      %v515 = vadd.f32 0.0, %v514
      %516 = vmatmul.bf16.gmra.mxu0 %v384
      %v517 = vpop.f32.mrf.mxu0
      %v518 = vadd.f32 0.0, %v517
      %v519 = vpop.f32.mrf.mxu0
      %v520 = vadd.f32 0.0, %v519
      %521 = vmatmul.bf16.gmra.mxu0 %v385
      %v522 = vpop.f32.mrf.mxu0
      %v523 = vadd.f32 0.0, %v522
      %v524 = vpop.f32.mrf.mxu0
      %v525 = vadd.f32 0.0, %v524
      %526 = vmatmul.bf16.gmra.mxu0 %v386
      %v527 = vpop.f32.mrf.mxu0
      %v528 = vadd.f32 0.0, %v527
      %v529 = vpop.f32.mrf.mxu0
      %v530 = vadd.f32 0.0, %v529
      %531 = vmatmul.bf16.gmra.mxu0 %v387
      %v532 = vpop.f32.mrf.mxu0
      %v533 = vadd.f32 0.0, %v532
      %v534 = vpop.f32.mrf.mxu0
      %v535 = vadd.f32 0.0, %v534
      %536 = vmatmul.bf16.gmra.mxu0 %v388
      %v537 = vpop.f32.mrf.mxu0
      %v538 = vadd.f32 0.0, %v537
      %v539 = vpop.f32.mrf.mxu0
      %v540 = vadd.f32 0.0, %v539
      %541 = vdwg.mxu0
      %v542 = vadd.f32 %v261, %v463
      %v543 = vadd.f32 %v262, %v465
      %v544 = vadd.f32 %v263, %v468
      %v545 = vadd.f32 %v264, %v470
      %v546 = vadd.f32 %v265, %v473
      %v547 = vadd.f32 %v266, %v475
      %v548 = vadd.f32 %v267, %v478
      %v549 = vadd.f32 %v268, %v480
      %v550 = vadd.f32 %v269, %v483
      %v551 = vadd.f32 %v270, %v485
      %v552 = vadd.f32 %v271, %v488
      %v553 = vadd.f32 %v272, %v490
      %v554 = vadd.f32 %v273, %v493
      %v555 = vadd.f32 %v274, %v495
      %v556 = vadd.f32 %v275, %v498
      %v557 = vadd.f32 %v276, %v500
      %v558 = vadd.f32 %v277, %v503
      %v559 = vadd.f32 %v278, %v505
      %v560 = vadd.f32 %v279, %v508
      %v561 = vadd.f32 %v280, %v510
      %v562 = vadd.f32 %v281, %v513
      %v563 = vadd.f32 %v282, %v515
      %v564 = vadd.f32 %v283, %v518
      %v565 = vadd.f32 %v284, %v520
      %v566 = vadd.f32 %v285, %v523
      %v567 = vadd.f32 %v286, %v525
      %v568 = vadd.f32 %v287, %v528
      %v569 = vadd.f32 %v288, %v530
      %v570 = vadd.f32 %v289, %v533
      %v571 = vadd.f32 %v290, %v535
      %v572 = vadd.f32 %v291, %v538
      %v573 = vadd.f32 %v292, %v540
      %574 = vst [vmem:[#allocation2] sm:$0xff] %v542
      %575 = vst [vmem:[#allocation2 + $0x8] sm:$0xff] %v543
      %576 = vst [vmem:[#allocation2 + $0x10] sm:$0xff] %v544
      %577 = vst [vmem:[#allocation2 + $0x18] sm:$0xff] %v545
      %578 = vst [vmem:[#allocation2 + $0x20] sm:$0xff] %v546
      %579 = vst [vmem:[#allocation2 + $0x28] sm:$0xff] %v547
      %580 = vst [vmem:[#allocation2 + $0x30] sm:$0xff] %v548
      %581 = vst [vmem:[#allocation2 + $0x38] sm:$0xff] %v549
      %582 = vst [vmem:[#allocation2 + $0x40] sm:$0xff] %v550
      %583 = vst [vmem:[#allocation2 + $0x48] sm:$0xff] %v551
      %584 = vst [vmem:[#allocation2 + $0x50] sm:$0xff] %v552
      %585 = vst [vmem:[#allocation2 + $0x58] sm:$0xff] %v553
      %586 = vst [vmem:[#allocation2 + $0x60] sm:$0xff] %v554
      %587 = vst [vmem:[#allocation2 + $0x68] sm:$0xff] %v555
      %588 = vst [vmem:[#allocation2 + $0x70] sm:$0xff] %v556
      %589 = vst [vmem:[#allocation2 + $0x78] sm:$0xff] %v557
      %590 = vst [vmem:[#allocation2 + $0x80] sm:$0xff] %v558
      %591 = vst [vmem:[#allocation2 + $0x88] sm:$0xff] %v559
      %592 = vst [vmem:[#allocation2 + $0x90] sm:$0xff] %v560
      %593 = vst [vmem:[#allocation2 + $0x98] sm:$0xff] %v561
      %594 = vst [vmem:[#allocation2 + $0xa0] sm:$0xff] %v562
      %595 = vst [vmem:[#allocation2 + $0xa8] sm:$0xff] %v563
      %596 = vst [vmem:[#allocation2 + $0xb0] sm:$0xff] %v564
      %597 = vst [vmem:[#allocation2 + $0xb8] sm:$0xff] %v565
      %598 = vst [vmem:[#allocation2 + $0xc0] sm:$0xff] %v566
      %599 = vst [vmem:[#allocation2 + $0xc8] sm:$0xff] %v567
      %600 = vst [vmem:[#allocation2 + $0xd0] sm:$0xff] %v568
      %601 = vst [vmem:[#allocation2 + $0xd8] sm:$0xff] %v569
      %602 = vst [vmem:[#allocation2 + $0xe0] sm:$0xff] %v570
      %603 = vst [vmem:[#allocation2 + $0xe8] sm:$0xff] %v571
      %604 = vst [vmem:[#allocation2 + $0xf0] sm:$0xff] %v572
      %605 = vst [vmem:[#allocation2 + $0xf8] sm:$0xff] %v573
      %vm606 = vsmask.f32 3328
      %vm607 = vsmask.f32 7440
      %vm608 = vmor %vm606, %vm607
      %v610 = vshrl.u32 %v207, 16
      %v612 = vrot.slane %v610, 4
      %v613 = vshll.u32 %v207, 16
      %v615 = vrot.slane %v613, 5
      %v616 = vor.u32 %v612, %v615
      %v617 = vrot.slane %v616, 4
      %v619 = vshll.u32 %v208, 16
      %v621 = vrot.slane %v619, 5
      %v622 = vsel %vm608, %v617, %v621
      %v623 = vshrl.u32 %v208, 16
      %v625 = vrot.slane %v623, 4
      %v626 = vor.u32 %v625, %v621
      %v627 = vrot.slane %v626, 4
      %v629 = vshll.u32 %v209, 16
      %v631 = vrot.slane %v629, 5
      %v632 = vsel %vm608, %v627, %v631
      %v634 = vshrl.u32 %v210, 16
      %v636 = vrot.slane %v634, 4
      %v637 = vshll.u32 %v210, 16
      %v639 = vrot.slane %v637, 5
      %v640 = vor.u32 %v636, %v639
      %v641 = vrot.slane %v640, 4
      %v643 = vshll.u32 %v211, 16
      %v645 = vrot.slane %v643, 5
      %v646 = vsel %vm608, %v641, %v645
      %v647 = vshrl.u32 %v211, 16
      %v649 = vrot.slane %v647, 4
      %v650 = vor.u32 %v649, %v645
      %v651 = vrot.slane %v650, 4
      %v653 = vshll.u32 %v212, 16
      %v655 = vrot.slane %v653, 5
      %v656 = vsel %vm608, %v651, %v655
      %v658 = vshrl.u32 %v213, 16
      %v660 = vrot.slane %v658, 4
      %v661 = vshll.u32 %v213, 16
      %v663 = vrot.slane %v661, 5
      %v664 = vor.u32 %v660, %v663
      %v665 = vrot.slane %v664, 4
      %v667 = vshll.u32 %v214, 16
      %v669 = vrot.slane %v667, 5
      %v670 = vsel %vm608, %v665, %v669
      %v671 = vshrl.u32 %v214, 16
      %v673 = vrot.slane %v671, 4
      %v674 = vor.u32 %v673, %v669
      %v675 = vrot.slane %v674, 4
      %v677 = vshll.u32 %v215, 16
      %v679 = vrot.slane %v677, 5
      %v680 = vsel %vm608, %v675, %v679
      %v682 = vshrl.u32 %v216, 16
      %v684 = vrot.slane %v682, 4
      %v685 = vshll.u32 %v216, 16
      %v687 = vrot.slane %v685, 5
      %v688 = vor.u32 %v684, %v687
      %v689 = vrot.slane %v688, 4
      %v691 = vshll.u32 %v217, 16
      %v693 = vrot.slane %v691, 5
      %v694 = vsel %vm608, %v689, %v693
      %v695 = vshrl.u32 %v217, 16
      %v697 = vrot.slane %v695, 4
      %v698 = vor.u32 %v697, %v693
      %v699 = vrot.slane %v698, 4
      %v701 = vshll.u32 %v218, 16
      %v703 = vrot.slane %v701, 5
      %v704 = vsel %vm608, %v699, %v703
      %v706 = vshrl.u32 %v219, 16
      %v708 = vrot.slane %v706, 4
      %v709 = vshll.u32 %v219, 16
      %v711 = vrot.slane %v709, 5
      %v712 = vor.u32 %v708, %v711
      %v713 = vrot.slane %v712, 4
      %v715 = vshll.u32 %v220, 16
      %v717 = vrot.slane %v715, 5
      %v718 = vsel %vm608, %v713, %v717
      %v719 = vshrl.u32 %v220, 16
      %v721 = vrot.slane %v719, 4
      %v722 = vor.u32 %v721, %v717
      %v723 = vrot.slane %v722, 4
      %v725 = vshll.u32 %v221, 16
      %v727 = vrot.slane %v725, 5
      %v728 = vsel %vm608, %v723, %v727
      %v730 = vshrl.u32 %v222, 16
      %v732 = vrot.slane %v730, 4
      %v733 = vshll.u32 %v222, 16
      %v735 = vrot.slane %v733, 5
      %v736 = vor.u32 %v732, %v735
      %v737 = vrot.slane %v736, 4
      %v739 = vshll.u32 %v223, 16
      %v741 = vrot.slane %v739, 5
      %v742 = vsel %vm608, %v737, %v741
      %v743 = vshrl.u32 %v223, 16
      %v745 = vrot.slane %v743, 4
      %v746 = vor.u32 %v745, %v741
      %v747 = vrot.slane %v746, 4
      %v749 = vshll.u32 %v224, 16
      %v751 = vrot.slane %v749, 5
      %v752 = vsel %vm608, %v747, %v751
      %v754 = vshrl.u32 %v225, 16
      %v756 = vrot.slane %v754, 4
      %v757 = vshll.u32 %v225, 16
      %v759 = vrot.slane %v757, 5
      %v760 = vor.u32 %v756, %v759
      %v761 = vrot.slane %v760, 4
      %v763 = vshll.u32 %v226, 16
      %v765 = vrot.slane %v763, 5
      %v766 = vsel %vm608, %v761, %v765
      %v767 = vshrl.u32 %v226, 16
      %v769 = vrot.slane %v767, 4
      %v770 = vor.u32 %v769, %v765
      %v771 = vrot.slane %v770, 4
      %v773 = vshll.u32 %v227, 16
      %v775 = vrot.slane %v773, 5
      %v776 = vsel %vm608, %v771, %v775
      %v778 = vshrl.u32 %v228, 16
      %v780 = vrot.slane %v778, 4
      %v781 = vshll.u32 %v228, 16
      %v783 = vrot.slane %v781, 5
      %v784 = vor.u32 %v780, %v783
      %v785 = vrot.slane %v784, 4
      %v787 = vshll.u32 %v229, 16
      %v789 = vrot.slane %v787, 5
      %v790 = vsel %vm608, %v785, %v789
      %v791 = vshrl.u32 %v229, 16
      %v793 = vrot.slane %v791, 4
      %v794 = vor.u32 %v793, %v789
      %v795 = vrot.slane %v794, 4
      %v797 = vshll.u32 %v230, 16
      %v799 = vrot.slane %v797, 5
      %v800 = vsel %vm608, %v795, %v799
      %v802 = vshrl.u32 %v231, 16
      %v804 = vrot.slane %v802, 4
      %v805 = vshll.u32 %v231, 16
      %v807 = vrot.slane %v805, 5
      %v808 = vor.u32 %v804, %v807
      %v809 = vrot.slane %v808, 4
      %v811 = vshll.u32 %v232, 16
      %v813 = vrot.slane %v811, 5
      %v814 = vsel %vm608, %v809, %v813
      %v815 = vshrl.u32 %v232, 16
      %v817 = vrot.slane %v815, 4
      %v818 = vor.u32 %v817, %v813
      %v819 = vrot.slane %v818, 4
      %v821 = vshll.u32 %v233, 16
      %v823 = vrot.slane %v821, 5
      %v824 = vsel %vm608, %v819, %v823
      %v826 = vshrl.u32 %v234, 16
      %v828 = vrot.slane %v826, 4
      %v829 = vshll.u32 %v234, 16
      %v831 = vrot.slane %v829, 5
      %v832 = vor.u32 %v828, %v831
      %v833 = vrot.slane %v832, 4
      %v835 = vshll.u32 %v235, 16
      %v837 = vrot.slane %v835, 5
      %v838 = vsel %vm608, %v833, %v837
      %v839 = vshrl.u32 %v235, 16
      %v841 = vrot.slane %v839, 4
      %v842 = vor.u32 %v841, %v837
      %v843 = vrot.slane %v842, 4
      %v845 = vshll.u32 %v236, 16
      %v847 = vrot.slane %v845, 5
      %v848 = vsel %vm608, %v843, %v847
      %v850 = vshrl.u32 %v237, 16
      %v852 = vrot.slane %v850, 4
      %v853 = vshll.u32 %v237, 16
      %v855 = vrot.slane %v853, 5
      %v856 = vor.u32 %v852, %v855
      %v857 = vrot.slane %v856, 4
      %v859 = vshll.u32 %v238, 16
      %v861 = vrot.slane %v859, 5
      %v862 = vsel %vm608, %v857, %v861
      %v863 = vshrl.u32 %v238, 16
      %v865 = vrot.slane %v863, 4
      %v866 = vor.u32 %v865, %v861
      %v867 = vrot.slane %v866, 4
      %v869 = vshll.u32 %v239, 16
      %v871 = vrot.slane %v869, 5
      %v872 = vsel %vm608, %v867, %v871
      %v874 = vshrl.u32 %v240, 16
      %v876 = vrot.slane %v874, 4
      %v877 = vshll.u32 %v240, 16
      %v879 = vrot.slane %v877, 5
      %v880 = vor.u32 %v876, %v879
      %v881 = vrot.slane %v880, 4
      %v883 = vshll.u32 %v241, 16
      %v885 = vrot.slane %v883, 5
      %v886 = vsel %vm608, %v881, %v885
      %v887 = vshrl.u32 %v241, 16
      %v889 = vrot.slane %v887, 4
      %v890 = vor.u32 %v889, %v885
      %v891 = vrot.slane %v890, 4
      %v893 = vshll.u32 %v242, 16
      %v895 = vrot.slane %v893, 5
      %v896 = vsel %vm608, %v891, %v895
      %v898 = vshrl.u32 %v243, 16
      %v900 = vrot.slane %v898, 4
      %v901 = vshll.u32 %v243, 16
      %v903 = vrot.slane %v901, 5
      %v904 = vor.u32 %v900, %v903
      %v905 = vrot.slane %v904, 4
      %v907 = vshll.u32 %v244, 16
      %v909 = vrot.slane %v907, 5
      %v910 = vsel %vm608, %v905, %v909
      %v911 = vshrl.u32 %v244, 16
      %v913 = vrot.slane %v911, 4
      %v914 = vor.u32 %v913, %v909
      %v915 = vrot.slane %v914, 4
      %v917 = vshll.u32 %v245, 16
      %v919 = vrot.slane %v917, 5
      %v920 = vsel %vm608, %v915, %v919
      %v922 = vshrl.u32 %v246, 16
      %v924 = vrot.slane %v922, 4
      %v925 = vshll.u32 %v246, 16
      %v927 = vrot.slane %v925, 5
      %v928 = vor.u32 %v924, %v927
      %v929 = vrot.slane %v928, 4
      %v931 = vshll.u32 %v247, 16
      %v933 = vrot.slane %v931, 5
      %v934 = vsel %vm608, %v929, %v933
      %v935 = vshrl.u32 %v247, 16
      %v937 = vrot.slane %v935, 4
      %v938 = vor.u32 %v937, %v933
      %v939 = vrot.slane %v938, 4
      %v941 = vshll.u32 %v248, 16
      %v943 = vrot.slane %v941, 5
      %v944 = vsel %vm608, %v939, %v943
      %v946 = vshrl.u32 %v249, 16
      %v948 = vrot.slane %v946, 4
      %v949 = vshll.u32 %v249, 16
      %v951 = vrot.slane %v949, 5
      %v952 = vor.u32 %v948, %v951
      %v953 = vrot.slane %v952, 4
      %v955 = vshll.u32 %v250, 16
      %v957 = vrot.slane %v955, 5
      %v958 = vsel %vm608, %v953, %v957
      %v959 = vshrl.u32 %v250, 16
      %v961 = vrot.slane %v959, 4
      %v962 = vor.u32 %v961, %v957
      %v963 = vrot.slane %v962, 4
      %v965 = vshll.u32 %v251, 16
      %v967 = vrot.slane %v965, 5
      %v968 = vsel %vm608, %v963, %v967
      %v970 = vshrl.u32 %v252, 16
      %v972 = vrot.slane %v970, 4
      %v973 = vshll.u32 %v252, 16
      %v975 = vrot.slane %v973, 5
      %v976 = vor.u32 %v972, %v975
      %v977 = vrot.slane %v976, 4
      %v979 = vshll.u32 %v253, 16
      %v981 = vrot.slane %v979, 5
      %v982 = vsel %vm608, %v977, %v981
      %v983 = vshrl.u32 %v253, 16
      %v985 = vrot.slane %v983, 4
      %v986 = vor.u32 %v985, %v981
      %v987 = vrot.slane %v986, 4
      %v989 = vshll.u32 %v254, 16
      %v991 = vrot.slane %v989, 5
      %v992 = vsel %vm608, %v987, %v991
      %v993 = vld [vmem:[#allocation2] sm:$0xff]
      %v994 = vld [vmem:[#allocation2 + $0x8] sm:$0xff]
      %v995 = vld [vmem:[#allocation2 + $0x10] sm:$0xff]
      %v996 = vld [vmem:[#allocation2 + $0x18] sm:$0xff]
      %v997 = vld [vmem:[#allocation2 + $0x20] sm:$0xff]
      %v998 = vld [vmem:[#allocation2 + $0x28] sm:$0xff]
      %v999 = vld [vmem:[#allocation2 + $0x30] sm:$0xff]
      %v1000 = vld [vmem:[#allocation2 + $0x38] sm:$0xff]
      %v1001 = vld [vmem:[#allocation2 + $0x40] sm:$0xff]
      %v1002 = vld [vmem:[#allocation2 + $0x48] sm:$0xff]
      %v1003 = vld [vmem:[#allocation2 + $0x50] sm:$0xff]
      %v1004 = vld [vmem:[#allocation2 + $0x58] sm:$0xff]
      %v1005 = vld [vmem:[#allocation2 + $0x60] sm:$0xff]
      %v1006 = vld [vmem:[#allocation2 + $0x68] sm:$0xff]
      %v1007 = vld [vmem:[#allocation2 + $0x70] sm:$0xff]
      %v1008 = vld [vmem:[#allocation2 + $0x78] sm:$0xff]
      %v1009 = vld [vmem:[#allocation2 + $0x80] sm:$0xff]
      %v1010 = vld [vmem:[#allocation2 + $0x88] sm:$0xff]
      %v1011 = vld [vmem:[#allocation2 + $0x90] sm:$0xff]
      %v1012 = vld [vmem:[#allocation2 + $0x98] sm:$0xff]
      %v1013 = vld [vmem:[#allocation2 + $0xa0] sm:$0xff]
      %v1014 = vld [vmem:[#allocation2 + $0xa8] sm:$0xff]
      %v1015 = vld [vmem:[#allocation2 + $0xb0] sm:$0xff]
      %v1016 = vld [vmem:[#allocation2 + $0xb8] sm:$0xff]
      %v1017 = vld [vmem:[#allocation2 + $0xc0] sm:$0xff]
      %v1018 = vld [vmem:[#allocation2 + $0xc8] sm:$0xff]
      %v1019 = vld [vmem:[#allocation2 + $0xd0] sm:$0xff]
      %v1020 = vld [vmem:[#allocation2 + $0xd8] sm:$0xff]
      %v1021 = vld [vmem:[#allocation2 + $0xe0] sm:$0xff]
      %v1022 = vld [vmem:[#allocation2 + $0xe8] sm:$0xff]
      %v1023 = vld [vmem:[#allocation2 + $0xf0] sm:$0xff]
      %v1024 = vld [vmem:[#allocation2 + $0xf8] sm:$0xff]
      %s1025 = scalar_lea.vmem %s1, 64
      %v1026 = vld [vmem:[%s1025] sm:$0xf]
      %v1027 = vld [vmem:[%s1025 + $0x4] sm:$0xf]
      %v1028 = vld [vmem:[%s1025 + $0x8] sm:$0xf]
      %v1029 = vld [vmem:[%s1025 + $0xc] sm:$0xf]
      %v1030 = vld [vmem:[%s1025 + $0x10] sm:$0xf]
      %v1031 = vld [vmem:[%s1025 + $0x14] sm:$0xf]
      %v1032 = vld [vmem:[%s1025 + $0x18] sm:$0xf]
      %v1033 = vld [vmem:[%s1025 + $0x1c] sm:$0xf]
      %v1034 = vld [vmem:[%s1025 + $0x20] sm:$0xf]
      %v1035 = vld [vmem:[%s1025 + $0x24] sm:$0xf]
      %v1036 = vld [vmem:[%s1025 + $0x28] sm:$0xf]
      %v1037 = vld [vmem:[%s1025 + $0x2c] sm:$0xf]
      %v1038 = vld [vmem:[%s1025 + $0x30] sm:$0xf]
      %v1039 = vld [vmem:[%s1025 + $0x34] sm:$0xf]
      %v1040 = vld [vmem:[%s1025 + $0x38] sm:$0xf]
      %v1041 = vld [vmem:[%s1025 + $0x3c] sm:$0xf]
      %v1042 = vunpack.c.l.b16 %v622
      %v1043 = vunpack.c.l.b16 %v632
      %v1044 = vunpack.c.l.b16 %v646
      %v1045 = vunpack.c.l.b16 %v656
      %v1046 = vunpack.c.l.b16 %v670
      %v1047 = vunpack.c.l.b16 %v680
      %v1048 = vunpack.c.l.b16 %v694
      %v1049 = vunpack.c.l.b16 %v704
      %v1050 = vunpack.c.l.b16 %v718
      %v1051 = vunpack.c.l.b16 %v728
      %v1052 = vunpack.c.l.b16 %v742
      %v1053 = vunpack.c.l.b16 %v752
      %v1054 = vunpack.c.l.b16 %v766
      %v1055 = vunpack.c.l.b16 %v776
      %v1056 = vunpack.c.l.b16 %v790
      %v1057 = vunpack.c.l.b16 %v800
      %v1058 = vunpack.c.l.b16 %v814
      %v1059 = vunpack.c.l.b16 %v824
      %v1060 = vunpack.c.l.b16 %v838
      %v1061 = vunpack.c.l.b16 %v848
      %v1062 = vunpack.c.l.b16 %v862
      %v1063 = vunpack.c.l.b16 %v872
      %v1064 = vunpack.c.l.b16 %v886
      %v1065 = vunpack.c.l.b16 %v896
      %v1066 = vunpack.c.l.b16 %v910
      %v1067 = vunpack.c.l.b16 %v920
      %v1068 = vunpack.c.l.b16 %v934
      %v1069 = vunpack.c.l.b16 %v944
      %v1070 = vunpack.c.l.b16 %v958
      %v1071 = vunpack.c.l.b16 %v968
      %v1072 = vunpack.c.l.b16 %v982
      %v1073 = vunpack.c.l.b16 %v992
      %v1074 = vpack.c.b16 %v1043, %v1042
      %v1075 = vpack.c.b16 %v1045, %v1044
      %v1076 = vpack.c.b16 %v1047, %v1046
      %v1077 = vpack.c.b16 %v1049, %v1048
      %v1078 = vpack.c.b16 %v1051, %v1050
      %v1079 = vpack.c.b16 %v1053, %v1052
      %v1080 = vpack.c.b16 %v1055, %v1054
      %v1081 = vpack.c.b16 %v1057, %v1056
      %v1082 = vpack.c.b16 %v1059, %v1058
      %v1083 = vpack.c.b16 %v1061, %v1060
      %v1084 = vpack.c.b16 %v1063, %v1062
      %v1085 = vpack.c.b16 %v1065, %v1064
      %v1086 = vpack.c.b16 %v1067, %v1066
      %v1087 = vpack.c.b16 %v1069, %v1068
      %v1088 = vpack.c.b16 %v1071, %v1070
      %v1089 = vpack.c.b16 %v1073, %v1072
      %v1122 = vunpack.c.l.b16 %v1026
      %v1123 = vunpack.c.l.b16 %v1027
      %v1124 = vunpack.c.l.b16 %v1028
      %v1125 = vunpack.c.l.b16 %v1029
      %v1126 = vunpack.c.l.b16 %v1030
      %v1127 = vunpack.c.l.b16 %v1031
      %v1128 = vunpack.c.l.b16 %v1032
      %v1129 = vunpack.c.l.b16 %v1033
      %v1130 = vunpack.c.l.b16 %v1034
      %v1131 = vunpack.c.l.b16 %v1035
      %v1132 = vunpack.c.l.b16 %v1036
      %v1133 = vunpack.c.l.b16 %v1037
      %v1134 = vunpack.c.l.b16 %v1038
      %v1135 = vunpack.c.l.b16 %v1039
      %v1136 = vunpack.c.l.b16 %v1040
      %v1137 = vunpack.c.l.b16 %v1041
      %v1138 = vpack.c.b16 %v1123, %v1122
      %v1139 = vpack.c.b16 %v1125, %v1124
      %v1140 = vpack.c.b16 %v1127, %v1126
      %v1141 = vpack.c.b16 %v1129, %v1128
      %v1142 = vpack.c.b16 %v1131, %v1130
      %v1143 = vpack.c.b16 %v1133, %v1132
      %v1144 = vpack.c.b16 %v1135, %v1134
      %v1145 = vpack.c.b16 %v1137, %v1136
      %1154 = vmatpush.bf16.msra.mxu0 %v1145
      %1155 = vmatpush.bf16.msra.mxu0 %v1144
      %1156 = vmatpush.bf16.msra.mxu0 %v1143
      %1157 = vmatpush.bf16.msra.mxu0 %v1142
      %1158 = vmatpush.bf16.msra.mxu0 %v1141
      %1159 = vmatpush.bf16.msra.mxu0 %v1140
      %1160 = vmatpush.bf16.msra.mxu0 %v1139
      %1161 = vmatpush.bf16.msra.mxu0 %v1138
      %1162 = vmatmul.bf16.gmra.mxu0 %v1074
      %v1163 = vpop.f32.mrf.mxu0
      %v1164 = vadd.f32 0.0, %v1163
      %v1165 = vpop.f32.mrf.mxu0
      %v1166 = vadd.f32 0.0, %v1165
      %1167 = vmatmul.bf16.gmra.mxu0 %v1075
      %v1168 = vpop.f32.mrf.mxu0
      %v1169 = vadd.f32 0.0, %v1168
      %v1170 = vpop.f32.mrf.mxu0
      %v1171 = vadd.f32 0.0, %v1170
      %1172 = vmatmul.bf16.gmra.mxu0 %v1076
      %v1173 = vpop.f32.mrf.mxu0
      %v1174 = vadd.f32 0.0, %v1173
      %v1175 = vpop.f32.mrf.mxu0
      %v1176 = vadd.f32 0.0, %v1175
      %1177 = vmatmul.bf16.gmra.mxu0 %v1077
      %v1178 = vpop.f32.mrf.mxu0
      %v1179 = vadd.f32 0.0, %v1178
      %v1180 = vpop.f32.mrf.mxu0
      %v1181 = vadd.f32 0.0, %v1180
      %1182 = vmatmul.bf16.gmra.mxu0 %v1078
      %v1183 = vpop.f32.mrf.mxu0
      %v1184 = vadd.f32 0.0, %v1183
      %v1185 = vpop.f32.mrf.mxu0
      %v1186 = vadd.f32 0.0, %v1185
      %1187 = vmatmul.bf16.gmra.mxu0 %v1079
      %v1188 = vpop.f32.mrf.mxu0
      %v1189 = vadd.f32 0.0, %v1188
      %v1190 = vpop.f32.mrf.mxu0
      %v1191 = vadd.f32 0.0, %v1190
      %1192 = vmatmul.bf16.gmra.mxu0 %v1080
      %v1193 = vpop.f32.mrf.mxu0
      %v1194 = vadd.f32 0.0, %v1193
      %v1195 = vpop.f32.mrf.mxu0
      %v1196 = vadd.f32 0.0, %v1195
      %1197 = vmatmul.bf16.gmra.mxu0 %v1081
      %v1198 = vpop.f32.mrf.mxu0
      %v1199 = vadd.f32 0.0, %v1198
      %v1200 = vpop.f32.mrf.mxu0
      %v1201 = vadd.f32 0.0, %v1200
      %1202 = vmatmul.bf16.gmra.mxu0 %v1082
      %v1203 = vpop.f32.mrf.mxu0
      %v1204 = vadd.f32 0.0, %v1203
      %v1205 = vpop.f32.mrf.mxu0
      %v1206 = vadd.f32 0.0, %v1205
      %1207 = vmatmul.bf16.gmra.mxu0 %v1083
      %v1208 = vpop.f32.mrf.mxu0
      %v1209 = vadd.f32 0.0, %v1208
      %v1210 = vpop.f32.mrf.mxu0
      %v1211 = vadd.f32 0.0, %v1210
      %1212 = vmatmul.bf16.gmra.mxu0 %v1084
      %v1213 = vpop.f32.mrf.mxu0
      %v1214 = vadd.f32 0.0, %v1213
      %v1215 = vpop.f32.mrf.mxu0
      %v1216 = vadd.f32 0.0, %v1215
      %1217 = vmatmul.bf16.gmra.mxu0 %v1085
      %v1218 = vpop.f32.mrf.mxu0
      %v1219 = vadd.f32 0.0, %v1218
      %v1220 = vpop.f32.mrf.mxu0
      %v1221 = vadd.f32 0.0, %v1220
      %1222 = vmatmul.bf16.gmra.mxu0 %v1086
      %v1223 = vpop.f32.mrf.mxu0
      %v1224 = vadd.f32 0.0, %v1223
      %v1225 = vpop.f32.mrf.mxu0
      %v1226 = vadd.f32 0.0, %v1225
      %1227 = vmatmul.bf16.gmra.mxu0 %v1087
      %v1228 = vpop.f32.mrf.mxu0
      %v1229 = vadd.f32 0.0, %v1228
      %v1230 = vpop.f32.mrf.mxu0
      %v1231 = vadd.f32 0.0, %v1230
      %1232 = vmatmul.bf16.gmra.mxu0 %v1088
      %v1233 = vpop.f32.mrf.mxu0
      %v1234 = vadd.f32 0.0, %v1233
      %v1235 = vpop.f32.mrf.mxu0
      %v1236 = vadd.f32 0.0, %v1235
      %1237 = vmatmul.bf16.gmra.mxu0 %v1089
      %v1238 = vpop.f32.mrf.mxu0
      %v1239 = vadd.f32 0.0, %v1238
      %v1240 = vpop.f32.mrf.mxu0
      %v1241 = vadd.f32 0.0, %v1240
      %1242 = vdwg.mxu0
      %v1243 = vadd.f32 %v993, %v1164
      %v1244 = vadd.f32 %v994, %v1166
      %v1245 = vadd.f32 %v995, %v1169
      %v1246 = vadd.f32 %v996, %v1171
      %v1247 = vadd.f32 %v997, %v1174
      %v1248 = vadd.f32 %v998, %v1176
      %v1249 = vadd.f32 %v999, %v1179
      %v1250 = vadd.f32 %v1000, %v1181
      %v1251 = vadd.f32 %v1001, %v1184
      %v1252 = vadd.f32 %v1002, %v1186
      %v1253 = vadd.f32 %v1003, %v1189
      %v1254 = vadd.f32 %v1004, %v1191
      %v1255 = vadd.f32 %v1005, %v1194
      %v1256 = vadd.f32 %v1006, %v1196
      %v1257 = vadd.f32 %v1007, %v1199
      %v1258 = vadd.f32 %v1008, %v1201
      %v1259 = vadd.f32 %v1009, %v1204
      %v1260 = vadd.f32 %v1010, %v1206
      %v1261 = vadd.f32 %v1011, %v1209
      %v1262 = vadd.f32 %v1012, %v1211
      %v1263 = vadd.f32 %v1013, %v1214
      %v1264 = vadd.f32 %v1014, %v1216
      %v1265 = vadd.f32 %v1015, %v1219
      %v1266 = vadd.f32 %v1016, %v1221
      %v1267 = vadd.f32 %v1017, %v1224
      %v1268 = vadd.f32 %v1018, %v1226
      %v1269 = vadd.f32 %v1019, %v1229
      %v1270 = vadd.f32 %v1020, %v1231
      %v1271 = vadd.f32 %v1021, %v1234
      %v1272 = vadd.f32 %v1022, %v1236
      %v1273 = vadd.f32 %v1023, %v1239
      %v1274 = vadd.f32 %v1024, %v1241
      %1275 = vst [vmem:[#allocation2] sm:$0xff] %v1243
      %1276 = vst [vmem:[#allocation2 + $0x8] sm:$0xff] %v1244
      %1277 = vst [vmem:[#allocation2 + $0x10] sm:$0xff] %v1245
      %1278 = vst [vmem:[#allocation2 + $0x18] sm:$0xff] %v1246
      %1279 = vst [vmem:[#allocation2 + $0x20] sm:$0xff] %v1247
      %1280 = vst [vmem:[#allocation2 + $0x28] sm:$0xff] %v1248
      %1281 = vst [vmem:[#allocation2 + $0x30] sm:$0xff] %v1249
      %1282 = vst [vmem:[#allocation2 + $0x38] sm:$0xff] %v1250
      %1283 = vst [vmem:[#allocation2 + $0x40] sm:$0xff] %v1251
      %1284 = vst [vmem:[#allocation2 + $0x48] sm:$0xff] %v1252
      %1285 = vst [vmem:[#allocation2 + $0x50] sm:$0xff] %v1253
      %1286 = vst [vmem:[#allocation2 + $0x58] sm:$0xff] %v1254
      %1287 = vst [vmem:[#allocation2 + $0x60] sm:$0xff] %v1255
      %1288 = vst [vmem:[#allocation2 + $0x68] sm:$0xff] %v1256
      %1289 = vst [vmem:[#allocation2 + $0x70] sm:$0xff] %v1257
      %1290 = vst [vmem:[#allocation2 + $0x78] sm:$0xff] %v1258
      %1291 = vst [vmem:[#allocation2 + $0x80] sm:$0xff] %v1259
      %1292 = vst [vmem:[#allocation2 + $0x88] sm:$0xff] %v1260
      %1293 = vst [vmem:[#allocation2 + $0x90] sm:$0xff] %v1261
      %1294 = vst [vmem:[#allocation2 + $0x98] sm:$0xff] %v1262
      %1295 = vst [vmem:[#allocation2 + $0xa0] sm:$0xff] %v1263
      %1296 = vst [vmem:[#allocation2 + $0xa8] sm:$0xff] %v1264
      %1297 = vst [vmem:[#allocation2 + $0xb0] sm:$0xff] %v1265
      %1298 = vst [vmem:[#allocation2 + $0xb8] sm:$0xff] %v1266
      %1299 = vst [vmem:[#allocation2 + $0xc0] sm:$0xff] %v1267
      %1300 = vst [vmem:[#allocation2 + $0xc8] sm:$0xff] %v1268
      %1301 = vst [vmem:[#allocation2 + $0xd0] sm:$0xff] %v1269
      %1302 = vst [vmem:[#allocation2 + $0xd8] sm:$0xff] %v1270
      %1303 = vst [vmem:[#allocation2 + $0xe0] sm:$0xff] %v1271
      %1304 = vst [vmem:[#allocation2 + $0xe8] sm:$0xff] %v1272
      %1305 = vst [vmem:[#allocation2 + $0xf0] sm:$0xff] %v1273
      %1306 = vst [vmem:[#allocation2 + $0xf8] sm:$0xff] %v1274
      %vm1323 = vcmask 1042432
      %vm1324 = vcmask 1046532
      %vm1325 = vmor %vm1323, %vm1324
      %v1326 = vrot.slane %v207, 5
      %v1327 = vrot.slane %v1326, 4
      %v1328 = vrot.slane %v208, 5
      %v1329 = vsel %vm1325, %v1327, %v1328
      %v1330 = vrot.slane %v1328, 4
      %v1331 = vrot.slane %v209, 5
      %v1332 = vsel %vm1325, %v1330, %v1331
      %v1333 = vrot.slane %v210, 5
      %v1334 = vrot.slane %v1333, 4
      %v1335 = vrot.slane %v211, 5
      %v1336 = vsel %vm1325, %v1334, %v1335
      %v1337 = vrot.slane %v1335, 4
      %v1338 = vrot.slane %v212, 5
      %v1339 = vsel %vm1325, %v1337, %v1338
      %v1340 = vrot.slane %v213, 5
      %v1341 = vrot.slane %v1340, 4
      %v1342 = vrot.slane %v214, 5
      %v1343 = vsel %vm1325, %v1341, %v1342
      %v1344 = vrot.slane %v1342, 4
      %v1345 = vrot.slane %v215, 5
      %v1346 = vsel %vm1325, %v1344, %v1345
      %v1347 = vrot.slane %v216, 5
      %v1348 = vrot.slane %v1347, 4
      %v1349 = vrot.slane %v217, 5
      %v1350 = vsel %vm1325, %v1348, %v1349
      %v1351 = vrot.slane %v1349, 4
      %v1352 = vrot.slane %v218, 5
      %v1353 = vsel %vm1325, %v1351, %v1352
      %v1354 = vrot.slane %v219, 5
      %v1355 = vrot.slane %v1354, 4
      %v1356 = vrot.slane %v220, 5
      %v1357 = vsel %vm1325, %v1355, %v1356
      %v1358 = vrot.slane %v1356, 4
      %v1359 = vrot.slane %v221, 5
      %v1360 = vsel %vm1325, %v1358, %v1359
      %v1361 = vrot.slane %v222, 5
      %v1362 = vrot.slane %v1361, 4
      %v1363 = vrot.slane %v223, 5
      %v1364 = vsel %vm1325, %v1362, %v1363
      %v1365 = vrot.slane %v1363, 4
      %v1366 = vrot.slane %v224, 5
      %v1367 = vsel %vm1325, %v1365, %v1366
      %v1368 = vrot.slane %v225, 5
      %v1369 = vrot.slane %v1368, 4
      %v1370 = vrot.slane %v226, 5
      %v1371 = vsel %vm1325, %v1369, %v1370
      %v1372 = vrot.slane %v1370, 4
      %v1373 = vrot.slane %v227, 5
      %v1374 = vsel %vm1325, %v1372, %v1373
      %v1375 = vrot.slane %v228, 5
      %v1376 = vrot.slane %v1375, 4
      %v1377 = vrot.slane %v229, 5
      %v1378 = vsel %vm1325, %v1376, %v1377
      %v1379 = vrot.slane %v1377, 4
      %v1380 = vrot.slane %v230, 5
      %v1381 = vsel %vm1325, %v1379, %v1380
      %v1382 = vrot.slane %v231, 5
      %v1383 = vrot.slane %v1382, 4
      %v1384 = vrot.slane %v232, 5
      %v1385 = vsel %vm1325, %v1383, %v1384
      %v1386 = vrot.slane %v1384, 4
      %v1387 = vrot.slane %v233, 5
      %v1388 = vsel %vm1325, %v1386, %v1387
      %v1389 = vrot.slane %v234, 5
      %v1390 = vrot.slane %v1389, 4
      %v1391 = vrot.slane %v235, 5
      %v1392 = vsel %vm1325, %v1390, %v1391
      %v1393 = vrot.slane %v1391, 4
      %v1394 = vrot.slane %v236, 5
      %v1395 = vsel %vm1325, %v1393, %v1394
      %v1396 = vrot.slane %v237, 5
      %v1397 = vrot.slane %v1396, 4
      %v1398 = vrot.slane %v238, 5
      %v1399 = vsel %vm1325, %v1397, %v1398
      %v1400 = vrot.slane %v1398, 4
      %v1401 = vrot.slane %v239, 5
      %v1402 = vsel %vm1325, %v1400, %v1401
      %v1403 = vrot.slane %v240, 5
      %v1404 = vrot.slane %v1403, 4
      %v1405 = vrot.slane %v241, 5
      %v1406 = vsel %vm1325, %v1404, %v1405
      %v1407 = vrot.slane %v1405, 4
      %v1408 = vrot.slane %v242, 5
      %v1409 = vsel %vm1325, %v1407, %v1408
      %v1410 = vrot.slane %v243, 5
      %v1411 = vrot.slane %v1410, 4
      %v1412 = vrot.slane %v244, 5
      %v1413 = vsel %vm1325, %v1411, %v1412
      %v1414 = vrot.slane %v1412, 4
      %v1415 = vrot.slane %v245, 5
      %v1416 = vsel %vm1325, %v1414, %v1415
      %v1417 = vrot.slane %v246, 5
      %v1418 = vrot.slane %v1417, 4
      %v1419 = vrot.slane %v247, 5
      %v1420 = vsel %vm1325, %v1418, %v1419
      %v1421 = vrot.slane %v1419, 4
      %v1422 = vrot.slane %v248, 5
      %v1423 = vsel %vm1325, %v1421, %v1422
      %v1424 = vrot.slane %v249, 5
      %v1425 = vrot.slane %v1424, 4
      %v1426 = vrot.slane %v250, 5
      %v1427 = vsel %vm1325, %v1425, %v1426
      %v1428 = vrot.slane %v1426, 4
      %v1429 = vrot.slane %v251, 5
      %v1430 = vsel %vm1325, %v1428, %v1429
      %v1431 = vrot.slane %v252, 5
      %v1432 = vrot.slane %v1431, 4
      %v1433 = vrot.slane %v253, 5
      %v1434 = vsel %vm1325, %v1432, %v1433
      %v1435 = vrot.slane %v1433, 4
      %v1436 = vrot.slane %v254, 5
      %v1437 = vsel %vm1325, %v1435, %v1436
      %v1438 = vld [vmem:[#allocation2] sm:$0xff]
      %v1439 = vld [vmem:[#allocation2 + $0x8] sm:$0xff]
      %v1440 = vld [vmem:[#allocation2 + $0x10] sm:$0xff]
      %v1441 = vld [vmem:[#allocation2 + $0x18] sm:$0xff]
      %v1442 = vld [vmem:[#allocation2 + $0x20] sm:$0xff]
      %v1443 = vld [vmem:[#allocation2 + $0x28] sm:$0xff]
      %v1444 = vld [vmem:[#allocation2 + $0x30] sm:$0xff]
      %v1445 = vld [vmem:[#allocation2 + $0x38] sm:$0xff]
      %v1446 = vld [vmem:[#allocation2 + $0x40] sm:$0xff]
      %v1447 = vld [vmem:[#allocation2 + $0x48] sm:$0xff]
      %v1448 = vld [vmem:[#allocation2 + $0x50] sm:$0xff]
      %v1449 = vld [vmem:[#allocation2 + $0x58] sm:$0xff]
      %v1450 = vld [vmem:[#allocation2 + $0x60] sm:$0xff]
      %v1451 = vld [vmem:[#allocation2 + $0x68] sm:$0xff]
      %v1452 = vld [vmem:[#allocation2 + $0x70] sm:$0xff]
      %v1453 = vld [vmem:[#allocation2 + $0x78] sm:$0xff]
      %v1454 = vld [vmem:[#allocation2 + $0x80] sm:$0xff]
      %v1455 = vld [vmem:[#allocation2 + $0x88] sm:$0xff]
      %v1456 = vld [vmem:[#allocation2 + $0x90] sm:$0xff]
      %v1457 = vld [vmem:[#allocation2 + $0x98] sm:$0xff]
      %v1458 = vld [vmem:[#allocation2 + $0xa0] sm:$0xff]
      %v1459 = vld [vmem:[#allocation2 + $0xa8] sm:$0xff]
      %v1460 = vld [vmem:[#allocation2 + $0xb0] sm:$0xff]
      %v1461 = vld [vmem:[#allocation2 + $0xb8] sm:$0xff]
      %v1462 = vld [vmem:[#allocation2 + $0xc0] sm:$0xff]
      %v1463 = vld [vmem:[#allocation2 + $0xc8] sm:$0xff]
      %v1464 = vld [vmem:[#allocation2 + $0xd0] sm:$0xff]
      %v1465 = vld [vmem:[#allocation2 + $0xd8] sm:$0xff]
      %v1466 = vld [vmem:[#allocation2 + $0xe0] sm:$0xff]
      %v1467 = vld [vmem:[#allocation2 + $0xe8] sm:$0xff]
      %v1468 = vld [vmem:[#allocation2 + $0xf0] sm:$0xff]
      %v1469 = vld [vmem:[#allocation2 + $0xf8] sm:$0xff]
      %s1470 = scalar_lea.vmem %s1, 128
      %v1471 = vld [vmem:[%s1470] sm:$0xf]
      %v1472 = vld [vmem:[%s1470 + $0x4] sm:$0xf]
      %v1473 = vld [vmem:[%s1470 + $0x8] sm:$0xf]
      %v1474 = vld [vmem:[%s1470 + $0xc] sm:$0xf]
      %v1475 = vld [vmem:[%s1470 + $0x10] sm:$0xf]
      %v1476 = vld [vmem:[%s1470 + $0x14] sm:$0xf]
      %v1477 = vld [vmem:[%s1470 + $0x18] sm:$0xf]
      %v1478 = vld [vmem:[%s1470 + $0x1c] sm:$0xf]
      %v1479 = vld [vmem:[%s1470 + $0x20] sm:$0xf]
      %v1480 = vld [vmem:[%s1470 + $0x24] sm:$0xf]
      %v1481 = vld [vmem:[%s1470 + $0x28] sm:$0xf]
      %v1482 = vld [vmem:[%s1470 + $0x2c] sm:$0xf]
      %v1483 = vld [vmem:[%s1470 + $0x30] sm:$0xf]
      %v1484 = vld [vmem:[%s1470 + $0x34] sm:$0xf]
      %v1485 = vld [vmem:[%s1470 + $0x38] sm:$0xf]
      %v1486 = vld [vmem:[%s1470 + $0x3c] sm:$0xf]
      %v1487 = vunpack.c.l.b16 %v1329
      %v1488 = vunpack.c.l.b16 %v1332
      %v1489 = vunpack.c.l.b16 %v1336
      %v1490 = vunpack.c.l.b16 %v1339
      %v1491 = vunpack.c.l.b16 %v1343
      %v1492 = vunpack.c.l.b16 %v1346
      %v1493 = vunpack.c.l.b16 %v1350
      %v1494 = vunpack.c.l.b16 %v1353
      %v1495 = vunpack.c.l.b16 %v1357
      %v1496 = vunpack.c.l.b16 %v1360
      %v1497 = vunpack.c.l.b16 %v1364
      %v1498 = vunpack.c.l.b16 %v1367
      %v1499 = vunpack.c.l.b16 %v1371
      %v1500 = vunpack.c.l.b16 %v1374
      %v1501 = vunpack.c.l.b16 %v1378
      %v1502 = vunpack.c.l.b16 %v1381
      %v1503 = vunpack.c.l.b16 %v1385
      %v1504 = vunpack.c.l.b16 %v1388
      %v1505 = vunpack.c.l.b16 %v1392
      %v1506 = vunpack.c.l.b16 %v1395
      %v1507 = vunpack.c.l.b16 %v1399
      %v1508 = vunpack.c.l.b16 %v1402
      %v1509 = vunpack.c.l.b16 %v1406
      %v1510 = vunpack.c.l.b16 %v1409
      %v1511 = vunpack.c.l.b16 %v1413
      %v1512 = vunpack.c.l.b16 %v1416
      %v1513 = vunpack.c.l.b16 %v1420
      %v1514 = vunpack.c.l.b16 %v1423
      %v1515 = vunpack.c.l.b16 %v1427
      %v1516 = vunpack.c.l.b16 %v1430
      %v1517 = vunpack.c.l.b16 %v1434
      %v1518 = vunpack.c.l.b16 %v1437
      %v1519 = vpack.c.b16 %v1488, %v1487
      %v1520 = vpack.c.b16 %v1490, %v1489
      %v1521 = vpack.c.b16 %v1492, %v1491
      %v1522 = vpack.c.b16 %v1494, %v1493
      %v1523 = vpack.c.b16 %v1496, %v1495
      %v1524 = vpack.c.b16 %v1498, %v1497
      %v1525 = vpack.c.b16 %v1500, %v1499
      %v1526 = vpack.c.b16 %v1502, %v1501
      %v1527 = vpack.c.b16 %v1504, %v1503
      %v1528 = vpack.c.b16 %v1506, %v1505
      %v1529 = vpack.c.b16 %v1508, %v1507
      %v1530 = vpack.c.b16 %v1510, %v1509
      %v1531 = vpack.c.b16 %v1512, %v1511
      %v1532 = vpack.c.b16 %v1514, %v1513
      %v1533 = vpack.c.b16 %v1516, %v1515
      %v1534 = vpack.c.b16 %v1518, %v1517
      %v1567 = vunpack.c.l.b16 %v1471
      %v1568 = vunpack.c.l.b16 %v1472
      %v1569 = vunpack.c.l.b16 %v1473
      %v1570 = vunpack.c.l.b16 %v1474
      %v1571 = vunpack.c.l.b16 %v1475
      %v1572 = vunpack.c.l.b16 %v1476
      %v1573 = vunpack.c.l.b16 %v1477
      %v1574 = vunpack.c.l.b16 %v1478
      %v1575 = vunpack.c.l.b16 %v1479
      %v1576 = vunpack.c.l.b16 %v1480
      %v1577 = vunpack.c.l.b16 %v1481
      %v1578 = vunpack.c.l.b16 %v1482
      %v1579 = vunpack.c.l.b16 %v1483
      %v1580 = vunpack.c.l.b16 %v1484
      %v1581 = vunpack.c.l.b16 %v1485
      %v1582 = vunpack.c.l.b16 %v1486
      %v1583 = vpack.c.b16 %v1568, %v1567
      %v1584 = vpack.c.b16 %v1570, %v1569
      %v1585 = vpack.c.b16 %v1572, %v1571
      %v1586 = vpack.c.b16 %v1574, %v1573
      %v1587 = vpack.c.b16 %v1576, %v1575
      %v1588 = vpack.c.b16 %v1578, %v1577
      %v1589 = vpack.c.b16 %v1580, %v1579
      %v1590 = vpack.c.b16 %v1582, %v1581
      %1599 = vmatpush.bf16.msra.mxu0 %v1590
      %1600 = vmatpush.bf16.msra.mxu0 %v1589
      %1601 = vmatpush.bf16.msra.mxu0 %v1588
      %1602 = vmatpush.bf16.msra.mxu0 %v1587
      %1603 = vmatpush.bf16.msra.mxu0 %v1586
      %1604 = vmatpush.bf16.msra.mxu0 %v1585
      %1605 = vmatpush.bf16.msra.mxu0 %v1584
      %1606 = vmatpush.bf16.msra.mxu0 %v1583
      %1607 = vmatmul.bf16.gmra.mxu0 %v1519
      %v1608 = vpop.f32.mrf.mxu0
      %v1609 = vadd.f32 0.0, %v1608
      %v1610 = vpop.f32.mrf.mxu0
      %v1611 = vadd.f32 0.0, %v1610
      %1612 = vmatmul.bf16.gmra.mxu0 %v1520
      %v1613 = vpop.f32.mrf.mxu0
      %v1614 = vadd.f32 0.0, %v1613
      %v1615 = vpop.f32.mrf.mxu0
      %v1616 = vadd.f32 0.0, %v1615
      %1617 = vmatmul.bf16.gmra.mxu0 %v1521
      %v1618 = vpop.f32.mrf.mxu0
      %v1619 = vadd.f32 0.0, %v1618
      %v1620 = vpop.f32.mrf.mxu0
      %v1621 = vadd.f32 0.0, %v1620
      %1622 = vmatmul.bf16.gmra.mxu0 %v1522
      %v1623 = vpop.f32.mrf.mxu0
      %v1624 = vadd.f32 0.0, %v1623
      %v1625 = vpop.f32.mrf.mxu0
      %v1626 = vadd.f32 0.0, %v1625
      %1627 = vmatmul.bf16.gmra.mxu0 %v1523
      %v1628 = vpop.f32.mrf.mxu0
      %v1629 = vadd.f32 0.0, %v1628
      %v1630 = vpop.f32.mrf.mxu0
      %v1631 = vadd.f32 0.0, %v1630
      %1632 = vmatmul.bf16.gmra.mxu0 %v1524
      %v1633 = vpop.f32.mrf.mxu0
      %v1634 = vadd.f32 0.0, %v1633
      %v1635 = vpop.f32.mrf.mxu0
      %v1636 = vadd.f32 0.0, %v1635
      %1637 = vmatmul.bf16.gmra.mxu0 %v1525
      %v1638 = vpop.f32.mrf.mxu0
      %v1639 = vadd.f32 0.0, %v1638
      %v1640 = vpop.f32.mrf.mxu0
      %v1641 = vadd.f32 0.0, %v1640
      %1642 = vmatmul.bf16.gmra.mxu0 %v1526
      %v1643 = vpop.f32.mrf.mxu0
      %v1644 = vadd.f32 0.0, %v1643
      %v1645 = vpop.f32.mrf.mxu0
      %v1646 = vadd.f32 0.0, %v1645
      %1647 = vmatmul.bf16.gmra.mxu0 %v1527
      %v1648 = vpop.f32.mrf.mxu0
      %v1649 = vadd.f32 0.0, %v1648
      %v1650 = vpop.f32.mrf.mxu0
      %v1651 = vadd.f32 0.0, %v1650
      %1652 = vmatmul.bf16.gmra.mxu0 %v1528
      %v1653 = vpop.f32.mrf.mxu0
      %v1654 = vadd.f32 0.0, %v1653
      %v1655 = vpop.f32.mrf.mxu0
      %v1656 = vadd.f32 0.0, %v1655
      %1657 = vmatmul.bf16.gmra.mxu0 %v1529
      %v1658 = vpop.f32.mrf.mxu0
      %v1659 = vadd.f32 0.0, %v1658
      %v1660 = vpop.f32.mrf.mxu0
      %v1661 = vadd.f32 0.0, %v1660
      %1662 = vmatmul.bf16.gmra.mxu0 %v1530
      %v1663 = vpop.f32.mrf.mxu0
      %v1664 = vadd.f32 0.0, %v1663
      %v1665 = vpop.f32.mrf.mxu0
      %v1666 = vadd.f32 0.0, %v1665
      %1667 = vmatmul.bf16.gmra.mxu0 %v1531
      %v1668 = vpop.f32.mrf.mxu0
      %v1669 = vadd.f32 0.0, %v1668
      %v1670 = vpop.f32.mrf.mxu0
      %v1671 = vadd.f32 0.0, %v1670
      %1672 = vmatmul.bf16.gmra.mxu0 %v1532
      %v1673 = vpop.f32.mrf.mxu0
      %v1674 = vadd.f32 0.0, %v1673
      %v1675 = vpop.f32.mrf.mxu0
      %v1676 = vadd.f32 0.0, %v1675
      %1677 = vmatmul.bf16.gmra.mxu0 %v1533
      %v1678 = vpop.f32.mrf.mxu0
      %v1679 = vadd.f32 0.0, %v1678
      %v1680 = vpop.f32.mrf.mxu0
      %v1681 = vadd.f32 0.0, %v1680
      %1682 = vmatmul.bf16.gmra.mxu0 %v1534
      %v1683 = vpop.f32.mrf.mxu0
      %v1684 = vadd.f32 0.0, %v1683
      %v1685 = vpop.f32.mrf.mxu0
      %v1686 = vadd.f32 0.0, %v1685
      %1687 = vdwg.mxu0
      %v1688 = vadd.f32 %v1438, %v1609
      %v1689 = vadd.f32 %v1439, %v1611
      %v1690 = vadd.f32 %v1440, %v1614
      %v1691 = vadd.f32 %v1441, %v1616
      %v1692 = vadd.f32 %v1442, %v1619
      %v1693 = vadd.f32 %v1443, %v1621
      %v1694 = vadd.f32 %v1444, %v1624
      %v1695 = vadd.f32 %v1445, %v1626
      %v1696 = vadd.f32 %v1446, %v1629
      %v1697 = vadd.f32 %v1447, %v1631
      %v1698 = vadd.f32 %v1448, %v1634
      %v1699 = vadd.f32 %v1449, %v1636
      %v1700 = vadd.f32 %v1450, %v1639
      %v1701 = vadd.f32 %v1451, %v1641
      %v1702 = vadd.f32 %v1452, %v1644
      %v1703 = vadd.f32 %v1453, %v1646
      %v1704 = vadd.f32 %v1454, %v1649
      %v1705 = vadd.f32 %v1455, %v1651
      %v1706 = vadd.f32 %v1456, %v1654
      %v1707 = vadd.f32 %v1457, %v1656
      %v1708 = vadd.f32 %v1458, %v1659
      %v1709 = vadd.f32 %v1459, %v1661
      %v1710 = vadd.f32 %v1460, %v1664
      %v1711 = vadd.f32 %v1461, %v1666
      %v1712 = vadd.f32 %v1462, %v1669
      %v1713 = vadd.f32 %v1463, %v1671
      %v1714 = vadd.f32 %v1464, %v1674
      %v1715 = vadd.f32 %v1465, %v1676
      %v1716 = vadd.f32 %v1466, %v1679
      %v1717 = vadd.f32 %v1467, %v1681
      %v1718 = vadd.f32 %v1468, %v1684
      %v1719 = vadd.f32 %v1469, %v1686
      %1720 = vst [vmem:[#allocation2] sm:$0xff] %v1688
      %1721 = vst [vmem:[#allocation2 + $0x8] sm:$0xff] %v1689
      %1722 = vst [vmem:[#allocation2 + $0x10] sm:$0xff] %v1690
      %1723 = vst [vmem:[#allocation2 + $0x18] sm:$0xff] %v1691
      %1724 = vst [vmem:[#allocation2 + $0x20] sm:$0xff] %v1692
      %1725 = vst [vmem:[#allocation2 + $0x28] sm:$0xff] %v1693
      %1726 = vst [vmem:[#allocation2 + $0x30] sm:$0xff] %v1694
      %1727 = vst [vmem:[#allocation2 + $0x38] sm:$0xff] %v1695
      %1728 = vst [vmem:[#allocation2 + $0x40] sm:$0xff] %v1696
      %1729 = vst [vmem:[#allocation2 + $0x48] sm:$0xff] %v1697
      %1730 = vst [vmem:[#allocation2 + $0x50] sm:$0xff] %v1698
      %1731 = vst [vmem:[#allocation2 + $0x58] sm:$0xff] %v1699
      %1732 = vst [vmem:[#allocation2 + $0x60] sm:$0xff] %v1700
      %1733 = vst [vmem:[#allocation2 + $0x68] sm:$0xff] %v1701
      %1734 = vst [vmem:[#allocation2 + $0x70] sm:$0xff] %v1702
      %1735 = vst [vmem:[#allocation2 + $0x78] sm:$0xff] %v1703
      %1736 = vst [vmem:[#allocation2 + $0x80] sm:$0xff] %v1704
      %1737 = vst [vmem:[#allocation2 + $0x88] sm:$0xff] %v1705
      %1738 = vst [vmem:[#allocation2 + $0x90] sm:$0xff] %v1706
      %1739 = vst [vmem:[#allocation2 + $0x98] sm:$0xff] %v1707
      %1740 = vst [vmem:[#allocation2 + $0xa0] sm:$0xff] %v1708
      %1741 = vst [vmem:[#allocation2 + $0xa8] sm:$0xff] %v1709
      %1742 = vst [vmem:[#allocation2 + $0xb0] sm:$0xff] %v1710
      %1743 = vst [vmem:[#allocation2 + $0xb8] sm:$0xff] %v1711
      %1744 = vst [vmem:[#allocation2 + $0xc0] sm:$0xff] %v1712
      %1745 = vst [vmem:[#allocation2 + $0xc8] sm:$0xff] %v1713
      %1746 = vst [vmem:[#allocation2 + $0xd0] sm:$0xff] %v1714
      %1747 = vst [vmem:[#allocation2 + $0xd8] sm:$0xff] %v1715
      %1748 = vst [vmem:[#allocation2 + $0xe0] sm:$0xff] %v1716
      %1749 = vst [vmem:[#allocation2 + $0xe8] sm:$0xff] %v1717
      %1750 = vst [vmem:[#allocation2 + $0xf0] sm:$0xff] %v1718
      %1751 = vst [vmem:[#allocation2 + $0xf8] sm:$0xff] %v1719
      %v1752 = vld [vmem:[#allocation2] sm:$0xff]
      %v1753 = vld [vmem:[#allocation2 + $0x8] sm:$0xff]
      %v1754 = vld [vmem:[#allocation2 + $0x10] sm:$0xff]
      %v1755 = vld [vmem:[#allocation2 + $0x18] sm:$0xff]
      %v1756 = vld [vmem:[#allocation2 + $0x20] sm:$0xff]
      %v1757 = vld [vmem:[#allocation2 + $0x28] sm:$0xff]
      %v1758 = vld [vmem:[#allocation2 + $0x30] sm:$0xff]
      %v1759 = vld [vmem:[#allocation2 + $0x38] sm:$0xff]
      %v1760 = vld [vmem:[#allocation2 + $0x40] sm:$0xff]
      %v1761 = vld [vmem:[#allocation2 + $0x48] sm:$0xff]
      %v1762 = vld [vmem:[#allocation2 + $0x50] sm:$0xff]
      %v1763 = vld [vmem:[#allocation2 + $0x58] sm:$0xff]
      %v1764 = vld [vmem:[#allocation2 + $0x60] sm:$0xff]
      %v1765 = vld [vmem:[#allocation2 + $0x68] sm:$0xff]
      %v1766 = vld [vmem:[#allocation2 + $0x70] sm:$0xff]
      %v1767 = vld [vmem:[#allocation2 + $0x78] sm:$0xff]
      %v1768 = vld [vmem:[#allocation2 + $0x80] sm:$0xff]
      %v1769 = vld [vmem:[#allocation2 + $0x88] sm:$0xff]
      %v1770 = vld [vmem:[#allocation2 + $0x90] sm:$0xff]
      %v1771 = vld [vmem:[#allocation2 + $0x98] sm:$0xff]
      %v1772 = vld [vmem:[#allocation2 + $0xa0] sm:$0xff]
      %v1773 = vld [vmem:[#allocation2 + $0xa8] sm:$0xff]
      %v1774 = vld [vmem:[#allocation2 + $0xb0] sm:$0xff]
      %v1775 = vld [vmem:[#allocation2 + $0xb8] sm:$0xff]
      %v1776 = vld [vmem:[#allocation2 + $0xc0] sm:$0xff]
      %v1777 = vld [vmem:[#allocation2 + $0xc8] sm:$0xff]
      %v1778 = vld [vmem:[#allocation2 + $0xd0] sm:$0xff]
      %v1779 = vld [vmem:[#allocation2 + $0xd8] sm:$0xff]
      %v1780 = vld [vmem:[#allocation2 + $0xe0] sm:$0xff]
      %v1781 = vld [vmem:[#allocation2 + $0xe8] sm:$0xff]
      %v1782 = vld [vmem:[#allocation2 + $0xf0] sm:$0xff]
      %v1783 = vld [vmem:[#allocation2 + $0xf8] sm:$0xff]
      %s1784 = scalar_lea.vmem %s1, 192
      %v1785 = vld [vmem:[%s1784] sm:$0xf]
      %v1786 = vld [vmem:[%s1784 + $0x4] sm:$0xf]
      %v1787 = vld [vmem:[%s1784 + $0x8] sm:$0xf]
      %v1788 = vld [vmem:[%s1784 + $0xc] sm:$0xf]
      %v1789 = vld [vmem:[%s1784 + $0x10] sm:$0xf]
      %v1790 = vld [vmem:[%s1784 + $0x14] sm:$0xf]
      %v1791 = vld [vmem:[%s1784 + $0x18] sm:$0xf]
      %v1792 = vld [vmem:[%s1784 + $0x1c] sm:$0xf]
      %v1793 = vld [vmem:[%s1784 + $0x20] sm:$0xf]
      %v1794 = vld [vmem:[%s1784 + $0x24] sm:$0xf]
      %v1795 = vld [vmem:[%s1784 + $0x28] sm:$0xf]
      %v1796 = vld [vmem:[%s1784 + $0x2c] sm:$0xf]
      %v1797 = vld [vmem:[%s1784 + $0x30] sm:$0xf]
      %v1798 = vld [vmem:[%s1784 + $0x34] sm:$0xf]
      %v1799 = vld [vmem:[%s1784 + $0x38] sm:$0xf]
      %v1800 = vld [vmem:[%s1784 + $0x3c] sm:$0xf]
      %v1803 = vunpack.c.l.b16 %v255
      %v1804 = vunpack.c.l.b16 %v256
      %v1805 = vpack.c.b16 %v1804, %v1803
      %v1823 = vunpack.c.l.b16 %v1785
      %v1824 = vunpack.c.l.b16 %v1786
      %v1825 = vunpack.c.l.b16 %v1787
      %v1826 = vunpack.c.l.b16 %v1788
      %v1827 = vunpack.c.l.b16 %v1789
      %v1828 = vunpack.c.l.b16 %v1790
      %v1829 = vunpack.c.l.b16 %v1791
      %v1830 = vunpack.c.l.b16 %v1792
      %v1831 = vunpack.c.l.b16 %v1793
      %v1832 = vunpack.c.l.b16 %v1794
      %v1833 = vunpack.c.l.b16 %v1795
      %v1834 = vunpack.c.l.b16 %v1796
      %v1835 = vunpack.c.l.b16 %v1797
      %v1836 = vunpack.c.l.b16 %v1798
      %v1837 = vunpack.c.l.b16 %v1799
      %v1838 = vunpack.c.l.b16 %v1800
      %v1839 = vpack.c.b16 %v1824, %v1823
      %v1840 = vpack.c.b16 %v1826, %v1825
      %v1841 = vpack.c.b16 %v1828, %v1827
      %v1842 = vpack.c.b16 %v1830, %v1829
      %v1843 = vpack.c.b16 %v1832, %v1831
      %v1844 = vpack.c.b16 %v1834, %v1833
      %v1845 = vpack.c.b16 %v1836, %v1835
      %v1846 = vpack.c.b16 %v1838, %v1837
      %1855 = vmatpush.bf16.msra.mxu0 %v1846
      %1856 = vmatpush.bf16.msra.mxu0 %v1845
      %1857 = vmatpush.bf16.msra.mxu0 %v1844
      %1858 = vmatpush.bf16.msra.mxu0 %v1843
      %1859 = vmatpush.bf16.msra.mxu0 %v1842
      %1860 = vmatpush.bf16.msra.mxu0 %v1841
      %1861 = vmatpush.bf16.msra.mxu0 %v1840
      %1862 = vmatpush.bf16.msra.mxu0 %v1839
      %1863 = vmatmul.bf16.gmra.mxu0 %v374
      %v1864 = vpop.f32.mrf.mxu0
      %v1865 = vadd.f32 0.0, %v1864
      %v1866 = vpop.f32.mrf.mxu0
      %v1867 = vadd.f32 0.0, %v1866
      %1868 = vmatmul.bf16.gmra.mxu0 %v375
      %v1869 = vpop.f32.mrf.mxu0
      %v1870 = vadd.f32 0.0, %v1869
      %v1871 = vpop.f32.mrf.mxu0
      %v1872 = vadd.f32 0.0, %v1871
      %1873 = vmatmul.bf16.gmra.mxu0 %v376
      %v1874 = vpop.f32.mrf.mxu0
      %v1875 = vadd.f32 0.0, %v1874
      %v1876 = vpop.f32.mrf.mxu0
      %v1877 = vadd.f32 0.0, %v1876
      %1878 = vmatmul.bf16.gmra.mxu0 %v377
      %v1879 = vpop.f32.mrf.mxu0
      %v1880 = vadd.f32 0.0, %v1879
      %v1881 = vpop.f32.mrf.mxu0
      %v1882 = vadd.f32 0.0, %v1881
      %1883 = vmatmul.bf16.gmra.mxu0 %v378
      %v1884 = vpop.f32.mrf.mxu0
      %v1885 = vadd.f32 0.0, %v1884
      %v1886 = vpop.f32.mrf.mxu0
      %v1887 = vadd.f32 0.0, %v1886
      %1888 = vmatmul.bf16.gmra.mxu0 %v379
      %v1889 = vpop.f32.mrf.mxu0
      %v1890 = vadd.f32 0.0, %v1889
      %v1891 = vpop.f32.mrf.mxu0
      %v1892 = vadd.f32 0.0, %v1891
      %1893 = vmatmul.bf16.gmra.mxu0 %v380
      %v1894 = vpop.f32.mrf.mxu0
      %v1895 = vadd.f32 0.0, %v1894
      %v1896 = vpop.f32.mrf.mxu0
      %v1897 = vadd.f32 0.0, %v1896
      %1898 = vmatmul.bf16.gmra.mxu0 %v381
      %v1899 = vpop.f32.mrf.mxu0
      %v1900 = vadd.f32 0.0, %v1899
      %v1901 = vpop.f32.mrf.mxu0
      %v1902 = vadd.f32 0.0, %v1901
      %1903 = vmatmul.bf16.gmra.mxu0 %v382
      %v1904 = vpop.f32.mrf.mxu0
      %v1905 = vadd.f32 0.0, %v1904
      %v1906 = vpop.f32.mrf.mxu0
      %v1907 = vadd.f32 0.0, %v1906
      %1908 = vmatmul.bf16.gmra.mxu0 %v383
      %v1909 = vpop.f32.mrf.mxu0
      %v1910 = vadd.f32 0.0, %v1909
      %v1911 = vpop.f32.mrf.mxu0
      %v1912 = vadd.f32 0.0, %v1911
      %1913 = vmatmul.bf16.gmra.mxu0 %v384
      %v1914 = vpop.f32.mrf.mxu0
      %v1915 = vadd.f32 0.0, %v1914
      %v1916 = vpop.f32.mrf.mxu0
      %v1917 = vadd.f32 0.0, %v1916
      %1918 = vmatmul.bf16.gmra.mxu0 %v385
      %v1919 = vpop.f32.mrf.mxu0
      %v1920 = vadd.f32 0.0, %v1919
      %v1921 = vpop.f32.mrf.mxu0
      %v1922 = vadd.f32 0.0, %v1921
      %1923 = vmatmul.bf16.gmra.mxu0 %v386
      %v1924 = vpop.f32.mrf.mxu0
      %v1925 = vadd.f32 0.0, %v1924
      %v1926 = vpop.f32.mrf.mxu0
      %v1927 = vadd.f32 0.0, %v1926
      %1928 = vmatmul.bf16.gmra.mxu0 %v387
      %v1929 = vpop.f32.mrf.mxu0
      %v1930 = vadd.f32 0.0, %v1929
      %v1931 = vpop.f32.mrf.mxu0
      %v1932 = vadd.f32 0.0, %v1931
      %1933 = vmatmul.bf16.gmra.mxu0 %v388
      %v1934 = vpop.f32.mrf.mxu0
      %v1935 = vadd.f32 0.0, %v1934
      %v1936 = vpop.f32.mrf.mxu0
      %v1937 = vadd.f32 0.0, %v1936
      %1938 = vmatmul.bf16.gmra.mxu0 %v1805
      %v1939 = vpop.f32.mrf.mxu0
      %v1940 = vadd.f32 0.0, %v1939
      %v1941 = vpop.f32.mrf.mxu0
      %v1942 = vadd.f32 0.0, %v1941
      %1943 = vdwg.mxu0
      %v1944 = vadd.f32 %v1752, %v1865
      %v1945 = vadd.f32 %v1753, %v1867
      %v1946 = vadd.f32 %v1754, %v1870
      %v1947 = vadd.f32 %v1755, %v1872
      %v1948 = vadd.f32 %v1756, %v1875
      %v1949 = vadd.f32 %v1757, %v1877
      %v1950 = vadd.f32 %v1758, %v1880
      %v1951 = vadd.f32 %v1759, %v1882
      %v1952 = vadd.f32 %v1760, %v1885
      %v1953 = vadd.f32 %v1761, %v1887
      %v1954 = vadd.f32 %v1762, %v1890
      %v1955 = vadd.f32 %v1763, %v1892
      %v1956 = vadd.f32 %v1764, %v1895
      %v1957 = vadd.f32 %v1765, %v1897
      %v1958 = vadd.f32 %v1766, %v1900
      %v1959 = vadd.f32 %v1767, %v1902
      %v1960 = vadd.f32 %v1768, %v1905
      %v1961 = vadd.f32 %v1769, %v1907
      %v1962 = vadd.f32 %v1770, %v1910
      %v1963 = vadd.f32 %v1771, %v1912
      %v1964 = vadd.f32 %v1772, %v1915
      %v1965 = vadd.f32 %v1773, %v1917
      %v1966 = vadd.f32 %v1774, %v1920
      %v1967 = vadd.f32 %v1775, %v1922
      %v1968 = vadd.f32 %v1776, %v1925
      %v1969 = vadd.f32 %v1777, %v1927
      %v1970 = vadd.f32 %v1778, %v1930
      %v1971 = vadd.f32 %v1779, %v1932
      %v1972 = vadd.f32 %v1780, %v1935
      %v1973 = vadd.f32 %v1781, %v1937
      %v1974 = vadd.f32 %v1782, %v1940
      %v1975 = vadd.f32 %v1783, %v1942
      %1976 = vst [vmem:[#allocation2] sm:$0xff] %v1944
      %1977 = vst [vmem:[#allocation2 + $0x8] sm:$0xff] %v1945
      %1978 = vst [vmem:[#allocation2 + $0x10] sm:$0xff] %v1946
      %1979 = vst [vmem:[#allocation2 + $0x18] sm:$0xff] %v1947
      %1980 = vst [vmem:[#allocation2 + $0x20] sm:$0xff] %v1948
      %1981 = vst [vmem:[#allocation2 + $0x28] sm:$0xff] %v1949
      %1982 = vst [vmem:[#allocation2 + $0x30] sm:$0xff] %v1950
      %1983 = vst [vmem:[#allocation2 + $0x38] sm:$0xff] %v1951
      %1984 = vst [vmem:[#allocation2 + $0x40] sm:$0xff] %v1952
      %1985 = vst [vmem:[#allocation2 + $0x48] sm:$0xff] %v1953
      %1986 = vst [vmem:[#allocation2 + $0x50] sm:$0xff] %v1954
      %1987 = vst [vmem:[#allocation2 + $0x58] sm:$0xff] %v1955
      %1988 = vst [vmem:[#allocation2 + $0x60] sm:$0xff] %v1956
      %1989 = vst [vmem:[#allocation2 + $0x68] sm:$0xff] %v1957
      %1990 = vst [vmem:[#allocation2 + $0x70] sm:$0xff] %v1958
      %1991 = vst [vmem:[#allocation2 + $0x78] sm:$0xff] %v1959
      %1992 = vst [vmem:[#allocation2 + $0x80] sm:$0xff] %v1960
      %1993 = vst [vmem:[#allocation2 + $0x88] sm:$0xff] %v1961
      %1994 = vst [vmem:[#allocation2 + $0x90] sm:$0xff] %v1962
      %1995 = vst [vmem:[#allocation2 + $0x98] sm:$0xff] %v1963
      %1996 = vst [vmem:[#allocation2 + $0xa0] sm:$0xff] %v1964
      %1997 = vst [vmem:[#allocation2 + $0xa8] sm:$0xff] %v1965
      %1998 = vst [vmem:[#allocation2 + $0xb0] sm:$0xff] %v1966
      %1999 = vst [vmem:[#allocation2 + $0xb8] sm:$0xff] %v1967
      %2000 = vst [vmem:[#allocation2 + $0xc0] sm:$0xff] %v1968
      %2001 = vst [vmem:[#allocation2 + $0xc8] sm:$0xff] %v1969
      %2002 = vst [vmem:[#allocation2 + $0xd0] sm:$0xff] %v1970
      %2003 = vst [vmem:[#allocation2 + $0xd8] sm:$0xff] %v1971
      %2004 = vst [vmem:[#allocation2 + $0xe0] sm:$0xff] %v1972
      %2005 = vst [vmem:[#allocation2 + $0xe8] sm:$0xff] %v1973
      %2006 = vst [vmem:[#allocation2 + $0xf0] sm:$0xff] %v1974
      %2007 = vst [vmem:[#allocation2 + $0xf8] sm:$0xff] %v1975
      %v2009 = vshrl.u32 %v255, 16
      %v2011 = vrot.slane %v2009, 4
      %v2012 = vshll.u32 %v255, 16
      %v2014 = vrot.slane %v2012, 5
      %v2015 = vor.u32 %v2011, %v2014
      %v2016 = vrot.slane %v2015, 4
      %v2018 = vshll.u32 %v256, 16
      %v2020 = vrot.slane %v2018, 5
      %v2021 = vsel %vm608, %v2016, %v2020
      %v2022 = vshrl.u32 %v256, 16
      %v2024 = vrot.slane %v2022, 4
      %v2025 = vor.u32 %v2024, %v2020
      %v2026 = vrot.slane %v2025, 4
      %v2028 = vshll.u32 %v257, 16
      %v2030 = vrot.slane %v2028, 5
      %v2031 = vsel %vm608, %v2026, %v2030
      %v2032 = vld [vmem:[#allocation2] sm:$0xff]
      %v2033 = vld [vmem:[#allocation2 + $0x8] sm:$0xff]
      %v2034 = vld [vmem:[#allocation2 + $0x10] sm:$0xff]
      %v2035 = vld [vmem:[#allocation2 + $0x18] sm:$0xff]
      %v2036 = vld [vmem:[#allocation2 + $0x20] sm:$0xff]
      %v2037 = vld [vmem:[#allocation2 + $0x28] sm:$0xff]
      %v2038 = vld [vmem:[#allocation2 + $0x30] sm:$0xff]
      %v2039 = vld [vmem:[#allocation2 + $0x38] sm:$0xff]
      %v2040 = vld [vmem:[#allocation2 + $0x40] sm:$0xff]
      %v2041 = vld [vmem:[#allocation2 + $0x48] sm:$0xff]
      %v2042 = vld [vmem:[#allocation2 + $0x50] sm:$0xff]
      %v2043 = vld [vmem:[#allocation2 + $0x58] sm:$0xff]
      %v2044 = vld [vmem:[#allocation2 + $0x60] sm:$0xff]
      %v2045 = vld [vmem:[#allocation2 + $0x68] sm:$0xff]
      %v2046 = vld [vmem:[#allocation2 + $0x70] sm:$0xff]
      %v2047 = vld [vmem:[#allocation2 + $0x78] sm:$0xff]
      %v2048 = vld [vmem:[#allocation2 + $0x80] sm:$0xff]
      %v2049 = vld [vmem:[#allocation2 + $0x88] sm:$0xff]
      %v2050 = vld [vmem:[#allocation2 + $0x90] sm:$0xff]
      %v2051 = vld [vmem:[#allocation2 + $0x98] sm:$0xff]
      %v2052 = vld [vmem:[#allocation2 + $0xa0] sm:$0xff]
      %v2053 = vld [vmem:[#allocation2 + $0xa8] sm:$0xff]
      %v2054 = vld [vmem:[#allocation2 + $0xb0] sm:$0xff]
      %v2055 = vld [vmem:[#allocation2 + $0xb8] sm:$0xff]
      %v2056 = vld [vmem:[#allocation2 + $0xc0] sm:$0xff]
      %v2057 = vld [vmem:[#allocation2 + $0xc8] sm:$0xff]
      %v2058 = vld [vmem:[#allocation2 + $0xd0] sm:$0xff]
      %v2059 = vld [vmem:[#allocation2 + $0xd8] sm:$0xff]
      %v2060 = vld [vmem:[#allocation2 + $0xe0] sm:$0xff]
      %v2061 = vld [vmem:[#allocation2 + $0xe8] sm:$0xff]
      %v2062 = vld [vmem:[#allocation2 + $0xf0] sm:$0xff]
      %v2063 = vld [vmem:[#allocation2 + $0xf8] sm:$0xff]
      %s2064 = scalar_lea.vmem %s1, 256
      %v2065 = vld [vmem:[%s2064] sm:$0xf]
      %v2066 = vld [vmem:[%s2064 + $0x4] sm:$0xf]
      %v2067 = vld [vmem:[%s2064 + $0x8] sm:$0xf]
      %v2068 = vld [vmem:[%s2064 + $0xc] sm:$0xf]
      %v2069 = vld [vmem:[%s2064 + $0x10] sm:$0xf]
      %v2070 = vld [vmem:[%s2064 + $0x14] sm:$0xf]
      %v2071 = vld [vmem:[%s2064 + $0x18] sm:$0xf]
      %v2072 = vld [vmem:[%s2064 + $0x1c] sm:$0xf]
      %v2073 = vld [vmem:[%s2064 + $0x20] sm:$0xf]
      %v2074 = vld [vmem:[%s2064 + $0x24] sm:$0xf]
      %v2075 = vld [vmem:[%s2064 + $0x28] sm:$0xf]
      %v2076 = vld [vmem:[%s2064 + $0x2c] sm:$0xf]
      %v2077 = vld [vmem:[%s2064 + $0x30] sm:$0xf]
      %v2078 = vld [vmem:[%s2064 + $0x34] sm:$0xf]
      %v2079 = vld [vmem:[%s2064 + $0x38] sm:$0xf]
      %v2080 = vld [vmem:[%s2064 + $0x3c] sm:$0xf]
      %v2081 = vunpack.c.l.b16 %v2021
      %v2082 = vunpack.c.l.b16 %v2031
      %v2083 = vpack.c.b16 %v2082, %v2081
      %v2101 = vunpack.c.l.b16 %v2065
      %v2102 = vunpack.c.l.b16 %v2066
      %v2103 = vunpack.c.l.b16 %v2067
      %v2104 = vunpack.c.l.b16 %v2068
      %v2105 = vunpack.c.l.b16 %v2069
      %v2106 = vunpack.c.l.b16 %v2070
      %v2107 = vunpack.c.l.b16 %v2071
      %v2108 = vunpack.c.l.b16 %v2072
      %v2109 = vunpack.c.l.b16 %v2073
      %v2110 = vunpack.c.l.b16 %v2074
      %v2111 = vunpack.c.l.b16 %v2075
      %v2112 = vunpack.c.l.b16 %v2076
      %v2113 = vunpack.c.l.b16 %v2077
      %v2114 = vunpack.c.l.b16 %v2078
      %v2115 = vunpack.c.l.b16 %v2079
      %v2116 = vunpack.c.l.b16 %v2080
      %v2117 = vpack.c.b16 %v2102, %v2101
      %v2118 = vpack.c.b16 %v2104, %v2103
      %v2119 = vpack.c.b16 %v2106, %v2105
      %v2120 = vpack.c.b16 %v2108, %v2107
      %v2121 = vpack.c.b16 %v2110, %v2109
      %v2122 = vpack.c.b16 %v2112, %v2111
      %v2123 = vpack.c.b16 %v2114, %v2113
      %v2124 = vpack.c.b16 %v2116, %v2115
      %2133 = vmatpush.bf16.msra.mxu0 %v2124
      %2134 = vmatpush.bf16.msra.mxu0 %v2123
      %2135 = vmatpush.bf16.msra.mxu0 %v2122
      %2136 = vmatpush.bf16.msra.mxu0 %v2121
      %2137 = vmatpush.bf16.msra.mxu0 %v2120
      %2138 = vmatpush.bf16.msra.mxu0 %v2119
      %2139 = vmatpush.bf16.msra.mxu0 %v2118
      %2140 = vmatpush.bf16.msra.mxu0 %v2117
      %2141 = vmatmul.bf16.gmra.mxu0 %v1075
      %v2142 = vpop.f32.mrf.mxu0
      %v2143 = vadd.f32 0.0, %v2142
      %v2144 = vpop.f32.mrf.mxu0
      %v2145 = vadd.f32 0.0, %v2144
      %2146 = vmatmul.bf16.gmra.mxu0 %v1076
      %v2147 = vpop.f32.mrf.mxu0
      %v2148 = vadd.f32 0.0, %v2147
      %v2149 = vpop.f32.mrf.mxu0
      %v2150 = vadd.f32 0.0, %v2149
      %2151 = vmatmul.bf16.gmra.mxu0 %v1077
      %v2152 = vpop.f32.mrf.mxu0
      %v2153 = vadd.f32 0.0, %v2152
      %v2154 = vpop.f32.mrf.mxu0
      %v2155 = vadd.f32 0.0, %v2154
      %2156 = vmatmul.bf16.gmra.mxu0 %v1078
      %v2157 = vpop.f32.mrf.mxu0
      %v2158 = vadd.f32 0.0, %v2157
      %v2159 = vpop.f32.mrf.mxu0
      %v2160 = vadd.f32 0.0, %v2159
      %2161 = vmatmul.bf16.gmra.mxu0 %v1079
      %v2162 = vpop.f32.mrf.mxu0
      %v2163 = vadd.f32 0.0, %v2162
      %v2164 = vpop.f32.mrf.mxu0
      %v2165 = vadd.f32 0.0, %v2164
      %2166 = vmatmul.bf16.gmra.mxu0 %v1080
      %v2167 = vpop.f32.mrf.mxu0
      %v2168 = vadd.f32 0.0, %v2167
      %v2169 = vpop.f32.mrf.mxu0
      %v2170 = vadd.f32 0.0, %v2169
      %2171 = vmatmul.bf16.gmra.mxu0 %v1081
      %v2172 = vpop.f32.mrf.mxu0
      %v2173 = vadd.f32 0.0, %v2172
      %v2174 = vpop.f32.mrf.mxu0
      %v2175 = vadd.f32 0.0, %v2174
      %2176 = vmatmul.bf16.gmra.mxu0 %v1082
      %v2177 = vpop.f32.mrf.mxu0
      %v2178 = vadd.f32 0.0, %v2177
      %v2179 = vpop.f32.mrf.mxu0
      %v2180 = vadd.f32 0.0, %v2179
      %2181 = vmatmul.bf16.gmra.mxu0 %v1083
      %v2182 = vpop.f32.mrf.mxu0
      %v2183 = vadd.f32 0.0, %v2182
      %v2184 = vpop.f32.mrf.mxu0
      %v2185 = vadd.f32 0.0, %v2184
      %2186 = vmatmul.bf16.gmra.mxu0 %v1084
      %v2187 = vpop.f32.mrf.mxu0
      %v2188 = vadd.f32 0.0, %v2187
      %v2189 = vpop.f32.mrf.mxu0
      %v2190 = vadd.f32 0.0, %v2189
      %2191 = vmatmul.bf16.gmra.mxu0 %v1085
      %v2192 = vpop.f32.mrf.mxu0
      %v2193 = vadd.f32 0.0, %v2192
      %v2194 = vpop.f32.mrf.mxu0
      %v2195 = vadd.f32 0.0, %v2194
      %2196 = vmatmul.bf16.gmra.mxu0 %v1086
      %v2197 = vpop.f32.mrf.mxu0
      %v2198 = vadd.f32 0.0, %v2197
      %v2199 = vpop.f32.mrf.mxu0
      %v2200 = vadd.f32 0.0, %v2199
      %2201 = vmatmul.bf16.gmra.mxu0 %v1087
      %v2202 = vpop.f32.mrf.mxu0
      %v2203 = vadd.f32 0.0, %v2202
      %v2204 = vpop.f32.mrf.mxu0
      %v2205 = vadd.f32 0.0, %v2204
      %2206 = vmatmul.bf16.gmra.mxu0 %v1088
      %v2207 = vpop.f32.mrf.mxu0
      %v2208 = vadd.f32 0.0, %v2207
      %v2209 = vpop.f32.mrf.mxu0
      %v2210 = vadd.f32 0.0, %v2209
      %2211 = vmatmul.bf16.gmra.mxu0 %v1089
      %v2212 = vpop.f32.mrf.mxu0
      %v2213 = vadd.f32 0.0, %v2212
      %v2214 = vpop.f32.mrf.mxu0
      %v2215 = vadd.f32 0.0, %v2214
      %2216 = vmatmul.bf16.gmra.mxu0 %v2083
      %v2217 = vpop.f32.mrf.mxu0
      %v2218 = vadd.f32 0.0, %v2217
      %v2219 = vpop.f32.mrf.mxu0
      %v2220 = vadd.f32 0.0, %v2219
      %2221 = vdwg.mxu0
      %v2222 = vadd.f32 %v2032, %v2143
      %v2223 = vadd.f32 %v2033, %v2145
      %v2224 = vadd.f32 %v2034, %v2148
      %v2225 = vadd.f32 %v2035, %v2150
      %v2226 = vadd.f32 %v2036, %v2153
      %v2227 = vadd.f32 %v2037, %v2155
      %v2228 = vadd.f32 %v2038, %v2158
      %v2229 = vadd.f32 %v2039, %v2160
      %v2230 = vadd.f32 %v2040, %v2163
      %v2231 = vadd.f32 %v2041, %v2165
      %v2232 = vadd.f32 %v2042, %v2168
      %v2233 = vadd.f32 %v2043, %v2170
      %v2234 = vadd.f32 %v2044, %v2173
      %v2235 = vadd.f32 %v2045, %v2175
      %v2236 = vadd.f32 %v2046, %v2178
      %v2237 = vadd.f32 %v2047, %v2180
      %v2238 = vadd.f32 %v2048, %v2183
      %v2239 = vadd.f32 %v2049, %v2185
      %v2240 = vadd.f32 %v2050, %v2188
      %v2241 = vadd.f32 %v2051, %v2190
      %v2242 = vadd.f32 %v2052, %v2193
      %v2243 = vadd.f32 %v2053, %v2195
      %v2244 = vadd.f32 %v2054, %v2198
      %v2245 = vadd.f32 %v2055, %v2200
      %v2246 = vadd.f32 %v2056, %v2203
      %v2247 = vadd.f32 %v2057, %v2205
      %v2248 = vadd.f32 %v2058, %v2208
      %v2249 = vadd.f32 %v2059, %v2210
      %v2250 = vadd.f32 %v2060, %v2213
      %v2251 = vadd.f32 %v2061, %v2215
      %v2252 = vadd.f32 %v2062, %v2218
      %v2253 = vadd.f32 %v2063, %v2220
      %2254 = vst [vmem:[#allocation2] sm:$0xff] %v2222
      %2255 = vst [vmem:[#allocation2 + $0x8] sm:$0xff] %v2223
      %2256 = vst [vmem:[#allocation2 + $0x10] sm:$0xff] %v2224
      %2257 = vst [vmem:[#allocation2 + $0x18] sm:$0xff] %v2225
      %2258 = vst [vmem:[#allocation2 + $0x20] sm:$0xff] %v2226
      %2259 = vst [vmem:[#allocation2 + $0x28] sm:$0xff] %v2227
      %2260 = vst [vmem:[#allocation2 + $0x30] sm:$0xff] %v2228
      %2261 = vst [vmem:[#allocation2 + $0x38] sm:$0xff] %v2229
      %2262 = vst [vmem:[#allocation2 + $0x40] sm:$0xff] %v2230
      %2263 = vst [vmem:[#allocation2 + $0x48] sm:$0xff] %v2231
      %2264 = vst [vmem:[#allocation2 + $0x50] sm:$0xff] %v2232
      %2265 = vst [vmem:[#allocation2 + $0x58] sm:$0xff] %v2233
      %2266 = vst [vmem:[#allocation2 + $0x60] sm:$0xff] %v2234
      %2267 = vst [vmem:[#allocation2 + $0x68] sm:$0xff] %v2235
      %2268 = vst [vmem:[#allocation2 + $0x70] sm:$0xff] %v2236
      %2269 = vst [vmem:[#allocation2 + $0x78] sm:$0xff] %v2237
      %2270 = vst [vmem:[#allocation2 + $0x80] sm:$0xff] %v2238
      %2271 = vst [vmem:[#allocation2 + $0x88] sm:$0xff] %v2239
      %2272 = vst [vmem:[#allocation2 + $0x90] sm:$0xff] %v2240
      %2273 = vst [vmem:[#allocation2 + $0x98] sm:$0xff] %v2241
      %2274 = vst [vmem:[#allocation2 + $0xa0] sm:$0xff] %v2242
      %2275 = vst [vmem:[#allocation2 + $0xa8] sm:$0xff] %v2243
      %2276 = vst [vmem:[#allocation2 + $0xb0] sm:$0xff] %v2244
      %2277 = vst [vmem:[#allocation2 + $0xb8] sm:$0xff] %v2245
      %2278 = vst [vmem:[#allocation2 + $0xc0] sm:$0xff] %v2246
      %2279 = vst [vmem:[#allocation2 + $0xc8] sm:$0xff] %v2247
      %2280 = vst [vmem:[#allocation2 + $0xd0] sm:$0xff] %v2248
      %2281 = vst [vmem:[#allocation2 + $0xd8] sm:$0xff] %v2249
      %2282 = vst [vmem:[#allocation2 + $0xe0] sm:$0xff] %v2250
      %2283 = vst [vmem:[#allocation2 + $0xe8] sm:$0xff] %v2251
      %2284 = vst [vmem:[#allocation2 + $0xf0] sm:$0xff] %v2252
      %2285 = vst [vmem:[#allocation2 + $0xf8] sm:$0xff] %v2253
      %v2287 = vrot.slane %v255, 5
      %v2288 = vrot.slane %v2287, 4
      %v2289 = vrot.slane %v256, 5
      %v2290 = vsel %vm1325, %v2288, %v2289
      %v2291 = vrot.slane %v2289, 4
      %v2292 = vrot.slane %v257, 5
      %v2293 = vsel %vm1325, %v2291, %v2292
      %v2294 = vld [vmem:[#allocation2] sm:$0xff]
      %v2295 = vld [vmem:[#allocation2 + $0x8] sm:$0xff]
      %v2296 = vld [vmem:[#allocation2 + $0x10] sm:$0xff]
      %v2297 = vld [vmem:[#allocation2 + $0x18] sm:$0xff]
      %v2298 = vld [vmem:[#allocation2 + $0x20] sm:$0xff]
      %v2299 = vld [vmem:[#allocation2 + $0x28] sm:$0xff]
      %v2300 = vld [vmem:[#allocation2 + $0x30] sm:$0xff]
      %v2301 = vld [vmem:[#allocation2 + $0x38] sm:$0xff]
      %v2302 = vld [vmem:[#allocation2 + $0x40] sm:$0xff]
      %v2303 = vld [vmem:[#allocation2 + $0x48] sm:$0xff]
      %v2304 = vld [vmem:[#allocation2 + $0x50] sm:$0xff]
      %v2305 = vld [vmem:[#allocation2 + $0x58] sm:$0xff]
      %v2306 = vld [vmem:[#allocation2 + $0x60] sm:$0xff]
      %v2307 = vld [vmem:[#allocation2 + $0x68] sm:$0xff]
      %v2308 = vld [vmem:[#allocation2 + $0x70] sm:$0xff]
      %v2309 = vld [vmem:[#allocation2 + $0x78] sm:$0xff]
      %v2310 = vld [vmem:[#allocation2 + $0x80] sm:$0xff]
      %v2311 = vld [vmem:[#allocation2 + $0x88] sm:$0xff]
      %v2312 = vld [vmem:[#allocation2 + $0x90] sm:$0xff]
      %v2313 = vld [vmem:[#allocation2 + $0x98] sm:$0xff]
      %v2314 = vld [vmem:[#allocation2 + $0xa0] sm:$0xff]
      %v2315 = vld [vmem:[#allocation2 + $0xa8] sm:$0xff]
      %v2316 = vld [vmem:[#allocation2 + $0xb0] sm:$0xff]
      %v2317 = vld [vmem:[#allocation2 + $0xb8] sm:$0xff]
      %v2318 = vld [vmem:[#allocation2 + $0xc0] sm:$0xff]
      %v2319 = vld [vmem:[#allocation2 + $0xc8] sm:$0xff]
      %v2320 = vld [vmem:[#allocation2 + $0xd0] sm:$0xff]
      %v2321 = vld [vmem:[#allocation2 + $0xd8] sm:$0xff]
      %v2322 = vld [vmem:[#allocation2 + $0xe0] sm:$0xff]
      %v2323 = vld [vmem:[#allocation2 + $0xe8] sm:$0xff]
      %v2324 = vld [vmem:[#allocation2 + $0xf0] sm:$0xff]
      %v2325 = vld [vmem:[#allocation2 + $0xf8] sm:$0xff]
      %s2326 = scalar_lea.vmem %s1, 320
      %v2327 = vld [vmem:[%s2326] sm:$0xf]
      %v2328 = vld [vmem:[%s2326 + $0x4] sm:$0xf]
      %v2329 = vld [vmem:[%s2326 + $0x8] sm:$0xf]
      %v2330 = vld [vmem:[%s2326 + $0xc] sm:$0xf]
      %v2331 = vld [vmem:[%s2326 + $0x10] sm:$0xf]
      %v2332 = vld [vmem:[%s2326 + $0x14] sm:$0xf]
      %v2333 = vld [vmem:[%s2326 + $0x18] sm:$0xf]
      %v2334 = vld [vmem:[%s2326 + $0x1c] sm:$0xf]
      %v2335 = vld [vmem:[%s2326 + $0x20] sm:$0xf]
      %v2336 = vld [vmem:[%s2326 + $0x24] sm:$0xf]
      %v2337 = vld [vmem:[%s2326 + $0x28] sm:$0xf]
      %v2338 = vld [vmem:[%s2326 + $0x2c] sm:$0xf]
      %v2339 = vld [vmem:[%s2326 + $0x30] sm:$0xf]
      %v2340 = vld [vmem:[%s2326 + $0x34] sm:$0xf]
      %v2341 = vld [vmem:[%s2326 + $0x38] sm:$0xf]
      %v2342 = vld [vmem:[%s2326 + $0x3c] sm:$0xf]
      %v2343 = vunpack.c.l.b16 %v2290
      %v2344 = vunpack.c.l.b16 %v2293
      %v2345 = vpack.c.b16 %v2344, %v2343
      %v2363 = vunpack.c.l.b16 %v2327
      %v2364 = vunpack.c.l.b16 %v2328
      %v2365 = vunpack.c.l.b16 %v2329
      %v2366 = vunpack.c.l.b16 %v2330
      %v2367 = vunpack.c.l.b16 %v2331
      %v2368 = vunpack.c.l.b16 %v2332
      %v2369 = vunpack.c.l.b16 %v2333
      %v2370 = vunpack.c.l.b16 %v2334
      %v2371 = vunpack.c.l.b16 %v2335
      %v2372 = vunpack.c.l.b16 %v2336
      %v2373 = vunpack.c.l.b16 %v2337
      %v2374 = vunpack.c.l.b16 %v2338
      %v2375 = vunpack.c.l.b16 %v2339
      %v2376 = vunpack.c.l.b16 %v2340
      %v2377 = vunpack.c.l.b16 %v2341
      %v2378 = vunpack.c.l.b16 %v2342
      %v2379 = vpack.c.b16 %v2364, %v2363
      %v2380 = vpack.c.b16 %v2366, %v2365
      %v2381 = vpack.c.b16 %v2368, %v2367
      %v2382 = vpack.c.b16 %v2370, %v2369
      %v2383 = vpack.c.b16 %v2372, %v2371
      %v2384 = vpack.c.b16 %v2374, %v2373
      %v2385 = vpack.c.b16 %v2376, %v2375
      %v2386 = vpack.c.b16 %v2378, %v2377
      %2395 = vmatpush.bf16.msra.mxu0 %v2386
      %2396 = vmatpush.bf16.msra.mxu0 %v2385
      %2397 = vmatpush.bf16.msra.mxu0 %v2384
      %2398 = vmatpush.bf16.msra.mxu0 %v2383
      %2399 = vmatpush.bf16.msra.mxu0 %v2382
      %2400 = vmatpush.bf16.msra.mxu0 %v2381
      %2401 = vmatpush.bf16.msra.mxu0 %v2380
      %2402 = vmatpush.bf16.msra.mxu0 %v2379
      %2403 = vmatmul.bf16.gmra.mxu0 %v1520
      %v2404 = vpop.f32.mrf.mxu0
      %v2405 = vadd.f32 0.0, %v2404
      %v2406 = vpop.f32.mrf.mxu0
      %v2407 = vadd.f32 0.0, %v2406
      %2408 = vmatmul.bf16.gmra.mxu0 %v1521
      %v2409 = vpop.f32.mrf.mxu0
      %v2410 = vadd.f32 0.0, %v2409
      %v2411 = vpop.f32.mrf.mxu0
      %v2412 = vadd.f32 0.0, %v2411
      %2413 = vmatmul.bf16.gmra.mxu0 %v1522
      %v2414 = vpop.f32.mrf.mxu0
      %v2415 = vadd.f32 0.0, %v2414
      %v2416 = vpop.f32.mrf.mxu0
      %v2417 = vadd.f32 0.0, %v2416
      %2418 = vmatmul.bf16.gmra.mxu0 %v1523
      %v2419 = vpop.f32.mrf.mxu0
      %v2420 = vadd.f32 0.0, %v2419
      %v2421 = vpop.f32.mrf.mxu0
      %v2422 = vadd.f32 0.0, %v2421
      %2423 = vmatmul.bf16.gmra.mxu0 %v1524
      %v2424 = vpop.f32.mrf.mxu0
      %v2425 = vadd.f32 0.0, %v2424
      %v2426 = vpop.f32.mrf.mxu0
      %v2427 = vadd.f32 0.0, %v2426
      %2428 = vmatmul.bf16.gmra.mxu0 %v1525
      %v2429 = vpop.f32.mrf.mxu0
      %v2430 = vadd.f32 0.0, %v2429
      %v2431 = vpop.f32.mrf.mxu0
      %v2432 = vadd.f32 0.0, %v2431
      %2433 = vmatmul.bf16.gmra.mxu0 %v1526
      %v2434 = vpop.f32.mrf.mxu0
      %v2435 = vadd.f32 0.0, %v2434
      %v2436 = vpop.f32.mrf.mxu0
      %v2437 = vadd.f32 0.0, %v2436
      %2438 = vmatmul.bf16.gmra.mxu0 %v1527
      %v2439 = vpop.f32.mrf.mxu0
      %v2440 = vadd.f32 0.0, %v2439
      %v2441 = vpop.f32.mrf.mxu0
      %v2442 = vadd.f32 0.0, %v2441
      %2443 = vmatmul.bf16.gmra.mxu0 %v1528
      %v2444 = vpop.f32.mrf.mxu0
      %v2445 = vadd.f32 0.0, %v2444
      %v2446 = vpop.f32.mrf.mxu0
      %v2447 = vadd.f32 0.0, %v2446
      %2448 = vmatmul.bf16.gmra.mxu0 %v1529
      %v2449 = vpop.f32.mrf.mxu0
      %v2450 = vadd.f32 0.0, %v2449
      %v2451 = vpop.f32.mrf.mxu0
      %v2452 = vadd.f32 0.0, %v2451
      %2453 = vmatmul.bf16.gmra.mxu0 %v1530
      %v2454 = vpop.f32.mrf.mxu0
      %v2455 = vadd.f32 0.0, %v2454
      %v2456 = vpop.f32.mrf.mxu0
      %v2457 = vadd.f32 0.0, %v2456
      %2458 = vmatmul.bf16.gmra.mxu0 %v1531
      %v2459 = vpop.f32.mrf.mxu0
      %v2460 = vadd.f32 0.0, %v2459
      %v2461 = vpop.f32.mrf.mxu0
      %v2462 = vadd.f32 0.0, %v2461
      %2463 = vmatmul.bf16.gmra.mxu0 %v1532
      %v2464 = vpop.f32.mrf.mxu0
      %v2465 = vadd.f32 0.0, %v2464
      %v2466 = vpop.f32.mrf.mxu0
      %v2467 = vadd.f32 0.0, %v2466
      %2468 = vmatmul.bf16.gmra.mxu0 %v1533
      %v2469 = vpop.f32.mrf.mxu0
      %v2470 = vadd.f32 0.0, %v2469
      %v2471 = vpop.f32.mrf.mxu0
      %v2472 = vadd.f32 0.0, %v2471
      %2473 = vmatmul.bf16.gmra.mxu0 %v1534
      %v2474 = vpop.f32.mrf.mxu0
      %v2475 = vadd.f32 0.0, %v2474
      %v2476 = vpop.f32.mrf.mxu0
      %v2477 = vadd.f32 0.0, %v2476
      %2478 = vmatmul.bf16.gmra.mxu0 %v2345
      %v2479 = vpop.f32.mrf.mxu0
      %v2480 = vadd.f32 0.0, %v2479
      %v2481 = vpop.f32.mrf.mxu0
      %v2482 = vadd.f32 0.0, %v2481
      %2483 = vdwg.mxu0
      %v2484 = vadd.f32 %v2294, %v2405
      %v2485 = vadd.f32 %v2295, %v2407
      %v2486 = vadd.f32 %v2296, %v2410
      %v2487 = vadd.f32 %v2297, %v2412
      %v2488 = vadd.f32 %v2298, %v2415
      %v2489 = vadd.f32 %v2299, %v2417
      %v2490 = vadd.f32 %v2300, %v2420
      %v2491 = vadd.f32 %v2301, %v2422
      %v2492 = vadd.f32 %v2302, %v2425
      %v2493 = vadd.f32 %v2303, %v2427
      %v2494 = vadd.f32 %v2304, %v2430
      %v2495 = vadd.f32 %v2305, %v2432
      %v2496 = vadd.f32 %v2306, %v2435
      %v2497 = vadd.f32 %v2307, %v2437
      %v2498 = vadd.f32 %v2308, %v2440
      %v2499 = vadd.f32 %v2309, %v2442
      %v2500 = vadd.f32 %v2310, %v2445
      %v2501 = vadd.f32 %v2311, %v2447
      %v2502 = vadd.f32 %v2312, %v2450
      %v2503 = vadd.f32 %v2313, %v2452
      %v2504 = vadd.f32 %v2314, %v2455
      %v2505 = vadd.f32 %v2315, %v2457
      %v2506 = vadd.f32 %v2316, %v2460
      %v2507 = vadd.f32 %v2317, %v2462
      %v2508 = vadd.f32 %v2318, %v2465
      %v2509 = vadd.f32 %v2319, %v2467
      %v2510 = vadd.f32 %v2320, %v2470
      %v2511 = vadd.f32 %v2321, %v2472
      %v2512 = vadd.f32 %v2322, %v2475
      %v2513 = vadd.f32 %v2323, %v2477
      %v2514 = vadd.f32 %v2324, %v2480
      %v2515 = vadd.f32 %v2325, %v2482
      %2516 = vst [vmem:[#allocation2] sm:$0xff] %v2484
      %2517 = vst [vmem:[#allocation2 + $0x8] sm:$0xff] %v2485
      %2518 = vst [vmem:[#allocation2 + $0x10] sm:$0xff] %v2486
      %2519 = vst [vmem:[#allocation2 + $0x18] sm:$0xff] %v2487
      %2520 = vst [vmem:[#allocation2 + $0x20] sm:$0xff] %v2488
      %2521 = vst [vmem:[#allocation2 + $0x28] sm:$0xff] %v2489
      %2522 = vst [vmem:[#allocation2 + $0x30] sm:$0xff] %v2490
      %2523 = vst [vmem:[#allocation2 + $0x38] sm:$0xff] %v2491
      %2524 = vst [vmem:[#allocation2 + $0x40] sm:$0xff] %v2492
      %2525 = vst [vmem:[#allocation2 + $0x48] sm:$0xff] %v2493
      %2526 = vst [vmem:[#allocation2 + $0x50] sm:$0xff] %v2494
      %2527 = vst [vmem:[#allocation2 + $0x58] sm:$0xff] %v2495
      %2528 = vst [vmem:[#allocation2 + $0x60] sm:$0xff] %v2496
      %2529 = vst [vmem:[#allocation2 + $0x68] sm:$0xff] %v2497
      %2530 = vst [vmem:[#allocation2 + $0x70] sm:$0xff] %v2498
      %2531 = vst [vmem:[#allocation2 + $0x78] sm:$0xff] %v2499
      %2532 = vst [vmem:[#allocation2 + $0x80] sm:$0xff] %v2500
      %2533 = vst [vmem:[#allocation2 + $0x88] sm:$0xff] %v2501
      %2534 = vst [vmem:[#allocation2 + $0x90] sm:$0xff] %v2502
      %2535 = vst [vmem:[#allocation2 + $0x98] sm:$0xff] %v2503
      %2536 = vst [vmem:[#allocation2 + $0xa0] sm:$0xff] %v2504
      %2537 = vst [vmem:[#allocation2 + $0xa8] sm:$0xff] %v2505
      %2538 = vst [vmem:[#allocation2 + $0xb0] sm:$0xff] %v2506
      %2539 = vst [vmem:[#allocation2 + $0xb8] sm:$0xff] %v2507
      %2540 = vst [vmem:[#allocation2 + $0xc0] sm:$0xff] %v2508
      %2541 = vst [vmem:[#allocation2 + $0xc8] sm:$0xff] %v2509
      %2542 = vst [vmem:[#allocation2 + $0xd0] sm:$0xff] %v2510
      %2543 = vst [vmem:[#allocation2 + $0xd8] sm:$0xff] %v2511
      %2544 = vst [vmem:[#allocation2 + $0xe0] sm:$0xff] %v2512
      %2545 = vst [vmem:[#allocation2 + $0xe8] sm:$0xff] %v2513
      %2546 = vst [vmem:[#allocation2 + $0xf0] sm:$0xff] %v2514
      %2547 = vst [vmem:[#allocation2 + $0xf8] sm:$0xff] %v2515
      %v2548 = vld [vmem:[#allocation2] sm:$0xff]
      %v2549 = vld [vmem:[#allocation2 + $0x8] sm:$0xff]
      %v2550 = vld [vmem:[#allocation2 + $0x10] sm:$0xff]
      %v2551 = vld [vmem:[#allocation2 + $0x18] sm:$0xff]
      %v2552 = vld [vmem:[#allocation2 + $0x20] sm:$0xff]
      %v2553 = vld [vmem:[#allocation2 + $0x28] sm:$0xff]
      %v2554 = vld [vmem:[#allocation2 + $0x30] sm:$0xff]
      %v2555 = vld [vmem:[#allocation2 + $0x38] sm:$0xff]
      %v2556 = vld [vmem:[#allocation2 + $0x40] sm:$0xff]
      %v2557 = vld [vmem:[#allocation2 + $0x48] sm:$0xff]
      %v2558 = vld [vmem:[#allocation2 + $0x50] sm:$0xff]
      %v2559 = vld [vmem:[#allocation2 + $0x58] sm:$0xff]
      %v2560 = vld [vmem:[#allocation2 + $0x60] sm:$0xff]
      %v2561 = vld [vmem:[#allocation2 + $0x68] sm:$0xff]
      %v2562 = vld [vmem:[#allocation2 + $0x70] sm:$0xff]
      %v2563 = vld [vmem:[#allocation2 + $0x78] sm:$0xff]
      %v2564 = vld [vmem:[#allocation2 + $0x80] sm:$0xff]
      %v2565 = vld [vmem:[#allocation2 + $0x88] sm:$0xff]
      %v2566 = vld [vmem:[#allocation2 + $0x90] sm:$0xff]
      %v2567 = vld [vmem:[#allocation2 + $0x98] sm:$0xff]
      %v2568 = vld [vmem:[#allocation2 + $0xa0] sm:$0xff]
      %v2569 = vld [vmem:[#allocation2 + $0xa8] sm:$0xff]
      %v2570 = vld [vmem:[#allocation2 + $0xb0] sm:$0xff]
      %v2571 = vld [vmem:[#allocation2 + $0xb8] sm:$0xff]
      %v2572 = vld [vmem:[#allocation2 + $0xc0] sm:$0xff]
      %v2573 = vld [vmem:[#allocation2 + $0xc8] sm:$0xff]
      %v2574 = vld [vmem:[#allocation2 + $0xd0] sm:$0xff]
      %v2575 = vld [vmem:[#allocation2 + $0xd8] sm:$0xff]
      %v2576 = vld [vmem:[#allocation2 + $0xe0] sm:$0xff]
      %v2577 = vld [vmem:[#allocation2 + $0xe8] sm:$0xff]
      %v2578 = vld [vmem:[#allocation2 + $0xf0] sm:$0xff]
      %v2579 = vld [vmem:[#allocation2 + $0xf8] sm:$0xff]
      %s2580 = scalar_lea.vmem %s1, 384
      %v2581 = vld [vmem:[%s2580] sm:$0xf]
      %v2582 = vld [vmem:[%s2580 + $0x4] sm:$0xf]
      %v2583 = vld [vmem:[%s2580 + $0x8] sm:$0xf]
      %v2584 = vld [vmem:[%s2580 + $0xc] sm:$0xf]
      %v2585 = vld [vmem:[%s2580 + $0x10] sm:$0xf]
      %v2586 = vld [vmem:[%s2580 + $0x14] sm:$0xf]
      %v2587 = vld [vmem:[%s2580 + $0x18] sm:$0xf]
      %v2588 = vld [vmem:[%s2580 + $0x1c] sm:$0xf]
      %v2589 = vld [vmem:[%s2580 + $0x20] sm:$0xf]
      %v2590 = vld [vmem:[%s2580 + $0x24] sm:$0xf]
      %v2591 = vld [vmem:[%s2580 + $0x28] sm:$0xf]
      %v2592 = vld [vmem:[%s2580 + $0x2c] sm:$0xf]
      %v2593 = vld [vmem:[%s2580 + $0x30] sm:$0xf]
      %v2594 = vld [vmem:[%s2580 + $0x34] sm:$0xf]
      %v2595 = vld [vmem:[%s2580 + $0x38] sm:$0xf]
      %v2596 = vld [vmem:[%s2580 + $0x3c] sm:$0xf]
      %v2599 = vunpack.c.l.b16 %v258
      %v2600 = vunpack.c.l.b16 %v259
      %v2601 = vpack.c.b16 %v2600, %v2599
      %v2619 = vunpack.c.l.b16 %v2581
      %v2620 = vunpack.c.l.b16 %v2582
      %v2621 = vunpack.c.l.b16 %v2583
      %v2622 = vunpack.c.l.b16 %v2584
      %v2623 = vunpack.c.l.b16 %v2585
      %v2624 = vunpack.c.l.b16 %v2586
      %v2625 = vunpack.c.l.b16 %v2587
      %v2626 = vunpack.c.l.b16 %v2588
      %v2627 = vunpack.c.l.b16 %v2589
      %v2628 = vunpack.c.l.b16 %v2590
      %v2629 = vunpack.c.l.b16 %v2591
      %v2630 = vunpack.c.l.b16 %v2592
      %v2631 = vunpack.c.l.b16 %v2593
      %v2632 = vunpack.c.l.b16 %v2594
      %v2633 = vunpack.c.l.b16 %v2595
      %v2634 = vunpack.c.l.b16 %v2596
      %v2635 = vpack.c.b16 %v2620, %v2619
      %v2636 = vpack.c.b16 %v2622, %v2621
      %v2637 = vpack.c.b16 %v2624, %v2623
      %v2638 = vpack.c.b16 %v2626, %v2625
      %v2639 = vpack.c.b16 %v2628, %v2627
      %v2640 = vpack.c.b16 %v2630, %v2629
      %v2641 = vpack.c.b16 %v2632, %v2631
      %v2642 = vpack.c.b16 %v2634, %v2633
      %2651 = vmatpush.bf16.msra.mxu0 %v2642
      %2652 = vmatpush.bf16.msra.mxu0 %v2641
      %2653 = vmatpush.bf16.msra.mxu0 %v2640
      %2654 = vmatpush.bf16.msra.mxu0 %v2639
      %2655 = vmatpush.bf16.msra.mxu0 %v2638
      %2656 = vmatpush.bf16.msra.mxu0 %v2637
      %2657 = vmatpush.bf16.msra.mxu0 %v2636
      %2658 = vmatpush.bf16.msra.mxu0 %v2635
      %2659 = vmatmul.bf16.gmra.mxu0 %v375
      %v2660 = vpop.f32.mrf.mxu0
      %v2661 = vadd.f32 0.0, %v2660
      %v2662 = vpop.f32.mrf.mxu0
      %v2663 = vadd.f32 0.0, %v2662
      %2664 = vmatmul.bf16.gmra.mxu0 %v376
      %v2665 = vpop.f32.mrf.mxu0
      %v2666 = vadd.f32 0.0, %v2665
      %v2667 = vpop.f32.mrf.mxu0
      %v2668 = vadd.f32 0.0, %v2667
      %2669 = vmatmul.bf16.gmra.mxu0 %v377
      %v2670 = vpop.f32.mrf.mxu0
      %v2671 = vadd.f32 0.0, %v2670
      %v2672 = vpop.f32.mrf.mxu0
      %v2673 = vadd.f32 0.0, %v2672
      %2674 = vmatmul.bf16.gmra.mxu0 %v378
      %v2675 = vpop.f32.mrf.mxu0
      %v2676 = vadd.f32 0.0, %v2675
      %v2677 = vpop.f32.mrf.mxu0
      %v2678 = vadd.f32 0.0, %v2677
      %2679 = vmatmul.bf16.gmra.mxu0 %v379
      %v2680 = vpop.f32.mrf.mxu0
      %v2681 = vadd.f32 0.0, %v2680
      %v2682 = vpop.f32.mrf.mxu0
      %v2683 = vadd.f32 0.0, %v2682
      %2684 = vmatmul.bf16.gmra.mxu0 %v380
      %v2685 = vpop.f32.mrf.mxu0
      %v2686 = vadd.f32 0.0, %v2685
      %v2687 = vpop.f32.mrf.mxu0
      %v2688 = vadd.f32 0.0, %v2687
      %2689 = vmatmul.bf16.gmra.mxu0 %v381
      %v2690 = vpop.f32.mrf.mxu0
      %v2691 = vadd.f32 0.0, %v2690
      %v2692 = vpop.f32.mrf.mxu0
      %v2693 = vadd.f32 0.0, %v2692
      %2694 = vmatmul.bf16.gmra.mxu0 %v382
      %v2695 = vpop.f32.mrf.mxu0
      %v2696 = vadd.f32 0.0, %v2695
      %v2697 = vpop.f32.mrf.mxu0
      %v2698 = vadd.f32 0.0, %v2697
      %2699 = vmatmul.bf16.gmra.mxu0 %v383
      %v2700 = vpop.f32.mrf.mxu0
      %v2701 = vadd.f32 0.0, %v2700
      %v2702 = vpop.f32.mrf.mxu0
      %v2703 = vadd.f32 0.0, %v2702
      %2704 = vmatmul.bf16.gmra.mxu0 %v384
      %v2705 = vpop.f32.mrf.mxu0
      %v2706 = vadd.f32 0.0, %v2705
      %v2707 = vpop.f32.mrf.mxu0
      %v2708 = vadd.f32 0.0, %v2707
      %2709 = vmatmul.bf16.gmra.mxu0 %v385
      %v2710 = vpop.f32.mrf.mxu0
      %v2711 = vadd.f32 0.0, %v2710
      %v2712 = vpop.f32.mrf.mxu0
      %v2713 = vadd.f32 0.0, %v2712
      %2714 = vmatmul.bf16.gmra.mxu0 %v386
      %v2715 = vpop.f32.mrf.mxu0
      %v2716 = vadd.f32 0.0, %v2715
      %v2717 = vpop.f32.mrf.mxu0
      %v2718 = vadd.f32 0.0, %v2717
      %2719 = vmatmul.bf16.gmra.mxu0 %v387
      %v2720 = vpop.f32.mrf.mxu0
      %v2721 = vadd.f32 0.0, %v2720
      %v2722 = vpop.f32.mrf.mxu0
      %v2723 = vadd.f32 0.0, %v2722
      %2724 = vmatmul.bf16.gmra.mxu0 %v388
      %v2725 = vpop.f32.mrf.mxu0
      %v2726 = vadd.f32 0.0, %v2725
      %v2727 = vpop.f32.mrf.mxu0
      %v2728 = vadd.f32 0.0, %v2727
      %2729 = vmatmul.bf16.gmra.mxu0 %v1805
      %v2730 = vpop.f32.mrf.mxu0
      %v2731 = vadd.f32 0.0, %v2730
      %v2732 = vpop.f32.mrf.mxu0
      %v2733 = vadd.f32 0.0, %v2732
      %2734 = vmatmul.bf16.gmra.mxu0 %v2601
      %v2735 = vpop.f32.mrf.mxu0
      %v2736 = vadd.f32 0.0, %v2735
      %v2737 = vpop.f32.mrf.mxu0
      %v2738 = vadd.f32 0.0, %v2737
      %2739 = vdwg.mxu0
      %v2740 = vadd.f32 %v2548, %v2661
      %v2741 = vadd.f32 %v2549, %v2663
      %v2742 = vadd.f32 %v2550, %v2666
      %v2743 = vadd.f32 %v2551, %v2668
      %v2744 = vadd.f32 %v2552, %v2671
      %v2745 = vadd.f32 %v2553, %v2673
      %v2746 = vadd.f32 %v2554, %v2676
      %v2747 = vadd.f32 %v2555, %v2678
      %v2748 = vadd.f32 %v2556, %v2681
      %v2749 = vadd.f32 %v2557, %v2683
      %v2750 = vadd.f32 %v2558, %v2686
      %v2751 = vadd.f32 %v2559, %v2688
      %v2752 = vadd.f32 %v2560, %v2691
      %v2753 = vadd.f32 %v2561, %v2693
      %v2754 = vadd.f32 %v2562, %v2696
      %v2755 = vadd.f32 %v2563, %v2698
      %v2756 = vadd.f32 %v2564, %v2701
      %v2757 = vadd.f32 %v2565, %v2703
      %v2758 = vadd.f32 %v2566, %v2706
      %v2759 = vadd.f32 %v2567, %v2708
      %v2760 = vadd.f32 %v2568, %v2711
      %v2761 = vadd.f32 %v2569, %v2713
      %v2762 = vadd.f32 %v2570, %v2716
      %v2763 = vadd.f32 %v2571, %v2718
      %v2764 = vadd.f32 %v2572, %v2721
      %v2765 = vadd.f32 %v2573, %v2723
      %v2766 = vadd.f32 %v2574, %v2726
      %v2767 = vadd.f32 %v2575, %v2728
      %v2768 = vadd.f32 %v2576, %v2731
      %v2769 = vadd.f32 %v2577, %v2733
      %v2770 = vadd.f32 %v2578, %v2736
      %v2771 = vadd.f32 %v2579, %v2738
      %2772 = vst [vmem:[#allocation2] sm:$0xff] %v2740
      %2773 = vst [vmem:[#allocation2 + $0x8] sm:$0xff] %v2741
      %2774 = vst [vmem:[#allocation2 + $0x10] sm:$0xff] %v2742
      %2775 = vst [vmem:[#allocation2 + $0x18] sm:$0xff] %v2743
      %2776 = vst [vmem:[#allocation2 + $0x20] sm:$0xff] %v2744
      %2777 = vst [vmem:[#allocation2 + $0x28] sm:$0xff] %v2745
      %2778 = vst [vmem:[#allocation2 + $0x30] sm:$0xff] %v2746
      %2779 = vst [vmem:[#allocation2 + $0x38] sm:$0xff] %v2747
      %2780 = vst [vmem:[#allocation2 + $0x40] sm:$0xff] %v2748
      %2781 = vst [vmem:[#allocation2 + $0x48] sm:$0xff] %v2749
      %2782 = vst [vmem:[#allocation2 + $0x50] sm:$0xff] %v2750
      %2783 = vst [vmem:[#allocation2 + $0x58] sm:$0xff] %v2751
      %2784 = vst [vmem:[#allocation2 + $0x60] sm:$0xff] %v2752
      %2785 = vst [vmem:[#allocation2 + $0x68] sm:$0xff] %v2753
      %2786 = vst [vmem:[#allocation2 + $0x70] sm:$0xff] %v2754
      %2787 = vst [vmem:[#allocation2 + $0x78] sm:$0xff] %v2755
      %2788 = vst [vmem:[#allocation2 + $0x80] sm:$0xff] %v2756
      %2789 = vst [vmem:[#allocation2 + $0x88] sm:$0xff] %v2757
      %2790 = vst [vmem:[#allocation2 + $0x90] sm:$0xff] %v2758
      %2791 = vst [vmem:[#allocation2 + $0x98] sm:$0xff] %v2759
      %2792 = vst [vmem:[#allocation2 + $0xa0] sm:$0xff] %v2760
      %2793 = vst [vmem:[#allocation2 + $0xa8] sm:$0xff] %v2761
      %2794 = vst [vmem:[#allocation2 + $0xb0] sm:$0xff] %v2762
      %2795 = vst [vmem:[#allocation2 + $0xb8] sm:$0xff] %v2763
      %2796 = vst [vmem:[#allocation2 + $0xc0] sm:$0xff] %v2764
      %2797 = vst [vmem:[#allocation2 + $0xc8] sm:$0xff] %v2765
      %2798 = vst [vmem:[#allocation2 + $0xd0] sm:$0xff] %v2766
      %2799 = vst [vmem:[#allocation2 + $0xd8] sm:$0xff] %v2767
      %2800 = vst [vmem:[#allocation2 + $0xe0] sm:$0xff] %v2768
      %2801 = vst [vmem:[#allocation2 + $0xe8] sm:$0xff] %v2769
      %2802 = vst [vmem:[#allocation2 + $0xf0] sm:$0xff] %v2770
      %2803 = vst [vmem:[#allocation2 + $0xf8] sm:$0xff] %v2771
      %v2805 = vshrl.u32 %v258, 16
      %v2807 = vrot.slane %v2805, 4
      %v2808 = vshll.u32 %v258, 16
      %v2810 = vrot.slane %v2808, 5
      %v2811 = vor.u32 %v2807, %v2810
      %v2812 = vrot.slane %v2811, 4
      %v2814 = vshll.u32 %v259, 16
      %v2816 = vrot.slane %v2814, 5
      %v2817 = vsel %vm608, %v2812, %v2816
      %v2818 = vshrl.u32 %v259, 16
      %v2820 = vrot.slane %v2818, 4
      %v2821 = vor.u32 %v2820, %v2816
      %v2822 = vrot.slane %v2821, 4
      %v2824 = vshll.u32 %v260, 16
      %v2826 = vrot.slane %v2824, 5
      %v2827 = vsel %vm608, %v2822, %v2826
      %v2828 = vld [vmem:[#allocation2] sm:$0xff]
      %v2829 = vld [vmem:[#allocation2 + $0x8] sm:$0xff]
      %v2830 = vld [vmem:[#allocation2 + $0x10] sm:$0xff]
      %v2831 = vld [vmem:[#allocation2 + $0x18] sm:$0xff]
      %v2832 = vld [vmem:[#allocation2 + $0x20] sm:$0xff]
      %v2833 = vld [vmem:[#allocation2 + $0x28] sm:$0xff]
      %v2834 = vld [vmem:[#allocation2 + $0x30] sm:$0xff]
      %v2835 = vld [vmem:[#allocation2 + $0x38] sm:$0xff]
      %v2836 = vld [vmem:[#allocation2 + $0x40] sm:$0xff]
      %v2837 = vld [vmem:[#allocation2 + $0x48] sm:$0xff]
      %v2838 = vld [vmem:[#allocation2 + $0x50] sm:$0xff]
      %v2839 = vld [vmem:[#allocation2 + $0x58] sm:$0xff]
      %v2840 = vld [vmem:[#allocation2 + $0x60] sm:$0xff]
      %v2841 = vld [vmem:[#allocation2 + $0x68] sm:$0xff]
      %v2842 = vld [vmem:[#allocation2 + $0x70] sm:$0xff]
      %v2843 = vld [vmem:[#allocation2 + $0x78] sm:$0xff]
      %v2844 = vld [vmem:[#allocation2 + $0x80] sm:$0xff]
      %v2845 = vld [vmem:[#allocation2 + $0x88] sm:$0xff]
      %v2846 = vld [vmem:[#allocation2 + $0x90] sm:$0xff]
      %v2847 = vld [vmem:[#allocation2 + $0x98] sm:$0xff]
      %v2848 = vld [vmem:[#allocation2 + $0xa0] sm:$0xff]
      %v2849 = vld [vmem:[#allocation2 + $0xa8] sm:$0xff]
      %v2850 = vld [vmem:[#allocation2 + $0xb0] sm:$0xff]
      %v2851 = vld [vmem:[#allocation2 + $0xb8] sm:$0xff]
      %v2852 = vld [vmem:[#allocation2 + $0xc0] sm:$0xff]
      %v2853 = vld [vmem:[#allocation2 + $0xc8] sm:$0xff]
      %v2854 = vld [vmem:[#allocation2 + $0xd0] sm:$0xff]
      %v2855 = vld [vmem:[#allocation2 + $0xd8] sm:$0xff]
      %v2856 = vld [vmem:[#allocation2 + $0xe0] sm:$0xff]
      %v2857 = vld [vmem:[#allocation2 + $0xe8] sm:$0xff]
      %v2858 = vld [vmem:[#allocation2 + $0xf0] sm:$0xff]
      %v2859 = vld [vmem:[#allocation2 + $0xf8] sm:$0xff]
      %s2860 = scalar_lea.vmem %s1, 448
      %v2861 = vld [vmem:[%s2860] sm:$0xf]
      %v2862 = vld [vmem:[%s2860 + $0x4] sm:$0xf]
      %v2863 = vld [vmem:[%s2860 + $0x8] sm:$0xf]
      %v2864 = vld [vmem:[%s2860 + $0xc] sm:$0xf]
      %v2865 = vld [vmem:[%s2860 + $0x10] sm:$0xf]
      %v2866 = vld [vmem:[%s2860 + $0x14] sm:$0xf]
      %v2867 = vld [vmem:[%s2860 + $0x18] sm:$0xf]
      %v2868 = vld [vmem:[%s2860 + $0x1c] sm:$0xf]
      %v2869 = vld [vmem:[%s2860 + $0x20] sm:$0xf]
      %v2870 = vld [vmem:[%s2860 + $0x24] sm:$0xf]
      %v2871 = vld [vmem:[%s2860 + $0x28] sm:$0xf]
      %v2872 = vld [vmem:[%s2860 + $0x2c] sm:$0xf]
      %v2873 = vld [vmem:[%s2860 + $0x30] sm:$0xf]
      %v2874 = vld [vmem:[%s2860 + $0x34] sm:$0xf]
      %v2875 = vld [vmem:[%s2860 + $0x38] sm:$0xf]
      %v2876 = vld [vmem:[%s2860 + $0x3c] sm:$0xf]
      %v2877 = vunpack.c.l.b16 %v2817
      %v2878 = vunpack.c.l.b16 %v2827
      %v2879 = vpack.c.b16 %v2878, %v2877
      %v2897 = vunpack.c.l.b16 %v2861
      %v2898 = vunpack.c.l.b16 %v2862
      %v2899 = vunpack.c.l.b16 %v2863
      %v2900 = vunpack.c.l.b16 %v2864
      %v2901 = vunpack.c.l.b16 %v2865
      %v2902 = vunpack.c.l.b16 %v2866
      %v2903 = vunpack.c.l.b16 %v2867
      %v2904 = vunpack.c.l.b16 %v2868
      %v2905 = vunpack.c.l.b16 %v2869
      %v2906 = vunpack.c.l.b16 %v2870
      %v2907 = vunpack.c.l.b16 %v2871
      %v2908 = vunpack.c.l.b16 %v2872
      %v2909 = vunpack.c.l.b16 %v2873
      %v2910 = vunpack.c.l.b16 %v2874
      %v2911 = vunpack.c.l.b16 %v2875
      %v2912 = vunpack.c.l.b16 %v2876
      %v2913 = vpack.c.b16 %v2898, %v2897
      %v2914 = vpack.c.b16 %v2900, %v2899
      %v2915 = vpack.c.b16 %v2902, %v2901
      %v2916 = vpack.c.b16 %v2904, %v2903
      %v2917 = vpack.c.b16 %v2906, %v2905
      %v2918 = vpack.c.b16 %v2908, %v2907
      %v2919 = vpack.c.b16 %v2910, %v2909
      %v2920 = vpack.c.b16 %v2912, %v2911
      %2929 = vmatpush.bf16.msra.mxu0 %v2920
      %2930 = vmatpush.bf16.msra.mxu0 %v2919
      %2931 = vmatpush.bf16.msra.mxu0 %v2918
      %2932 = vmatpush.bf16.msra.mxu0 %v2917
      %2933 = vmatpush.bf16.msra.mxu0 %v2916
      %2934 = vmatpush.bf16.msra.mxu0 %v2915
      %2935 = vmatpush.bf16.msra.mxu0 %v2914
      %2936 = vmatpush.bf16.msra.mxu0 %v2913
      %2937 = vmatmul.bf16.gmra.mxu0 %v1076
      %v2938 = vpop.f32.mrf.mxu0
      %v2939 = vadd.f32 0.0, %v2938
      %v2940 = vpop.f32.mrf.mxu0
      %v2941 = vadd.f32 0.0, %v2940
      %2942 = vmatmul.bf16.gmra.mxu0 %v1077
      %v2943 = vpop.f32.mrf.mxu0
      %v2944 = vadd.f32 0.0, %v2943
      %v2945 = vpop.f32.mrf.mxu0
      %v2946 = vadd.f32 0.0, %v2945
      %2947 = vmatmul.bf16.gmra.mxu0 %v1078
      %v2948 = vpop.f32.mrf.mxu0
      %v2949 = vadd.f32 0.0, %v2948
      %v2950 = vpop.f32.mrf.mxu0
      %v2951 = vadd.f32 0.0, %v2950
      %2952 = vmatmul.bf16.gmra.mxu0 %v1079
      %v2953 = vpop.f32.mrf.mxu0
      %v2954 = vadd.f32 0.0, %v2953
      %v2955 = vpop.f32.mrf.mxu0
      %v2956 = vadd.f32 0.0, %v2955
      %2957 = vmatmul.bf16.gmra.mxu0 %v1080
      %v2958 = vpop.f32.mrf.mxu0
      %v2959 = vadd.f32 0.0, %v2958
      %v2960 = vpop.f32.mrf.mxu0
      %v2961 = vadd.f32 0.0, %v2960
      %2962 = vmatmul.bf16.gmra.mxu0 %v1081
      %v2963 = vpop.f32.mrf.mxu0
      %v2964 = vadd.f32 0.0, %v2963
      %v2965 = vpop.f32.mrf.mxu0
      %v2966 = vadd.f32 0.0, %v2965
      %2967 = vmatmul.bf16.gmra.mxu0 %v1082
      %v2968 = vpop.f32.mrf.mxu0
      %v2969 = vadd.f32 0.0, %v2968
      %v2970 = vpop.f32.mrf.mxu0
      %v2971 = vadd.f32 0.0, %v2970
      %2972 = vmatmul.bf16.gmra.mxu0 %v1083
      %v2973 = vpop.f32.mrf.mxu0
      %v2974 = vadd.f32 0.0, %v2973
      %v2975 = vpop.f32.mrf.mxu0
      %v2976 = vadd.f32 0.0, %v2975
      %2977 = vmatmul.bf16.gmra.mxu0 %v1084
      %v2978 = vpop.f32.mrf.mxu0
      %v2979 = vadd.f32 0.0, %v2978
      %v2980 = vpop.f32.mrf.mxu0
      %v2981 = vadd.f32 0.0, %v2980
      %2982 = vmatmul.bf16.gmra.mxu0 %v1085
      %v2983 = vpop.f32.mrf.mxu0
      %v2984 = vadd.f32 0.0, %v2983
      %v2985 = vpop.f32.mrf.mxu0
      %v2986 = vadd.f32 0.0, %v2985
      %2987 = vmatmul.bf16.gmra.mxu0 %v1086
      %v2988 = vpop.f32.mrf.mxu0
      %v2989 = vadd.f32 0.0, %v2988
      %v2990 = vpop.f32.mrf.mxu0
      %v2991 = vadd.f32 0.0, %v2990
      %2992 = vmatmul.bf16.gmra.mxu0 %v1087
      %v2993 = vpop.f32.mrf.mxu0
      %v2994 = vadd.f32 0.0, %v2993
      %v2995 = vpop.f32.mrf.mxu0
      %v2996 = vadd.f32 0.0, %v2995
      %2997 = vmatmul.bf16.gmra.mxu0 %v1088
      %v2998 = vpop.f32.mrf.mxu0
      %v2999 = vadd.f32 0.0, %v2998
      %v3000 = vpop.f32.mrf.mxu0
      %v3001 = vadd.f32 0.0, %v3000
      %3002 = vmatmul.bf16.gmra.mxu0 %v1089
      %v3003 = vpop.f32.mrf.mxu0
      %v3004 = vadd.f32 0.0, %v3003
      %v3005 = vpop.f32.mrf.mxu0
      %v3006 = vadd.f32 0.0, %v3005
      %3007 = vmatmul.bf16.gmra.mxu0 %v2083
      %v3008 = vpop.f32.mrf.mxu0
      %v3009 = vadd.f32 0.0, %v3008
      %v3010 = vpop.f32.mrf.mxu0
      %v3011 = vadd.f32 0.0, %v3010
      %3012 = vmatmul.bf16.gmra.mxu0 %v2879
      %v3013 = vpop.f32.mrf.mxu0
      %v3014 = vadd.f32 0.0, %v3013
      %v3015 = vpop.f32.mrf.mxu0
      %v3016 = vadd.f32 0.0, %v3015
      %3017 = vdwg.mxu0
      %v3018 = vadd.f32 %v2828, %v2939
      %v3019 = vadd.f32 %v2829, %v2941
      %v3020 = vadd.f32 %v2830, %v2944
      %v3021 = vadd.f32 %v2831, %v2946
      %v3022 = vadd.f32 %v2832, %v2949
      %v3023 = vadd.f32 %v2833, %v2951
      %v3024 = vadd.f32 %v2834, %v2954
      %v3025 = vadd.f32 %v2835, %v2956
      %v3026 = vadd.f32 %v2836, %v2959
      %v3027 = vadd.f32 %v2837, %v2961
      %v3028 = vadd.f32 %v2838, %v2964
      %v3029 = vadd.f32 %v2839, %v2966
      %v3030 = vadd.f32 %v2840, %v2969
      %v3031 = vadd.f32 %v2841, %v2971
      %v3032 = vadd.f32 %v2842, %v2974
      %v3033 = vadd.f32 %v2843, %v2976
      %v3034 = vadd.f32 %v2844, %v2979
      %v3035 = vadd.f32 %v2845, %v2981
      %v3036 = vadd.f32 %v2846, %v2984
      %v3037 = vadd.f32 %v2847, %v2986
      %v3038 = vadd.f32 %v2848, %v2989
      %v3039 = vadd.f32 %v2849, %v2991
      %v3040 = vadd.f32 %v2850, %v2994
      %v3041 = vadd.f32 %v2851, %v2996
      %v3042 = vadd.f32 %v2852, %v2999
      %v3043 = vadd.f32 %v2853, %v3001
      %v3044 = vadd.f32 %v2854, %v3004
      %v3045 = vadd.f32 %v2855, %v3006
      %v3046 = vadd.f32 %v2856, %v3009
      %v3047 = vadd.f32 %v2857, %v3011
      %v3048 = vadd.f32 %v2858, %v3014
      %v3049 = vadd.f32 %v2859, %v3016
      %3050 = vst [vmem:[#allocation2] sm:$0xff] %v3018
      %3051 = vst [vmem:[#allocation2 + $0x8] sm:$0xff] %v3019
      %3052 = vst [vmem:[#allocation2 + $0x10] sm:$0xff] %v3020
      %3053 = vst [vmem:[#allocation2 + $0x18] sm:$0xff] %v3021
      %3054 = vst [vmem:[#allocation2 + $0x20] sm:$0xff] %v3022
      %3055 = vst [vmem:[#allocation2 + $0x28] sm:$0xff] %v3023
      %3056 = vst [vmem:[#allocation2 + $0x30] sm:$0xff] %v3024
      %3057 = vst [vmem:[#allocation2 + $0x38] sm:$0xff] %v3025
      %3058 = vst [vmem:[#allocation2 + $0x40] sm:$0xff] %v3026
      %3059 = vst [vmem:[#allocation2 + $0x48] sm:$0xff] %v3027
      %3060 = vst [vmem:[#allocation2 + $0x50] sm:$0xff] %v3028
      %3061 = vst [vmem:[#allocation2 + $0x58] sm:$0xff] %v3029
      %3062 = vst [vmem:[#allocation2 + $0x60] sm:$0xff] %v3030
      %3063 = vst [vmem:[#allocation2 + $0x68] sm:$0xff] %v3031
      %3064 = vst [vmem:[#allocation2 + $0x70] sm:$0xff] %v3032
      %3065 = vst [vmem:[#allocation2 + $0x78] sm:$0xff] %v3033
      %3066 = vst [vmem:[#allocation2 + $0x80] sm:$0xff] %v3034
      %3067 = vst [vmem:[#allocation2 + $0x88] sm:$0xff] %v3035
      %3068 = vst [vmem:[#allocation2 + $0x90] sm:$0xff] %v3036
      %3069 = vst [vmem:[#allocation2 + $0x98] sm:$0xff] %v3037
      %3070 = vst [vmem:[#allocation2 + $0xa0] sm:$0xff] %v3038
      %3071 = vst [vmem:[#allocation2 + $0xa8] sm:$0xff] %v3039
      %3072 = vst [vmem:[#allocation2 + $0xb0] sm:$0xff] %v3040
      %3073 = vst [vmem:[#allocation2 + $0xb8] sm:$0xff] %v3041
      %3074 = vst [vmem:[#allocation2 + $0xc0] sm:$0xff] %v3042
      %3075 = vst [vmem:[#allocation2 + $0xc8] sm:$0xff] %v3043
      %3076 = vst [vmem:[#allocation2 + $0xd0] sm:$0xff] %v3044
      %3077 = vst [vmem:[#allocation2 + $0xd8] sm:$0xff] %v3045
      %3078 = vst [vmem:[#allocation2 + $0xe0] sm:$0xff] %v3046
      %3079 = vst [vmem:[#allocation2 + $0xe8] sm:$0xff] %v3047
      %3080 = vst [vmem:[#allocation2 + $0xf0] sm:$0xff] %v3048
      %3081 = vst [vmem:[#allocation2 + $0xf8] sm:$0xff] %v3049
      %v3083 = vrot.slane %v258, 5
      %v3084 = vrot.slane %v3083, 4
      %v3085 = vrot.slane %v259, 5
      %v3086 = vsel %vm1325, %v3084, %v3085
      %v3087 = vrot.slane %v3085, 4
      %v3088 = vrot.slane %v260, 5
      %v3089 = vsel %vm1325, %v3087, %v3088
      %v3090 = vld [vmem:[#allocation2] sm:$0xff]
      %v3091 = vld [vmem:[#allocation2 + $0x8] sm:$0xff]
      %v3092 = vld [vmem:[#allocation2 + $0x10] sm:$0xff]
      %v3093 = vld [vmem:[#allocation2 + $0x18] sm:$0xff]
      %v3094 = vld [vmem:[#allocation2 + $0x20] sm:$0xff]
      %v3095 = vld [vmem:[#allocation2 + $0x28] sm:$0xff]
      %v3096 = vld [vmem:[#allocation2 + $0x30] sm:$0xff]
      %v3097 = vld [vmem:[#allocation2 + $0x38] sm:$0xff]
      %v3098 = vld [vmem:[#allocation2 + $0x40] sm:$0xff]
      %v3099 = vld [vmem:[#allocation2 + $0x48] sm:$0xff]
      %v3100 = vld [vmem:[#allocation2 + $0x50] sm:$0xff]
      %v3101 = vld [vmem:[#allocation2 + $0x58] sm:$0xff]
      %v3102 = vld [vmem:[#allocation2 + $0x60] sm:$0xff]
      %v3103 = vld [vmem:[#allocation2 + $0x68] sm:$0xff]
      %v3104 = vld [vmem:[#allocation2 + $0x70] sm:$0xff]
      %v3105 = vld [vmem:[#allocation2 + $0x78] sm:$0xff]
      %v3106 = vld [vmem:[#allocation2 + $0x80] sm:$0xff]
      %v3107 = vld [vmem:[#allocation2 + $0x88] sm:$0xff]
      %v3108 = vld [vmem:[#allocation2 + $0x90] sm:$0xff]
      %v3109 = vld [vmem:[#allocation2 + $0x98] sm:$0xff]
      %v3110 = vld [vmem:[#allocation2 + $0xa0] sm:$0xff]
      %v3111 = vld [vmem:[#allocation2 + $0xa8] sm:$0xff]
      %v3112 = vld [vmem:[#allocation2 + $0xb0] sm:$0xff]
      %v3113 = vld [vmem:[#allocation2 + $0xb8] sm:$0xff]
      %v3114 = vld [vmem:[#allocation2 + $0xc0] sm:$0xff]
      %v3115 = vld [vmem:[#allocation2 + $0xc8] sm:$0xff]
      %v3116 = vld [vmem:[#allocation2 + $0xd0] sm:$0xff]
      %v3117 = vld [vmem:[#allocation2 + $0xd8] sm:$0xff]
      %v3118 = vld [vmem:[#allocation2 + $0xe0] sm:$0xff]
      %v3119 = vld [vmem:[#allocation2 + $0xe8] sm:$0xff]
      %v3120 = vld [vmem:[#allocation2 + $0xf0] sm:$0xff]
      %v3121 = vld [vmem:[#allocation2 + $0xf8] sm:$0xff]
      %s3122 = scalar_lea.vmem %s1, 512
      %v3123 = vld [vmem:[%s3122] sm:$0xf]
      %v3124 = vld [vmem:[%s3122 + $0x4] sm:$0xf]
      %v3125 = vld [vmem:[%s3122 + $0x8] sm:$0xf]
      %v3126 = vld [vmem:[%s3122 + $0xc] sm:$0xf]
      %v3127 = vld [vmem:[%s3122 + $0x10] sm:$0xf]
      %v3128 = vld [vmem:[%s3122 + $0x14] sm:$0xf]
      %v3129 = vld [vmem:[%s3122 + $0x18] sm:$0xf]
      %v3130 = vld [vmem:[%s3122 + $0x1c] sm:$0xf]
      %v3131 = vld [vmem:[%s3122 + $0x20] sm:$0xf]
      %v3132 = vld [vmem:[%s3122 + $0x24] sm:$0xf]
      %v3133 = vld [vmem:[%s3122 + $0x28] sm:$0xf]
      %v3134 = vld [vmem:[%s3122 + $0x2c] sm:$0xf]
      %v3135 = vld [vmem:[%s3122 + $0x30] sm:$0xf]
      %v3136 = vld [vmem:[%s3122 + $0x34] sm:$0xf]
      %v3137 = vld [vmem:[%s3122 + $0x38] sm:$0xf]
      %v3138 = vld [vmem:[%s3122 + $0x3c] sm:$0xf]
      %v3139 = vunpack.c.l.b16 %v3086
      %v3140 = vunpack.c.l.b16 %v3089
      %v3141 = vpack.c.b16 %v3140, %v3139
      %v3159 = vunpack.c.l.b16 %v3123
      %v3160 = vunpack.c.l.b16 %v3124
      %v3161 = vunpack.c.l.b16 %v3125
      %v3162 = vunpack.c.l.b16 %v3126
      %v3163 = vunpack.c.l.b16 %v3127
      %v3164 = vunpack.c.l.b16 %v3128
      %v3165 = vunpack.c.l.b16 %v3129
      %v3166 = vunpack.c.l.b16 %v3130
      %v3167 = vunpack.c.l.b16 %v3131
      %v3168 = vunpack.c.l.b16 %v3132
      %v3169 = vunpack.c.l.b16 %v3133
      %v3170 = vunpack.c.l.b16 %v3134
      %v3171 = vunpack.c.l.b16 %v3135
      %v3172 = vunpack.c.l.b16 %v3136
      %v3173 = vunpack.c.l.b16 %v3137
      %v3174 = vunpack.c.l.b16 %v3138
      %v3175 = vpack.c.b16 %v3160, %v3159
      %v3176 = vpack.c.b16 %v3162, %v3161
      %v3177 = vpack.c.b16 %v3164, %v3163
      %v3178 = vpack.c.b16 %v3166, %v3165
      %v3179 = vpack.c.b16 %v3168, %v3167
      %v3180 = vpack.c.b16 %v3170, %v3169
      %v3181 = vpack.c.b16 %v3172, %v3171
      %v3182 = vpack.c.b16 %v3174, %v3173
      %3191 = vmatpush.bf16.msra.mxu0 %v3182
      %3192 = vmatpush.bf16.msra.mxu0 %v3181
      %3193 = vmatpush.bf16.msra.mxu0 %v3180
      %3194 = vmatpush.bf16.msra.mxu0 %v3179
      %3195 = vmatpush.bf16.msra.mxu0 %v3178
      %3196 = vmatpush.bf16.msra.mxu0 %v3177
      %3197 = vmatpush.bf16.msra.mxu0 %v3176
      %3198 = vmatpush.bf16.msra.mxu0 %v3175
      %3199 = vmatmul.bf16.gmra.mxu0 %v1521
      %v3200 = vpop.f32.mrf.mxu0
      %v3201 = vadd.f32 0.0, %v3200
      %v3202 = vpop.f32.mrf.mxu0
      %v3203 = vadd.f32 0.0, %v3202
      %3204 = vmatmul.bf16.gmra.mxu0 %v1522
      %v3205 = vpop.f32.mrf.mxu0
      %v3206 = vadd.f32 0.0, %v3205
      %v3207 = vpop.f32.mrf.mxu0
      %v3208 = vadd.f32 0.0, %v3207
      %3209 = vmatmul.bf16.gmra.mxu0 %v1523
      %v3210 = vpop.f32.mrf.mxu0
      %v3211 = vadd.f32 0.0, %v3210
      %v3212 = vpop.f32.mrf.mxu0
      %v3213 = vadd.f32 0.0, %v3212
      %3214 = vmatmul.bf16.gmra.mxu0 %v1524
      %v3215 = vpop.f32.mrf.mxu0
      %v3216 = vadd.f32 0.0, %v3215
      %v3217 = vpop.f32.mrf.mxu0
      %v3218 = vadd.f32 0.0, %v3217
      %3219 = vmatmul.bf16.gmra.mxu0 %v1525
      %v3220 = vpop.f32.mrf.mxu0
      %v3221 = vadd.f32 0.0, %v3220
      %v3222 = vpop.f32.mrf.mxu0
      %v3223 = vadd.f32 0.0, %v3222
      %3224 = vmatmul.bf16.gmra.mxu0 %v1526
      %v3225 = vpop.f32.mrf.mxu0
      %v3226 = vadd.f32 0.0, %v3225
      %v3227 = vpop.f32.mrf.mxu0
      %v3228 = vadd.f32 0.0, %v3227
      %3229 = vmatmul.bf16.gmra.mxu0 %v1527
      %v3230 = vpop.f32.mrf.mxu0
      %v3231 = vadd.f32 0.0, %v3230
      %v3232 = vpop.f32.mrf.mxu0
      %v3233 = vadd.f32 0.0, %v3232
      %3234 = vmatmul.bf16.gmra.mxu0 %v1528
      %v3235 = vpop.f32.mrf.mxu0
      %v3236 = vadd.f32 0.0, %v3235
      %v3237 = vpop.f32.mrf.mxu0
      %v3238 = vadd.f32 0.0, %v3237
      %3239 = vmatmul.bf16.gmra.mxu0 %v1529
      %v3240 = vpop.f32.mrf.mxu0
      %v3241 = vadd.f32 0.0, %v3240
      %v3242 = vpop.f32.mrf.mxu0
      %v3243 = vadd.f32 0.0, %v3242
      %3244 = vmatmul.bf16.gmra.mxu0 %v1530
      %v3245 = vpop.f32.mrf.mxu0
      %v3246 = vadd.f32 0.0, %v3245
      %v3247 = vpop.f32.mrf.mxu0
      %v3248 = vadd.f32 0.0, %v3247
      %3249 = vmatmul.bf16.gmra.mxu0 %v1531
      %v3250 = vpop.f32.mrf.mxu0
      %v3251 = vadd.f32 0.0, %v3250
      %v3252 = vpop.f32.mrf.mxu0
      %v3253 = vadd.f32 0.0, %v3252
      %3254 = vmatmul.bf16.gmra.mxu0 %v1532
      %v3255 = vpop.f32.mrf.mxu0
      %v3256 = vadd.f32 0.0, %v3255
      %v3257 = vpop.f32.mrf.mxu0
      %v3258 = vadd.f32 0.0, %v3257
      %3259 = vmatmul.bf16.gmra.mxu0 %v1533
      %v3260 = vpop.f32.mrf.mxu0
      %v3261 = vadd.f32 0.0, %v3260
      %v3262 = vpop.f32.mrf.mxu0
      %v3263 = vadd.f32 0.0, %v3262
      %3264 = vmatmul.bf16.gmra.mxu0 %v1534
      %v3265 = vpop.f32.mrf.mxu0
      %v3266 = vadd.f32 0.0, %v3265
      %v3267 = vpop.f32.mrf.mxu0
      %v3268 = vadd.f32 0.0, %v3267
      %3269 = vmatmul.bf16.gmra.mxu0 %v2345
      %v3270 = vpop.f32.mrf.mxu0
      %v3271 = vadd.f32 0.0, %v3270
      %v3272 = vpop.f32.mrf.mxu0
      %v3273 = vadd.f32 0.0, %v3272
      %3274 = vmatmul.bf16.gmra.mxu0 %v3141
      %v3275 = vpop.f32.mrf.mxu0
      %v3276 = vadd.f32 0.0, %v3275
      %v3277 = vpop.f32.mrf.mxu0
      %v3278 = vadd.f32 0.0, %v3277
      %3279 = vdwg.mxu0
      %v3280 = vadd.f32 %v3090, %v3201
      %v3281 = vadd.f32 %v3091, %v3203
      %v3282 = vadd.f32 %v3092, %v3206
      %v3283 = vadd.f32 %v3093, %v3208
      %v3284 = vadd.f32 %v3094, %v3211
      %v3285 = vadd.f32 %v3095, %v3213
      %v3286 = vadd.f32 %v3096, %v3216
      %v3287 = vadd.f32 %v3097, %v3218
      %v3288 = vadd.f32 %v3098, %v3221
      %v3289 = vadd.f32 %v3099, %v3223
      %v3290 = vadd.f32 %v3100, %v3226
      %v3291 = vadd.f32 %v3101, %v3228
      %v3292 = vadd.f32 %v3102, %v3231
      %v3293 = vadd.f32 %v3103, %v3233
      %v3294 = vadd.f32 %v3104, %v3236
      %v3295 = vadd.f32 %v3105, %v3238
      %v3296 = vadd.f32 %v3106, %v3241
      %v3297 = vadd.f32 %v3107, %v3243
      %v3298 = vadd.f32 %v3108, %v3246
      %v3299 = vadd.f32 %v3109, %v3248
      %v3300 = vadd.f32 %v3110, %v3251
      %v3301 = vadd.f32 %v3111, %v3253
      %v3302 = vadd.f32 %v3112, %v3256
      %v3303 = vadd.f32 %v3113, %v3258
      %v3304 = vadd.f32 %v3114, %v3261
      %v3305 = vadd.f32 %v3115, %v3263
      %v3306 = vadd.f32 %v3116, %v3266
      %v3307 = vadd.f32 %v3117, %v3268
      %v3308 = vadd.f32 %v3118, %v3271
      %v3309 = vadd.f32 %v3119, %v3273
      %v3310 = vadd.f32 %v3120, %v3276
      %v3311 = vadd.f32 %v3121, %v3278
      %3312 = vst [vmem:[#allocation2] sm:$0xff] %v3280
      %3313 = vst [vmem:[#allocation2 + $0x8] sm:$0xff] %v3281
      %3314 = vst [vmem:[#allocation2 + $0x10] sm:$0xff] %v3282
      %3315 = vst [vmem:[#allocation2 + $0x18] sm:$0xff] %v3283
      %3316 = vst [vmem:[#allocation2 + $0x20] sm:$0xff] %v3284
      %3317 = vst [vmem:[#allocation2 + $0x28] sm:$0xff] %v3285
      %3318 = vst [vmem:[#allocation2 + $0x30] sm:$0xff] %v3286
      %3319 = vst [vmem:[#allocation2 + $0x38] sm:$0xff] %v3287
      %3320 = vst [vmem:[#allocation2 + $0x40] sm:$0xff] %v3288
      %3321 = vst [vmem:[#allocation2 + $0x48] sm:$0xff] %v3289
      %3322 = vst [vmem:[#allocation2 + $0x50] sm:$0xff] %v3290
      %3323 = vst [vmem:[#allocation2 + $0x58] sm:$0xff] %v3291
      %3324 = vst [vmem:[#allocation2 + $0x60] sm:$0xff] %v3292
      %3325 = vst [vmem:[#allocation2 + $0x68] sm:$0xff] %v3293
      %3326 = vst [vmem:[#allocation2 + $0x70] sm:$0xff] %v3294
      %3327 = vst [vmem:[#allocation2 + $0x78] sm:$0xff] %v3295
      %3328 = vst [vmem:[#allocation2 + $0x80] sm:$0xff] %v3296
      %3329 = vst [vmem:[#allocation2 + $0x88] sm:$0xff] %v3297
      %3330 = vst [vmem:[#allocation2 + $0x90] sm:$0xff] %v3298
      %3331 = vst [vmem:[#allocation2 + $0x98] sm:$0xff] %v3299
      %3332 = vst [vmem:[#allocation2 + $0xa0] sm:$0xff] %v3300
      %3333 = vst [vmem:[#allocation2 + $0xa8] sm:$0xff] %v3301
      %3334 = vst [vmem:[#allocation2 + $0xb0] sm:$0xff] %v3302
      %3335 = vst [vmem:[#allocation2 + $0xb8] sm:$0xff] %v3303
      %3336 = vst [vmem:[#allocation2 + $0xc0] sm:$0xff] %v3304
      %3337 = vst [vmem:[#allocation2 + $0xc8] sm:$0xff] %v3305
      %3338 = vst [vmem:[#allocation2 + $0xd0] sm:$0xff] %v3306
      %3339 = vst [vmem:[#allocation2 + $0xd8] sm:$0xff] %v3307
      %3340 = vst [vmem:[#allocation2 + $0xe0] sm:$0xff] %v3308
      %3341 = vst [vmem:[#allocation2 + $0xe8] sm:$0xff] %v3309
      %3342 = vst [vmem:[#allocation2 + $0xf0] sm:$0xff] %v3310
      %3343 = vst [vmem:[#allocation2 + $0xf8] sm:$0xff] %v3311
      %v3344 = vld [vmem:[#allocation2] sm:$0xff]
      %v3345 = vld [vmem:[#allocation2 + $0x8] sm:$0xff]
      %v3346 = vld [vmem:[#allocation2 + $0x10] sm:$0xff]
      %v3347 = vld [vmem:[#allocation2 + $0x18] sm:$0xff]
      %v3348 = vld [vmem:[#allocation2 + $0x20] sm:$0xff]
      %v3349 = vld [vmem:[#allocation2 + $0x28] sm:$0xff]
      %v3350 = vld [vmem:[#allocation2 + $0x30] sm:$0xff]
      %v3351 = vld [vmem:[#allocation2 + $0x38] sm:$0xff]
      %v3352 = vld [vmem:[#allocation2 + $0x40] sm:$0xff]
      %v3353 = vld [vmem:[#allocation2 + $0x48] sm:$0xff]
      %v3354 = vld [vmem:[#allocation2 + $0x50] sm:$0xff]
      %v3355 = vld [vmem:[#allocation2 + $0x58] sm:$0xff]
      %v3356 = vld [vmem:[#allocation2 + $0x60] sm:$0xff]
      %v3357 = vld [vmem:[#allocation2 + $0x68] sm:$0xff]
      %v3358 = vld [vmem:[#allocation2 + $0x70] sm:$0xff]
      %v3359 = vld [vmem:[#allocation2 + $0x78] sm:$0xff]
      %v3360 = vld [vmem:[#allocation2 + $0x80] sm:$0xff]
      %v3361 = vld [vmem:[#allocation2 + $0x88] sm:$0xff]
      %v3362 = vld [vmem:[#allocation2 + $0x90] sm:$0xff]
      %v3363 = vld [vmem:[#allocation2 + $0x98] sm:$0xff]
      %v3364 = vld [vmem:[#allocation2 + $0xa0] sm:$0xff]
      %v3365 = vld [vmem:[#allocation2 + $0xa8] sm:$0xff]
      %v3366 = vld [vmem:[#allocation2 + $0xb0] sm:$0xff]
      %v3367 = vld [vmem:[#allocation2 + $0xb8] sm:$0xff]
      %v3368 = vld [vmem:[#allocation2 + $0xc0] sm:$0xff]
      %v3369 = vld [vmem:[#allocation2 + $0xc8] sm:$0xff]
      %v3370 = vld [vmem:[#allocation2 + $0xd0] sm:$0xff]
      %v3371 = vld [vmem:[#allocation2 + $0xd8] sm:$0xff]
      %v3372 = vld [vmem:[#allocation2 + $0xe0] sm:$0xff]
      %v3373 = vld [vmem:[#allocation2 + $0xe8] sm:$0xff]
      %v3374 = vld [vmem:[#allocation2 + $0xf0] sm:$0xff]
      %v3375 = vld [vmem:[#allocation2 + $0xf8] sm:$0xff]
      %v3376 = vmax.f32 %v3344, 0.0
      %v3377 = vmax.f32 %v3345, 0.0
      %v3378 = vmax.f32 %v3346, 0.0
      %v3379 = vmax.f32 %v3347, 0.0
      %v3380 = vmax.f32 %v3348, 0.0
      %v3381 = vmax.f32 %v3349, 0.0
      %v3382 = vmax.f32 %v3350, 0.0
      %v3383 = vmax.f32 %v3351, 0.0
      %v3384 = vmax.f32 %v3352, 0.0
      %v3385 = vmax.f32 %v3353, 0.0
      %v3386 = vmax.f32 %v3354, 0.0
      %v3387 = vmax.f32 %v3355, 0.0
      %v3388 = vmax.f32 %v3356, 0.0
      %v3389 = vmax.f32 %v3357, 0.0
      %v3390 = vmax.f32 %v3358, 0.0
      %v3391 = vmax.f32 %v3359, 0.0
      %v3392 = vmax.f32 %v3360, 0.0
      %v3393 = vmax.f32 %v3361, 0.0
      %v3394 = vmax.f32 %v3362, 0.0
      %v3395 = vmax.f32 %v3363, 0.0
      %v3396 = vmax.f32 %v3364, 0.0
      %v3397 = vmax.f32 %v3365, 0.0
      %v3398 = vmax.f32 %v3366, 0.0
      %v3399 = vmax.f32 %v3367, 0.0
      %v3400 = vmax.f32 %v3368, 0.0
      %v3401 = vmax.f32 %v3369, 0.0
      %v3402 = vmax.f32 %v3370, 0.0
      %v3403 = vmax.f32 %v3371, 0.0
      %v3404 = vmax.f32 %v3372, 0.0
      %v3405 = vmax.f32 %v3373, 0.0
      %v3406 = vmax.f32 %v3374, 0.0
      %v3407 = vmax.f32 %v3375, 0.0
      %v3408 = vpack.c.bf16 %v3376, %v3376
      %v3409 = vpack.c.bf16 %v3377, %v3377
      %v3410 = vpack.c.bf16 %v3378, %v3378
      %v3411 = vpack.c.bf16 %v3379, %v3379
      %v3412 = vpack.c.bf16 %v3380, %v3380
      %v3413 = vpack.c.bf16 %v3381, %v3381
      %v3414 = vpack.c.bf16 %v3382, %v3382
      %v3415 = vpack.c.bf16 %v3383, %v3383
      %v3416 = vpack.c.bf16 %v3384, %v3384
      %v3417 = vpack.c.bf16 %v3385, %v3385
      %v3418 = vpack.c.bf16 %v3386, %v3386
      %v3419 = vpack.c.bf16 %v3387, %v3387
      %v3420 = vpack.c.bf16 %v3388, %v3388
      %v3421 = vpack.c.bf16 %v3389, %v3389
      %v3422 = vpack.c.bf16 %v3390, %v3390
      %v3423 = vpack.c.bf16 %v3391, %v3391
      %v3424 = vpack.c.bf16 %v3392, %v3392
      %v3425 = vpack.c.bf16 %v3393, %v3393
      %v3426 = vpack.c.bf16 %v3394, %v3394
      %v3427 = vpack.c.bf16 %v3395, %v3395
      %v3428 = vpack.c.bf16 %v3396, %v3396
      %v3429 = vpack.c.bf16 %v3397, %v3397
      %v3430 = vpack.c.bf16 %v3398, %v3398
      %v3431 = vpack.c.bf16 %v3399, %v3399
      %v3432 = vpack.c.bf16 %v3400, %v3400
      %v3433 = vpack.c.bf16 %v3401, %v3401
      %v3434 = vpack.c.bf16 %v3402, %v3402
      %v3435 = vpack.c.bf16 %v3403, %v3403
      %v3436 = vpack.c.bf16 %v3404, %v3404
      %v3437 = vpack.c.bf16 %v3405, %v3405
      %v3438 = vpack.c.bf16 %v3406, %v3406
      %v3439 = vpack.c.bf16 %v3407, %v3407
      %3440 = vst [vmem:[%s170] sm:$0xf] %v3408
      %3441 = vst [vmem:[%s170 + $0x4] sm:$0xf] %v3409
      %3442 = vst [vmem:[%s170 + $0x8] sm:$0xf] %v3410
      %3443 = vst [vmem:[%s170 + $0xc] sm:$0xf] %v3411
      %3444 = vst [vmem:[%s170 + $0x10] sm:$0xf] %v3412
      %3445 = vst [vmem:[%s170 + $0x14] sm:$0xf] %v3413
      %3446 = vst [vmem:[%s170 + $0x18] sm:$0xf] %v3414
      %3447 = vst [vmem:[%s170 + $0x1c] sm:$0xf] %v3415
      %3448 = vst [vmem:[%s170 + $0x20] sm:$0xf] %v3416
      %3449 = vst [vmem:[%s170 + $0x24] sm:$0xf] %v3417
      %3450 = vst [vmem:[%s170 + $0x28] sm:$0xf] %v3418
      %3451 = vst [vmem:[%s170 + $0x2c] sm:$0xf] %v3419
      %3452 = vst [vmem:[%s170 + $0x30] sm:$0xf] %v3420
      %3453 = vst [vmem:[%s170 + $0x34] sm:$0xf] %v3421
      %3454 = vst [vmem:[%s170 + $0x38] sm:$0xf] %v3422
      %3455 = vst [vmem:[%s170 + $0x3c] sm:$0xf] %v3423
      %3456 = vst [vmem:[%s170 + $0x40] sm:$0xf] %v3424
      %3457 = vst [vmem:[%s170 + $0x44] sm:$0xf] %v3425
      %3458 = vst [vmem:[%s170 + $0x48] sm:$0xf] %v3426
      %3459 = vst [vmem:[%s170 + $0x4c] sm:$0xf] %v3427
      %3460 = vst [vmem:[%s170 + $0x50] sm:$0xf] %v3428
      %3461 = vst [vmem:[%s170 + $0x54] sm:$0xf] %v3429
      %3462 = vst [vmem:[%s170 + $0x58] sm:$0xf] %v3430
      %3463 = vst [vmem:[%s170 + $0x5c] sm:$0xf] %v3431
      %3464 = vst [vmem:[%s170 + $0x60] sm:$0xf] %v3432
      %3465 = vst [vmem:[%s170 + $0x64] sm:$0xf] %v3433
      %3466 = vst [vmem:[%s170 + $0x68] sm:$0xf] %v3434
      %3467 = vst [vmem:[%s170 + $0x6c] sm:$0xf] %v3435
      %3468 = vst [vmem:[%s170 + $0x70] sm:$0xf] %v3436
      %3469 = vst [vmem:[%s170 + $0x74] sm:$0xf] %v3437
      %3470 = vst [vmem:[%s170 + $0x78] sm:$0xf] %v3438
      %3471 = vst [vmem:[%s170 + $0x7c] sm:$0xf] %v3439
      %p3472 = scmp.lt.s32.totalorder %s14, 1
      %s3473 = scalar_select %p3472, %s14, 1
      %s3474 = smul.addr %s3473, 32
      %s3475 = smul.addr %s3474, 4
      %s3476 = scalar_lea.vmem %s3, %s3475
      // Predicated region
      $region33: #{_forward_impl.3} parent=31 // pred_check
        %p3477 = pneg %p100
      $region34: #{_forward_impl.3} parent=31 // pred_check_branch
        %3479 = sbr.rel (%p3477) target = $region36
      $region35: #{_forward_impl.3} parent=31 // pred_region
        _
      $region36: #{_forward_impl.3} parent=31 // pred_fallthru
        _
    $region32: #{_forward_impl.3} parent=5 // pred_fallthru
      _
    %p3480 = scmp.le.s32.totalorder 2, %s9
    // Predicated region
    $region37: #{_forward_impl.3} parent=5 // pred_check
      %p3481 = pneg %p3480
    $region38: #{_forward_impl.3} parent=5 // pred_check_branch
      %3483 = sbr.rel (%p3481) target = $region40
    $region39: #{_forward_impl.3} parent=5 // pred_region
      %s3484 = ssub.s32 %s9, 2
      // Predicated region
      $region41: #{_forward_impl.3} parent=39 // pred_check
        %p3485 = pneg %p106
      $region42: #{_forward_impl.3} parent=39 // pred_check_branch
        %3487 = sbr.rel (%p3485) target = $region44
      $region43: #{_forward_impl.3} parent=39 // pred_region
        %p3488 = scmp.lt.s32.totalorder %s15, 1
        %s3489 = scalar_select %p3488, %s15, 1
        %s3490 = smul.addr %s3489, 32
        %s3491 = smul.addr %s3490, 4
        %s3492 = scalar_lea.vmem %s3, %s3491
      $region44: #{_forward_impl.3} parent=39 // pred_fallthru
        _
    $region40: #{_forward_impl.3} parent=5 // pred_fallthru
      _
  $region6: #{_forward_impl.3} parent=0 // loop_footer
    %s13 = sadd.s32 1, %s9
  $region7: #{_forward_impl.3} parent=0 // loop_footer_branch
    %8 = sbr.rel target = $region3
  $region8: #{_forward_impl.3} parent=0 // loop_exit
    _

</llo_original>
